<compile_context>
chip_gen: v7x
topology: tpu7x:2x2x1
jax: 0.10.0
libtpu: 0.0.40
codegen_flags: <defaults>
</compile_context>

<pallas_src>
import math
from functools import partial

import jax
import jax.numpy as jnp
from jax.experimental import pallas as pl
from jax.experimental.pallas import tpu as pltpu


# ----------------------------- kernel helpers ------------------------------

def _layernorm(x, g, b, eps=1e-5):
    mu = jnp.mean(x, axis=-1, keepdims=True)
    var = jnp.mean((x - mu) ** 2, axis=-1, keepdims=True)   # biased, like torch
    return (x - mu) * jax.lax.rsqrt(var + eps) * g + b


def _gelu_exact(x):
    # torch's activation='gelu' in TransformerEncoderLayer is exact erf-GELU.
    return 0.5 * x * (1.0 + jax.lax.erf(x * (1.0 / math.sqrt(2.0))))


# ----------------------- fully fused transformer kernel ---------------------

def _transformer_kernel(n_heads,
                        tok_ref,                 # SMEM (B, S) int32 (scalar prefetch)
                        emb_ref,                 # HBM  (n_emb, E) f32 (pl.ANY)
                        pe_ref,                  # VMEM (S, E) f32
                        ln1g_ref, ln1b_ref,      # (L, 1, E)
                        wq_ref, wk_ref, wv_ref,  # (L, H, E, D) bf16
                        bq_ref, bk_ref, bv_ref,  # (L, H, 1, D) f32
                        wo_ref, bo_ref,          # (L, E, E) bf16 / (L, 1, E) f32
                        ln2g_ref, ln2b_ref,      # (L, 1, E)
                        w1_ref, b1_ref,          # (L, E, F) bf16 / (L, 1, F) f32
                        w2_ref, b2_ref,          # (L, F, E) bf16 / (L, 1, E) f32
                        ng_ref, nb_ref,          # (1, E)
                        wout_ref,                # (E, V) bf16
                        o_ref,                   # (1, S, V) f32 output block
                        xg_ref,                  # VMEM scratch (S, E) f32
                        gsem):                   # DMA sems (S,)
    S, E = xg_ref.shape
    L = ln1g_ref.shape[0]
    H = n_heads
    D = E // H
    scale = 1.0 / math.sqrt(D)
    bf16 = jnp.bfloat16
    b = pl.program_id(0)

    # ---- fused token-embedding gather (HBM rows -> VMEM scratch) -----------
    def _row_copy(i):
        return pltpu.make_async_copy(
            emb_ref.at[pl.ds(tok_ref[b, i], 1)],   # (1, E) row in HBM
            xg_ref.at[pl.ds(i, 1)],                # (1, E) row in VMEM
            gsem.at[i])

    for i in range(S):
        _row_copy(i).start()
    for i in range(S):
        _row_copy(i).wait()

    # positional add fused in-kernel; activation x stays (S, E) f32 in VMEM.
    x = xg_ref[...] + pe_ref[...]

    for l in range(L):                       # static layer loop (weights stacked)
        # --- pre-norm multi-head self-attention: x = x + Wo.Attn(LN1(x)) + bo
        h_bf = _layernorm(x, ln1g_ref[l], ln1b_ref[l]).astype(bf16)  # cast once

        ctx_heads = []
        for hh in range(H):                  # static head loop
            # per-head weight slabs: slice the WEIGHT (static leading dims),
            # never the VMEM activation (no sub-128-lane activation slices).
            q = (jnp.dot(h_bf, wq_ref[l, hh],
                         preferred_element_type=jnp.float32)
                 + bq_ref[l, hh]) * scale                      # (S, D)
            k = jnp.dot(h_bf, wk_ref[l, hh],
                        preferred_element_type=jnp.float32) + bk_ref[l, hh]
            v = jnp.dot(h_bf, wv_ref[l, hh],
                        preferred_element_type=jnp.float32) + bv_ref[l, hh]

            qs = q[None].astype(bf16)                           # (1, S, D)
            ks = k[None].astype(bf16)
            vs = v[None].astype(bf16)

            s = jnp.einsum('bqd,bkd->bqk', qs, ks,
                           preferred_element_type=jnp.float32)  # (1, S, S)
            s = s - jnp.max(s, axis=-1, keepdims=True)
            p = jnp.exp(s)
            p = p * pl.reciprocal(jnp.sum(p, axis=-1, keepdims=True),
                                  approx=True)
            c = jnp.einsum('bqk,bkd->bqd', p.astype(bf16), vs,
                           preferred_element_type=jnp.float32)  # (1, S, D)
            ctx_heads.append(c[0])                              # (S, D) f32

        # single (S,E)x(E,E) output projection (no per-head K=8 matmuls)
        ctx = jnp.concatenate(ctx_heads, axis=-1)               # (S, E)
        attn = jnp.dot(ctx.astype(bf16), wo_ref[l],
                       preferred_element_type=jnp.float32) + bo_ref[l]
        x = x + attn                          # dropout == identity (eval mode)

        # --- pre-norm feed-forward: x = x + W2 gelu(W1 LN2(x) + b1) + b2 ----
        h2 = _layernorm(x, ln2g_ref[l], ln2b_ref[l]).astype(bf16)
        f = jnp.dot(h2, w1_ref[l],
                    preferred_element_type=jnp.float32) + b1_ref[l]
        f = _gelu_exact(f).astype(bf16)                          # cast once
        f = jnp.dot(f, w2_ref[l],
                    preferred_element_type=jnp.float32) + b2_ref[l]
        x = x + f

    # --- final LayerNorm + vocab projection (no bias) -----------------------
    hN = _layernorm(x, ng_ref[...], nb_ref[...]).astype(bf16)
    logits = jnp.dot(hN, wout_ref[...],
                     preferred_element_type=jnp.float32)         # (S, V)
    o_ref[...] = logits[None]


def transformer_forward(tokens, params, n_heads):
    B, S = tokens.shape
    E = params['emb'].shape[1]
    V = params['w_out'].shape[1]
    pe = params['pe'][:S]                                        # (S, E)

    inputs = [params['emb'], pe,
              params['ln1_g'], params['ln1_b'],
              params['w_q'], params['w_k'], params['w_v'],
              params['b_q'], params['b_k'], params['b_v'],
              params['w_o'], params['b_o'],
              params['ln2_g'], params['ln2_b'],
              params['w1'], params['b1'], params['w2'], params['b2'],
              params['norm_g'], params['norm_b'], params['w_out']]

    def const_spec(a):
        nd = a.ndim
        # grid-invariant full-array block; index_map also receives the
        # scalar-prefetch tokens ref as a trailing positional arg.
        return pl.BlockSpec(a.shape, lambda i, tok, _nd=nd: (0,) * _nd)

    in_specs = [pl.BlockSpec(memory_space=pl.ANY)]        # emb stays in HBM
    in_specs += [const_spec(a) for a in inputs[1:]]

    grid_spec = pltpu.PrefetchScalarGridSpec(
        num_scalar_prefetch=1,                            # tokens -> SMEM
        grid=(B,),                                        # parallel over batch
        in_specs=in_specs,
        out_specs=pl.BlockSpec((1, S, V), lambda i, tok: (i, 0, 0)),
        scratch_shapes=[pltpu.VMEM((S, E), jnp.float32),
                        pltpu.SemaphoreType.DMA((S,))])

    out = pl.pallas_call(
        partial(_transformer_kernel, n_heads),
        out_shape=jax.ShapeDtypeStruct((B, S, V), jnp.float32),
        grid_spec=grid_spec,
        compiler_params=pltpu.CompilerParams(
            dimension_semantics=("parallel",)),
    )(tokens, *inputs)
    return out


# ------------------------------ parameters ----------------------------------

def positional_embedding(d_model, max_seq_len):
    # Matches the reference formula exactly (including the 2*(i+1)/d_model
    # exponent on odd channels):
    #   pe[pos, i]   = sin(pos / 10000 ** (2*i/d_model))        for even i
    #   pe[pos, i+1] = cos(pos / 10000 ** (2*(i+1)/d_model))
    pos = jnp.arange(max_seq_len, dtype=jnp.float32)[:, None]
    i = jnp.arange(0, d_model, 2, dtype=jnp.float32)[None, :]
    pe = jnp.zeros((max_seq_len, d_model), jnp.float32)
    pe = pe.at[:, 0::2].set(jnp.sin(pos / 10000.0 ** (2.0 * i / d_model)))
    pe = pe.at[:, 1::2].set(jnp.cos(pos / 10000.0 ** (2.0 * (i + 1.0) / d_model)))
    return pe


def init_params(key, n_code, n_heads, embed_size, inner_ff, n_embeddings, seq_len):
    L, E, F, H = n_code, embed_size, inner_ff, n_heads
    D = E // H
    keys = jax.random.split(key, 2 + L)

    def w(k, shape, s=0.05):
        return jax.random.normal(k, shape, jnp.float32) * s

    def per_head(wfull):                     # (E, E) -> (H, E, D) column slabs
        return wfull.reshape(E, H, D).transpose(1, 0, 2)

    emb = w(keys[0], (n_embeddings, E), 0.02)
    w_out = w(keys[1], (E, n_embeddings), 0.02)

    wq_l, wk_l, wv_l, wo_l, w1_l, b1_l, w2_l, b2_l = ([] for _ in range(8))
    for l in range(L):
        lk = jax.random.split(keys[2 + l], 8)
        wq_l.append(per_head(w(lk[0], (E, E))))
        wk_l.append(per_head(w(lk[1], (E, E))))
        wv_l.append(per_head(w(lk[2], (E, E))))
        wo_l.append(w(lk[3], (E, E)))                            # (E, E)
        w1_l.append(w(lk[4], (E, F)))
        b1_l.append(w(lk[5], (1, F), 0.02))
        w2_l.append(w(lk[6], (F, E)))
        b2_l.append(w(lk[7], (1, E), 0.02))

    return dict(
        emb=emb,
        pe=positional_embedding(E, seq_len),
        ln1_g=jnp.ones((L, 1, E), jnp.float32),
        ln1_b=jnp.zeros((L, 1, E), jnp.float32),
        w_q=jnp.stack(wq_l).astype(jnp.bfloat16),     # (L, H, E, D)
        w_k=jnp.stack(wk_l).astype(jnp.bfloat16),
        w_v=jnp.stack(wv_l).astype(jnp.bfloat16),
        b_q=jnp.zeros((L, H, 1, D), jnp.float32),     # torch init: in_proj bias = 0
        b_k=jnp.zeros((L, H, 1, D), jnp.float32),
        b_v=jnp.zeros((L, H, 1, D), jnp.float32),
        w_o=jnp.stack(wo_l).astype(jnp.bfloat16),     # (L, E, E)
        b_o=jnp.zeros((L, 1, E), jnp.float32),
        ln2_g=jnp.ones((L, 1, E), jnp.float32),
        ln2_b=jnp.zeros((L, 1, E), jnp.float32),
        w1=jnp.stack(w1_l).astype(jnp.bfloat16),      # (L, E, F)
        b1=jnp.stack(b1_l),
        w2=jnp.stack(w2_l).astype(jnp.bfloat16),      # (L, F, E)
        b2=jnp.stack(b2_l),
        norm_g=jnp.ones((1, E), jnp.float32),
        norm_b=jnp.zeros((1, E), jnp.float32),
        w_out=w_out.astype(jnp.bfloat16),             # (E, V)
    )


# ------------------------ pure-JAX reference (f32) ---------------------------

def transformer_reference(tokens, params, n_heads):
    f32 = jnp.float32
    x = params['emb'][tokens].astype(f32)
    B, S, E = x.shape
    H = n_heads
    D = E // H
    x = x + params['pe'][:S][None]
    L = params['ln1_g'].shape[0]

    def ln(v, g, b, eps=1e-5):
        mu = v.mean(-1, keepdims=True)
        var = ((v - mu) ** 2).mean(-1, keepdims=True)
        return (v - mu) / jnp.sqrt(var + eps) * g + b

    for l in range(L):
        h = ln(x, params['ln1_g'][l], params['ln1_b'][l])
        ctxs = []
        for hh in range(H):
            q = h @ params['w_q'][l, hh].astype(f32) + params['b_q'][l, hh]
            k = h @ params['w_k'][l, hh].astype(f32) + params['b_k'][l, hh]
            v = h @ params['w_v'][l, hh].astype(f32) + params['b_v'][l, hh]
            s = jnp.einsum('bqd,bkd->bqk', q, k) / math.sqrt(D)
            p = jax.nn.softmax(s, axis=-1)
            ctxs.append(jnp.einsum('bqk,bkd->bqd', p, v))
        ctx = jnp.concatenate(ctxs, axis=-1)
        x = x + (ctx @ params['w_o'][l].astype(f32) + params['b_o'][l])
        h2 = ln(x, params['ln2_g'][l], params['ln2_b'][l])
        f = h2 @ params['w1'][l].astype(f32) + params['b1'][l]
        f = 0.5 * f * (1.0 + jax.lax.erf(f / math.sqrt(2.0)))
        f = f @ params['w2'][l].astype(f32) + params['b2'][l]
        x = x + f
    x = ln(x, params['norm_g'], params['norm_b'])
    return x @ params['w_out'].astype(f32)


# ---------------------------------- main ------------------------------------

if __name__ == "__main__":
    n_code, n_heads = 2, 4
    embed_size, inner_ff = 32, 64
    n_embeddings, seq_len = 64, 8
    batch = 2

    key = jax.random.PRNGKey(0)
    pkey, tkey = jax.random.split(key)
    params = init_params(pkey, n_code, n_heads, embed_size, inner_ff,
                         n_embeddings, seq_len)
    tokens = jax.random.randint(tkey, (batch, seq_len), 0, n_embeddings,
                                dtype=jnp.int32)

    out = transformer_forward(tokens, params, n_heads)
    out = jax.block_until_ready(out)
    assert out.shape == (batch, seq_len, n_embeddings)
    assert bool(jnp.all(jnp.isfinite(out)))

    ref = transformer_reference(tokens, params, n_heads)
    max_err = float(jnp.max(jnp.abs(out - ref)))
    assert max_err < 5e-2, f"kernel deviates from reference: {max_err}"

    print("KERNEL_OK")
</pallas_src>

<mosaic_0001>
module attributes {stable_mosaic.version = 11 : i64} {
  func.func @_transformer_kernel(%arg0: i32, %arg1: memref<2x8xi32, #tpu.memory_space<smem>>, %arg2: memref<64x32xf32, #tpu.memory_space<any>>, %arg3: memref<8x32xf32, #tpu.memory_space<vmem>>, %arg4: memref<2x1x32xf32, #tpu.memory_space<vmem>>, %arg5: memref<2x1x32xf32, #tpu.memory_space<vmem>>, %arg6: memref<2x4x32x8xbf16, #tpu.memory_space<vmem>>, %arg7: memref<2x4x32x8xbf16, #tpu.memory_space<vmem>>, %arg8: memref<2x4x32x8xbf16, #tpu.memory_space<vmem>>, %arg9: memref<2x4x1x8xf32, #tpu.memory_space<vmem>>, %arg10: memref<2x4x1x8xf32, #tpu.memory_space<vmem>>, %arg11: memref<2x4x1x8xf32, #tpu.memory_space<vmem>>, %arg12: memref<2x32x32xbf16, #tpu.memory_space<vmem>>, %arg13: memref<2x1x32xf32, #tpu.memory_space<vmem>>, %arg14: memref<2x1x32xf32, #tpu.memory_space<vmem>>, %arg15: memref<2x1x32xf32, #tpu.memory_space<vmem>>, %arg16: memref<2x32x64xbf16, #tpu.memory_space<vmem>>, %arg17: memref<2x1x64xf32, #tpu.memory_space<vmem>>, %arg18: memref<2x64x32xbf16, #tpu.memory_space<vmem>>, %arg19: memref<2x1x32xf32, #tpu.memory_space<vmem>>, %arg20: memref<1x32xf32, #tpu.memory_space<vmem>>, %arg21: memref<1x32xf32, #tpu.memory_space<vmem>>, %arg22: memref<32x64xbf16, #tpu.memory_space<vmem>>, %arg23: memref<1x8x64xf32, #tpu.memory_space<vmem>>, %arg24: memref<8x32xf32, #tpu.memory_space<vmem>>, %arg25: memref<8x!tpu.dma_semaphore, #tpu.memory_space<semaphore_mem>>) attributes {dimension_semantics = [#tpu.dimension_semantics<parallel>], iteration_bounds = array<i64: 2>, scalar_prefetch = 1 : i64, scratch_operands = 2 : i64, tpu.core_type = #tpu.core_type<tc>, window_params = [{}, {pipeline_mode = #tpu.pipeline_mode<synchronous>, transform_indices = @transform_1, window_bounds = array<i64: 8, 32>}, {pipeline_mode = #tpu.pipeline_mode<synchronous>, transform_indices = @transform_2, window_bounds = array<i64: 2, 1, 32>}, {pipeline_mode = #tpu.pipeline_mode<synchronous>, transform_indices = @transform_3, window_bounds = array<i64: 2, 1, 32>}, {pipeline_mode = #tpu.pipeline_mode<synchronous>, transform_indices = @transform_4, window_bounds = array<i64: 2, 4, 32, 8>}, {pipeline_mode = #tpu.pipeline_mode<synchronous>, transform_indices = @transform_5, window_bounds = array<i64: 2, 4, 32, 8>}, {pipeline_mode = #tpu.pipeline_mode<synchronous>, transform_indices = @transform_6, window_bounds = array<i64: 2, 4, 32, 8>}, {pipeline_mode = #tpu.pipeline_mode<synchronous>, transform_indices = @transform_7, window_bounds = array<i64: 2, 4, 1, 8>}, {pipeline_mode = #tpu.pipeline_mode<synchronous>, transform_indices = @transform_8, window_bounds = array<i64: 2, 4, 1, 8>}, {pipeline_mode = #tpu.pipeline_mode<synchronous>, transform_indices = @transform_9, window_bounds = array<i64: 2, 4, 1, 8>}, {pipeline_mode = #tpu.pipeline_mode<synchronous>, transform_indices = @transform_10, window_bounds = array<i64: 2, 32, 32>}, {pipeline_mode = #tpu.pipeline_mode<synchronous>, transform_indices = @transform_11, window_bounds = array<i64: 2, 1, 32>}, {pipeline_mode = #tpu.pipeline_mode<synchronous>, transform_indices = @transform_12, window_bounds = array<i64: 2, 1, 32>}, {pipeline_mode = #tpu.pipeline_mode<synchronous>, transform_indices = @transform_13, window_bounds = array<i64: 2, 1, 32>}, {pipeline_mode = #tpu.pipeline_mode<synchronous>, transform_indices = @transform_14, window_bounds = array<i64: 2, 32, 64>}, {pipeline_mode = #tpu.pipeline_mode<synchronous>, transform_indices = @transform_15, window_bounds = array<i64: 2, 1, 64>}, {pipeline_mode = #tpu.pipeline_mode<synchronous>, transform_indices = @transform_16, window_bounds = array<i64: 2, 64, 32>}, {pipeline_mode = #tpu.pipeline_mode<synchronous>, transform_indices = @transform_17, window_bounds = array<i64: 2, 1, 32>}, {pipeline_mode = #tpu.pipeline_mode<synchronous>, transform_indices = @transform_18, window_bounds = array<i64: 1, 32>}, {pipeline_mode = #tpu.pipeline_mode<synchronous>, transform_indices = @transform_19, window_bounds = array<i64: 1, 32>}, {pipeline_mode = #tpu.pipeline_mode<synchronous>, transform_indices = @transform_20, window_bounds = array<i64: 32, 64>}, {transform_indices = @transform_21, window_bounds = array<i64: 1, 8, 64>}]} {
    %0 = arith.index_cast %arg0 : i32 to index
    %c0 = arith.constant 0 : index
    %1 = memref.load %arg1[%0, %c0] : memref<2x8xi32, #tpu.memory_space<smem>>
    %c0_i32 = arith.constant 0 : i32
    %c0_i32_0 = arith.constant 0 : i32
    %2 = tpu.memref_slice %arg2[%1, %c0_i32_0] : memref<64x32xf32, #tpu.memory_space<any>> -> memref<1x32xf32, #tpu.memory_space<any>>
    %c0_i32_1 = arith.constant 0 : i32
    %c0_i32_2 = arith.constant 0 : i32
    %3 = tpu.memref_slice %arg24[%c0_i32_1, %c0_i32_2] : memref<8x32xf32, #tpu.memory_space<vmem>> -> memref<1x32xf32, #tpu.memory_space<vmem>>
    %4 = tpu.memref_slice %arg25[%c0_i32] : memref<8x!tpu.dma_semaphore, #tpu.memory_space<semaphore_mem>> -> memref<1x!tpu.dma_semaphore, #tpu.memory_space<semaphore_mem>>
    %5 = tpu.memref_squeeze %4 : memref<1x!tpu.dma_semaphore, #tpu.memory_space<semaphore_mem>> -> memref<!tpu.dma_semaphore, #tpu.memory_space<semaphore_mem>>
    tpu.enqueue_dma source(%2 : memref<1x32xf32, #tpu.memory_space<any>>) target(%3 : memref<1x32xf32, #tpu.memory_space<vmem>>) target_semaphore(%5 : memref<!tpu.dma_semaphore, #tpu.memory_space<semaphore_mem>>)
    %6 = arith.index_cast %arg0 : i32 to index
    %c1 = arith.constant 1 : index
    %7 = memref.load %arg1[%6, %c1] : memref<2x8xi32, #tpu.memory_space<smem>>
    %c1_i32 = arith.constant 1 : i32
    %c0_i32_3 = arith.constant 0 : i32
    %8 = tpu.memref_slice %arg2[%7, %c0_i32_3] : memref<64x32xf32, #tpu.memory_space<any>> -> memref<1x32xf32, #tpu.memory_space<any>>
    %c1_i32_4 = arith.constant 1 : i32
    %c0_i32_5 = arith.constant 0 : i32
    %9 = tpu.memref_slice %arg24[%c1_i32_4, %c0_i32_5] : memref<8x32xf32, #tpu.memory_space<vmem>> -> memref<1x32xf32, #tpu.memory_space<vmem>>
    %10 = tpu.memref_slice %arg25[%c1_i32] : memref<8x!tpu.dma_semaphore, #tpu.memory_space<semaphore_mem>> -> memref<1x!tpu.dma_semaphore, #tpu.memory_space<semaphore_mem>>
    %11 = tpu.memref_squeeze %10 : memref<1x!tpu.dma_semaphore, #tpu.memory_space<semaphore_mem>> -> memref<!tpu.dma_semaphore, #tpu.memory_space<semaphore_mem>>
    tpu.enqueue_dma source(%8 : memref<1x32xf32, #tpu.memory_space<any>>) target(%9 : memref<1x32xf32, #tpu.memory_space<vmem>>) target_semaphore(%11 : memref<!tpu.dma_semaphore, #tpu.memory_space<semaphore_mem>>)
    %12 = arith.index_cast %arg0 : i32 to index
    %c2 = arith.constant 2 : index
    %13 = memref.load %arg1[%12, %c2] : memref<2x8xi32, #tpu.memory_space<smem>>
    %c2_i32 = arith.constant 2 : i32
    %c0_i32_6 = arith.constant 0 : i32
    %14 = tpu.memref_slice %arg2[%13, %c0_i32_6] : memref<64x32xf32, #tpu.memory_space<any>> -> memref<1x32xf32, #tpu.memory_space<any>>
    %c2_i32_7 = arith.constant 2 : i32
    %c0_i32_8 = arith.constant 0 : i32
    %15 = tpu.memref_slice %arg24[%c2_i32_7, %c0_i32_8] : memref<8x32xf32, #tpu.memory_space<vmem>> -> memref<1x32xf32, #tpu.memory_space<vmem>>
    %16 = tpu.memref_slice %arg25[%c2_i32] : memref<8x!tpu.dma_semaphore, #tpu.memory_space<semaphore_mem>> -> memref<1x!tpu.dma_semaphore, #tpu.memory_space<semaphore_mem>>
    %17 = tpu.memref_squeeze %16 : memref<1x!tpu.dma_semaphore, #tpu.memory_space<semaphore_mem>> -> memref<!tpu.dma_semaphore, #tpu.memory_space<semaphore_mem>>
    tpu.enqueue_dma source(%14 : memref<1x32xf32, #tpu.memory_space<any>>) target(%15 : memref<1x32xf32, #tpu.memory_space<vmem>>) target_semaphore(%17 : memref<!tpu.dma_semaphore, #tpu.memory_space<semaphore_mem>>)
    %18 = arith.index_cast %arg0 : i32 to index
    %c3 = arith.constant 3 : index
    %19 = memref.load %arg1[%18, %c3] : memref<2x8xi32, #tpu.memory_space<smem>>
    %c3_i32 = arith.constant 3 : i32
    %c0_i32_9 = arith.constant 0 : i32
    %20 = tpu.memref_slice %arg2[%19, %c0_i32_9] : memref<64x32xf32, #tpu.memory_space<any>> -> memref<1x32xf32, #tpu.memory_space<any>>
    %c3_i32_10 = arith.constant 3 : i32
    %c0_i32_11 = arith.constant 0 : i32
    %21 = tpu.memref_slice %arg24[%c3_i32_10, %c0_i32_11] : memref<8x32xf32, #tpu.memory_space<vmem>> -> memref<1x32xf32, #tpu.memory_space<vmem>>
    %22 = tpu.memref_slice %arg25[%c3_i32] : memref<8x!tpu.dma_semaphore, #tpu.memory_space<semaphore_mem>> -> memref<1x!tpu.dma_semaphore, #tpu.memory_space<semaphore_mem>>
    %23 = tpu.memref_squeeze %22 : memref<1x!tpu.dma_semaphore, #tpu.memory_space<semaphore_mem>> -> memref<!tpu.dma_semaphore, #tpu.memory_space<semaphore_mem>>
    tpu.enqueue_dma source(%20 : memref<1x32xf32, #tpu.memory_space<any>>) target(%21 : memref<1x32xf32, #tpu.memory_space<vmem>>) target_semaphore(%23 : memref<!tpu.dma_semaphore, #tpu.memory_space<semaphore_mem>>)
    %24 = arith.index_cast %arg0 : i32 to index
    %c4 = arith.constant 4 : index
    %25 = memref.load %arg1[%24, %c4] : memref<2x8xi32, #tpu.memory_space<smem>>
    %c4_i32 = arith.constant 4 : i32
    %c0_i32_12 = arith.constant 0 : i32
    %26 = tpu.memref_slice %arg2[%25, %c0_i32_12] : memref<64x32xf32, #tpu.memory_space<any>> -> memref<1x32xf32, #tpu.memory_space<any>>
    %c4_i32_13 = arith.constant 4 : i32
    %c0_i32_14 = arith.constant 0 : i32
    %27 = tpu.memref_slice %arg24[%c4_i32_13, %c0_i32_14] : memref<8x32xf32, #tpu.memory_space<vmem>> -> memref<1x32xf32, #tpu.memory_space<vmem>>
    %28 = tpu.memref_slice %arg25[%c4_i32] : memref<8x!tpu.dma_semaphore, #tpu.memory_space<semaphore_mem>> -> memref<1x!tpu.dma_semaphore, #tpu.memory_space<semaphore_mem>>
    %29 = tpu.memref_squeeze %28 : memref<1x!tpu.dma_semaphore, #tpu.memory_space<semaphore_mem>> -> memref<!tpu.dma_semaphore, #tpu.memory_space<semaphore_mem>>
    tpu.enqueue_dma source(%26 : memref<1x32xf32, #tpu.memory_space<any>>) target(%27 : memref<1x32xf32, #tpu.memory_space<vmem>>) target_semaphore(%29 : memref<!tpu.dma_semaphore, #tpu.memory_space<semaphore_mem>>)
    %30 = arith.index_cast %arg0 : i32 to index
    %c5 = arith.constant 5 : index
    %31 = memref.load %arg1[%30, %c5] : memref<2x8xi32, #tpu.memory_space<smem>>
    %c5_i32 = arith.constant 5 : i32
    %c0_i32_15 = arith.constant 0 : i32
    %32 = tpu.memref_slice %arg2[%31, %c0_i32_15] : memref<64x32xf32, #tpu.memory_space<any>> -> memref<1x32xf32, #tpu.memory_space<any>>
    %c5_i32_16 = arith.constant 5 : i32
    %c0_i32_17 = arith.constant 0 : i32
    %33 = tpu.memref_slice %arg24[%c5_i32_16, %c0_i32_17] : memref<8x32xf32, #tpu.memory_space<vmem>> -> memref<1x32xf32, #tpu.memory_space<vmem>>
    %34 = tpu.memref_slice %arg25[%c5_i32] : memref<8x!tpu.dma_semaphore, #tpu.memory_space<semaphore_mem>> -> memref<1x!tpu.dma_semaphore, #tpu.memory_space<semaphore_mem>>
    %35 = tpu.memref_squeeze %34 : memref<1x!tpu.dma_semaphore, #tpu.memory_space<semaphore_mem>> -> memref<!tpu.dma_semaphore, #tpu.memory_space<semaphore_mem>>
    tpu.enqueue_dma source(%32 : memref<1x32xf32, #tpu.memory_space<any>>) target(%33 : memref<1x32xf32, #tpu.memory_space<vmem>>) target_semaphore(%35 : memref<!tpu.dma_semaphore, #tpu.memory_space<semaphore_mem>>)
    %36 = arith.index_cast %arg0 : i32 to index
    %c6 = arith.constant 6 : index
    %37 = memref.load %arg1[%36, %c6] : memref<2x8xi32, #tpu.memory_space<smem>>
    %c6_i32 = arith.constant 6 : i32
    %c0_i32_18 = arith.constant 0 : i32
    %38 = tpu.memref_slice %arg2[%37, %c0_i32_18] : memref<64x32xf32, #tpu.memory_space<any>> -> memref<1x32xf32, #tpu.memory_space<any>>
    %c6_i32_19 = arith.constant 6 : i32
    %c0_i32_20 = arith.constant 0 : i32
    %39 = tpu.memref_slice %arg24[%c6_i32_19, %c0_i32_20] : memref<8x32xf32, #tpu.memory_space<vmem>> -> memref<1x32xf32, #tpu.memory_space<vmem>>
    %40 = tpu.memref_slice %arg25[%c6_i32] : memref<8x!tpu.dma_semaphore, #tpu.memory_space<semaphore_mem>> -> memref<1x!tpu.dma_semaphore, #tpu.memory_space<semaphore_mem>>
    %41 = tpu.memref_squeeze %40 : memref<1x!tpu.dma_semaphore, #tpu.memory_space<semaphore_mem>> -> memref<!tpu.dma_semaphore, #tpu.memory_space<semaphore_mem>>
    tpu.enqueue_dma source(%38 : memref<1x32xf32, #tpu.memory_space<any>>) target(%39 : memref<1x32xf32, #tpu.memory_space<vmem>>) target_semaphore(%41 : memref<!tpu.dma_semaphore, #tpu.memory_space<semaphore_mem>>)
    %42 = arith.index_cast %arg0 : i32 to index
    %c7 = arith.constant 7 : index
    %43 = memref.load %arg1[%42, %c7] : memref<2x8xi32, #tpu.memory_space<smem>>
    %c7_i32 = arith.constant 7 : i32
    %c0_i32_21 = arith.constant 0 : i32
    %44 = tpu.memref_slice %arg2[%43, %c0_i32_21] : memref<64x32xf32, #tpu.memory_space<any>> -> memref<1x32xf32, #tpu.memory_space<any>>
    %c7_i32_22 = arith.constant 7 : i32
    %c0_i32_23 = arith.constant 0 : i32
    %45 = tpu.memref_slice %arg24[%c7_i32_22, %c0_i32_23] : memref<8x32xf32, #tpu.memory_space<vmem>> -> memref<1x32xf32, #tpu.memory_space<vmem>>
    %46 = tpu.memref_slice %arg25[%c7_i32] : memref<8x!tpu.dma_semaphore, #tpu.memory_space<semaphore_mem>> -> memref<1x!tpu.dma_semaphore, #tpu.memory_space<semaphore_mem>>
    %47 = tpu.memref_squeeze %46 : memref<1x!tpu.dma_semaphore, #tpu.memory_space<semaphore_mem>> -> memref<!tpu.dma_semaphore, #tpu.memory_space<semaphore_mem>>
    tpu.enqueue_dma source(%44 : memref<1x32xf32, #tpu.memory_space<any>>) target(%45 : memref<1x32xf32, #tpu.memory_space<vmem>>) target_semaphore(%47 : memref<!tpu.dma_semaphore, #tpu.memory_space<semaphore_mem>>)
    %48 = arith.index_cast %arg0 : i32 to index
    %c0_24 = arith.constant 0 : index
    %49 = memref.load %arg1[%48, %c0_24] : memref<2x8xi32, #tpu.memory_space<smem>>
    %c0_i32_25 = arith.constant 0 : i32
    %c0_i32_26 = arith.constant 0 : i32
    %50 = tpu.memref_slice %arg2[%49, %c0_i32_26] : memref<64x32xf32, #tpu.memory_space<any>> -> memref<1x32xf32, #tpu.memory_space<any>>
    %c0_i32_27 = arith.constant 0 : i32
    %c0_i32_28 = arith.constant 0 : i32
    %51 = tpu.memref_slice %arg24[%c0_i32_27, %c0_i32_28] : memref<8x32xf32, #tpu.memory_space<vmem>> -> memref<1x32xf32, #tpu.memory_space<vmem>>
    %52 = tpu.memref_slice %arg25[%c0_i32_25] : memref<8x!tpu.dma_semaphore, #tpu.memory_space<semaphore_mem>> -> memref<1x!tpu.dma_semaphore, #tpu.memory_space<semaphore_mem>>
    %53 = tpu.memref_squeeze %52 : memref<1x!tpu.dma_semaphore, #tpu.memory_space<semaphore_mem>> -> memref<!tpu.dma_semaphore, #tpu.memory_space<semaphore_mem>>
    tpu.wait_dma2 semaphore(%53 : memref<!tpu.dma_semaphore, #tpu.memory_space<semaphore_mem>>) src(%50 : memref<1x32xf32, #tpu.memory_space<any>>) dst(%51 : memref<1x32xf32, #tpu.memory_space<vmem>>)
    %54 = arith.index_cast %arg0 : i32 to index
    %c1_29 = arith.constant 1 : index
    %55 = memref.load %arg1[%54, %c1_29] : memref<2x8xi32, #tpu.memory_space<smem>>
    %c1_i32_30 = arith.constant 1 : i32
    %c0_i32_31 = arith.constant 0 : i32
    %56 = tpu.memref_slice %arg2[%55, %c0_i32_31] : memref<64x32xf32, #tpu.memory_space<any>> -> memref<1x32xf32, #tpu.memory_space<any>>
    %c1_i32_32 = arith.constant 1 : i32
    %c0_i32_33 = arith.constant 0 : i32
    %57 = tpu.memref_slice %arg24[%c1_i32_32, %c0_i32_33] : memref<8x32xf32, #tpu.memory_space<vmem>> -> memref<1x32xf32, #tpu.memory_space<vmem>>
    %58 = tpu.memref_slice %arg25[%c1_i32_30] : memref<8x!tpu.dma_semaphore, #tpu.memory_space<semaphore_mem>> -> memref<1x!tpu.dma_semaphore, #tpu.memory_space<semaphore_mem>>
    %59 = tpu.memref_squeeze %58 : memref<1x!tpu.dma_semaphore, #tpu.memory_space<semaphore_mem>> -> memref<!tpu.dma_semaphore, #tpu.memory_space<semaphore_mem>>
    tpu.wait_dma2 semaphore(%59 : memref<!tpu.dma_semaphore, #tpu.memory_space<semaphore_mem>>) src(%56 : memref<1x32xf32, #tpu.memory_space<any>>) dst(%57 : memref<1x32xf32, #tpu.memory_space<vmem>>)
    %60 = arith.index_cast %arg0 : i32 to index
    %c2_34 = arith.constant 2 : index
    %61 = memref.load %arg1[%60, %c2_34] : memref<2x8xi32, #tpu.memory_space<smem>>
    %c2_i32_35 = arith.constant 2 : i32
    %c0_i32_36 = arith.constant 0 : i32
    %62 = tpu.memref_slice %arg2[%61, %c0_i32_36] : memref<64x32xf32, #tpu.memory_space<any>> -> memref<1x32xf32, #tpu.memory_space<any>>
    %c2_i32_37 = arith.constant 2 : i32
    %c0_i32_38 = arith.constant 0 : i32
    %63 = tpu.memref_slice %arg24[%c2_i32_37, %c0_i32_38] : memref<8x32xf32, #tpu.memory_space<vmem>> -> memref<1x32xf32, #tpu.memory_space<vmem>>
    %64 = tpu.memref_slice %arg25[%c2_i32_35] : memref<8x!tpu.dma_semaphore, #tpu.memory_space<semaphore_mem>> -> memref<1x!tpu.dma_semaphore, #tpu.memory_space<semaphore_mem>>
    %65 = tpu.memref_squeeze %64 : memref<1x!tpu.dma_semaphore, #tpu.memory_space<semaphore_mem>> -> memref<!tpu.dma_semaphore, #tpu.memory_space<semaphore_mem>>
    tpu.wait_dma2 semaphore(%65 : memref<!tpu.dma_semaphore, #tpu.memory_space<semaphore_mem>>) src(%62 : memref<1x32xf32, #tpu.memory_space<any>>) dst(%63 : memref<1x32xf32, #tpu.memory_space<vmem>>)
    %66 = arith.index_cast %arg0 : i32 to index
    %c3_39 = arith.constant 3 : index
    %67 = memref.load %arg1[%66, %c3_39] : memref<2x8xi32, #tpu.memory_space<smem>>
    %c3_i32_40 = arith.constant 3 : i32
    %c0_i32_41 = arith.constant 0 : i32
    %68 = tpu.memref_slice %arg2[%67, %c0_i32_41] : memref<64x32xf32, #tpu.memory_space<any>> -> memref<1x32xf32, #tpu.memory_space<any>>
    %c3_i32_42 = arith.constant 3 : i32
    %c0_i32_43 = arith.constant 0 : i32
    %69 = tpu.memref_slice %arg24[%c3_i32_42, %c0_i32_43] : memref<8x32xf32, #tpu.memory_space<vmem>> -> memref<1x32xf32, #tpu.memory_space<vmem>>
    %70 = tpu.memref_slice %arg25[%c3_i32_40] : memref<8x!tpu.dma_semaphore, #tpu.memory_space<semaphore_mem>> -> memref<1x!tpu.dma_semaphore, #tpu.memory_space<semaphore_mem>>
    %71 = tpu.memref_squeeze %70 : memref<1x!tpu.dma_semaphore, #tpu.memory_space<semaphore_mem>> -> memref<!tpu.dma_semaphore, #tpu.memory_space<semaphore_mem>>
    tpu.wait_dma2 semaphore(%71 : memref<!tpu.dma_semaphore, #tpu.memory_space<semaphore_mem>>) src(%68 : memref<1x32xf32, #tpu.memory_space<any>>) dst(%69 : memref<1x32xf32, #tpu.memory_space<vmem>>)
    %72 = arith.index_cast %arg0 : i32 to index
    %c4_44 = arith.constant 4 : index
    %73 = memref.load %arg1[%72, %c4_44] : memref<2x8xi32, #tpu.memory_space<smem>>
    %c4_i32_45 = arith.constant 4 : i32
    %c0_i32_46 = arith.constant 0 : i32
    %74 = tpu.memref_slice %arg2[%73, %c0_i32_46] : memref<64x32xf32, #tpu.memory_space<any>> -> memref<1x32xf32, #tpu.memory_space<any>>
    %c4_i32_47 = arith.constant 4 : i32
    %c0_i32_48 = arith.constant 0 : i32
    %75 = tpu.memref_slice %arg24[%c4_i32_47, %c0_i32_48] : memref<8x32xf32, #tpu.memory_space<vmem>> -> memref<1x32xf32, #tpu.memory_space<vmem>>
    %76 = tpu.memref_slice %arg25[%c4_i32_45] : memref<8x!tpu.dma_semaphore, #tpu.memory_space<semaphore_mem>> -> memref<1x!tpu.dma_semaphore, #tpu.memory_space<semaphore_mem>>
    %77 = tpu.memref_squeeze %76 : memref<1x!tpu.dma_semaphore, #tpu.memory_space<semaphore_mem>> -> memref<!tpu.dma_semaphore, #tpu.memory_space<semaphore_mem>>
    tpu.wait_dma2 semaphore(%77 : memref<!tpu.dma_semaphore, #tpu.memory_space<semaphore_mem>>) src(%74 : memref<1x32xf32, #tpu.memory_space<any>>) dst(%75 : memref<1x32xf32, #tpu.memory_space<vmem>>)
    %78 = arith.index_cast %arg0 : i32 to index
    %c5_49 = arith.constant 5 : index
    %79 = memref.load %arg1[%78, %c5_49] : memref<2x8xi32, #tpu.memory_space<smem>>
    %c5_i32_50 = arith.constant 5 : i32
    %c0_i32_51 = arith.constant 0 : i32
    %80 = tpu.memref_slice %arg2[%79, %c0_i32_51] : memref<64x32xf32, #tpu.memory_space<any>> -> memref<1x32xf32, #tpu.memory_space<any>>
    %c5_i32_52 = arith.constant 5 : i32
    %c0_i32_53 = arith.constant 0 : i32
    %81 = tpu.memref_slice %arg24[%c5_i32_52, %c0_i32_53] : memref<8x32xf32, #tpu.memory_space<vmem>> -> memref<1x32xf32, #tpu.memory_space<vmem>>
    %82 = tpu.memref_slice %arg25[%c5_i32_50] : memref<8x!tpu.dma_semaphore, #tpu.memory_space<semaphore_mem>> -> memref<1x!tpu.dma_semaphore, #tpu.memory_space<semaphore_mem>>
    %83 = tpu.memref_squeeze %82 : memref<1x!tpu.dma_semaphore, #tpu.memory_space<semaphore_mem>> -> memref<!tpu.dma_semaphore, #tpu.memory_space<semaphore_mem>>
    tpu.wait_dma2 semaphore(%83 : memref<!tpu.dma_semaphore, #tpu.memory_space<semaphore_mem>>) src(%80 : memref<1x32xf32, #tpu.memory_space<any>>) dst(%81 : memref<1x32xf32, #tpu.memory_space<vmem>>)
    %84 = arith.index_cast %arg0 : i32 to index
    %c6_54 = arith.constant 6 : index
    %85 = memref.load %arg1[%84, %c6_54] : memref<2x8xi32, #tpu.memory_space<smem>>
    %c6_i32_55 = arith.constant 6 : i32
    %c0_i32_56 = arith.constant 0 : i32
    %86 = tpu.memref_slice %arg2[%85, %c0_i32_56] : memref<64x32xf32, #tpu.memory_space<any>> -> memref<1x32xf32, #tpu.memory_space<any>>
    %c6_i32_57 = arith.constant 6 : i32
    %c0_i32_58 = arith.constant 0 : i32
    %87 = tpu.memref_slice %arg24[%c6_i32_57, %c0_i32_58] : memref<8x32xf32, #tpu.memory_space<vmem>> -> memref<1x32xf32, #tpu.memory_space<vmem>>
    %88 = tpu.memref_slice %arg25[%c6_i32_55] : memref<8x!tpu.dma_semaphore, #tpu.memory_space<semaphore_mem>> -> memref<1x!tpu.dma_semaphore, #tpu.memory_space<semaphore_mem>>
    %89 = tpu.memref_squeeze %88 : memref<1x!tpu.dma_semaphore, #tpu.memory_space<semaphore_mem>> -> memref<!tpu.dma_semaphore, #tpu.memory_space<semaphore_mem>>
    tpu.wait_dma2 semaphore(%89 : memref<!tpu.dma_semaphore, #tpu.memory_space<semaphore_mem>>) src(%86 : memref<1x32xf32, #tpu.memory_space<any>>) dst(%87 : memref<1x32xf32, #tpu.memory_space<vmem>>)
    %90 = arith.index_cast %arg0 : i32 to index
    %c7_59 = arith.constant 7 : index
    %91 = memref.load %arg1[%90, %c7_59] : memref<2x8xi32, #tpu.memory_space<smem>>
    %c7_i32_60 = arith.constant 7 : i32
    %c0_i32_61 = arith.constant 0 : i32
    %92 = tpu.memref_slice %arg2[%91, %c0_i32_61] : memref<64x32xf32, #tpu.memory_space<any>> -> memref<1x32xf32, #tpu.memory_space<any>>
    %c7_i32_62 = arith.constant 7 : i32
    %c0_i32_63 = arith.constant 0 : i32
    %93 = tpu.memref_slice %arg24[%c7_i32_62, %c0_i32_63] : memref<8x32xf32, #tpu.memory_space<vmem>> -> memref<1x32xf32, #tpu.memory_space<vmem>>
    %94 = tpu.memref_slice %arg25[%c7_i32_60] : memref<8x!tpu.dma_semaphore, #tpu.memory_space<semaphore_mem>> -> memref<1x!tpu.dma_semaphore, #tpu.memory_space<semaphore_mem>>
    %95 = tpu.memref_squeeze %94 : memref<1x!tpu.dma_semaphore, #tpu.memory_space<semaphore_mem>> -> memref<!tpu.dma_semaphore, #tpu.memory_space<semaphore_mem>>
    tpu.wait_dma2 semaphore(%95 : memref<!tpu.dma_semaphore, #tpu.memory_space<semaphore_mem>>) src(%92 : memref<1x32xf32, #tpu.memory_space<any>>) dst(%93 : memref<1x32xf32, #tpu.memory_space<vmem>>)
    %c0_64 = arith.constant 0 : index
    %c0_65 = arith.constant 0 : index
    %96 = vector.load %arg24[%c0_64, %c0_65] : memref<8x32xf32, #tpu.memory_space<vmem>>, vector<8x32xf32>
    %c0_66 = arith.constant 0 : index
    %c0_67 = arith.constant 0 : index
    %97 = vector.load %arg3[%c0_66, %c0_67] : memref<8x32xf32, #tpu.memory_space<vmem>>, vector<8x32xf32>
    %98 = arith.addf %96, %97 : vector<8x32xf32>
    %c0_68 = arith.constant 0 : index
    %c0_69 = arith.constant 0 : index
    %c0_70 = arith.constant 0 : index
    %99 = vector.load %arg4[%c0_68, %c0_69, %c0_70] : memref<2x1x32xf32, #tpu.memory_space<vmem>>, vector<1x1x32xf32>
    %100 = vector.shape_cast %99 : vector<1x1x32xf32> to vector<1x32xf32>
    %c0_71 = arith.constant 0 : index
    %c0_72 = arith.constant 0 : index
    %c0_73 = arith.constant 0 : index
    %101 = vector.load %arg5[%c0_71, %c0_72, %c0_73] : memref<2x1x32xf32, #tpu.memory_space<vmem>>, vector<1x1x32xf32>
    %102 = vector.shape_cast %101 : vector<1x1x32xf32> to vector<1x32xf32>
    %cst = arith.constant dense<0.000000e+00> : vector<8xf32>
    %103 = vector.multi_reduction <add>, %98, %cst [1] : vector<8x32xf32> to vector<8xf32>
    %104 = vector.shape_cast %103 : vector<8xf32> to vector<8x1xf32>
    %cst_74 = arith.constant 3.200000e+01 : f32
    %105 = vector.broadcast %cst_74 : f32 to vector<8x1xf32>
    %106 = arith.divf %104, %105 : vector<8x1xf32>
    %107 = vector.broadcast %106 : vector<8x1xf32> to vector<8x32xf32>
    %108 = arith.subf %98, %107 : vector<8x32xf32>
    %109 = arith.mulf %108, %108 : vector<8x32xf32>
    %cst_75 = arith.constant dense<0.000000e+00> : vector<8xf32>
    %110 = vector.multi_reduction <add>, %109, %cst_75 [1] : vector<8x32xf32> to vector<8xf32>
    %111 = vector.shape_cast %110 : vector<8xf32> to vector<8x1xf32>
    %cst_76 = arith.constant 3.200000e+01 : f32
    %112 = vector.broadcast %cst_76 : f32 to vector<8x1xf32>
    %113 = arith.divf %111, %112 : vector<8x1xf32>
    %114 = vector.broadcast %106 : vector<8x1xf32> to vector<8x32xf32>
    %115 = arith.subf %98, %114 : vector<8x32xf32>
    %cst_77 = arith.constant 9.99999974E-6 : f32
    %116 = vector.broadcast %cst_77 : f32 to vector<8x1xf32>
    %117 = arith.addf %113, %116 : vector<8x1xf32>
    %118 = math.rsqrt %117 : vector<8x1xf32>
    %119 = vector.broadcast %118 : vector<8x1xf32> to vector<8x32xf32>
    %120 = arith.mulf %115, %119 : vector<8x32xf32>
    %121 = vector.broadcast %100 : vector<1x32xf32> to vector<8x32xf32>
    %122 = arith.mulf %120, %121 : vector<8x32xf32>
    %123 = vector.broadcast %102 : vector<1x32xf32> to vector<8x32xf32>
    %124 = arith.addf %122, %123 : vector<8x32xf32>
    %125 = arith.truncf %124 : vector<8x32xf32> to vector<8x32xbf16>
    %c0_78 = arith.constant 0 : index
    %c0_79 = arith.constant 0 : index
    %c0_80 = arith.constant 0 : index
    %c0_81 = arith.constant 0 : index
    %126 = vector.load %arg6[%c0_78, %c0_79, %c0_80, %c0_81] : memref<2x4x32x8xbf16, #tpu.memory_space<vmem>>, vector<1x1x32x8xbf16>
    %127 = vector.shape_cast %126 : vector<1x1x32x8xbf16> to vector<32x8xbf16>
    %cst_82 = arith.constant dense<0.000000e+00> : vector<8x8xf32>
    %128 = tpu.matmul %125, %127, %cst_82 {dimension_numbers = #tpu.dot_dimension_numbers<[1], [0], [0], [1], [0, 0, 1, 1], [], []>} : vector<8x32xbf16>, vector<32x8xbf16>, vector<8x8xf32> -> vector<8x8xf32>
    %c0_83 = arith.constant 0 : index
    %c0_84 = arith.constant 0 : index
    %c0_85 = arith.constant 0 : index
    %c0_86 = arith.constant 0 : index
    %129 = vector.load %arg9[%c0_83, %c0_84, %c0_85, %c0_86] : memref<2x4x1x8xf32, #tpu.memory_space<vmem>>, vector<1x1x1x8xf32>
    %130 = vector.shape_cast %129 : vector<1x1x1x8xf32> to vector<1x8xf32>
    %131 = vector.broadcast %130 : vector<1x8xf32> to vector<8x8xf32>
    %132 = arith.addf %128, %131 : vector<8x8xf32>
    %cst_87 = arith.constant 0.353553385 : f32
    %133 = vector.broadcast %cst_87 : f32 to vector<8x8xf32>
    %134 = arith.mulf %132, %133 : vector<8x8xf32>
    %c0_88 = arith.constant 0 : index
    %c0_89 = arith.constant 0 : index
    %c0_90 = arith.constant 0 : index
    %c0_91 = arith.constant 0 : index
    %135 = vector.load %arg7[%c0_88, %c0_89, %c0_90, %c0_91] : memref<2x4x32x8xbf16, #tpu.memory_space<vmem>>, vector<1x1x32x8xbf16>
    %136 = vector.shape_cast %135 : vector<1x1x32x8xbf16> to vector<32x8xbf16>
    %cst_92 = arith.constant dense<0.000000e+00> : vector<8x8xf32>
    %137 = tpu.matmul %125, %136, %cst_92 {dimension_numbers = #tpu.dot_dimension_numbers<[1], [0], [0], [1], [0, 0, 1, 1], [], []>} : vector<8x32xbf16>, vector<32x8xbf16>, vector<8x8xf32> -> vector<8x8xf32>
    %c0_93 = arith.constant 0 : index
    %c0_94 = arith.constant 0 : index
    %c0_95 = arith.constant 0 : index
    %c0_96 = arith.constant 0 : index
    %138 = vector.load %arg10[%c0_93, %c0_94, %c0_95, %c0_96] : memref<2x4x1x8xf32, #tpu.memory_space<vmem>>, vector<1x1x1x8xf32>
    %139 = vector.shape_cast %138 : vector<1x1x1x8xf32> to vector<1x8xf32>
    %140 = vector.broadcast %139 : vector<1x8xf32> to vector<8x8xf32>
    %141 = arith.addf %137, %140 : vector<8x8xf32>
    %c0_97 = arith.constant 0 : index
    %c0_98 = arith.constant 0 : index
    %c0_99 = arith.constant 0 : index
    %c0_100 = arith.constant 0 : index
    %142 = vector.load %arg8[%c0_97, %c0_98, %c0_99, %c0_100] : memref<2x4x32x8xbf16, #tpu.memory_space<vmem>>, vector<1x1x32x8xbf16>
    %143 = vector.shape_cast %142 : vector<1x1x32x8xbf16> to vector<32x8xbf16>
    %cst_101 = arith.constant dense<0.000000e+00> : vector<8x8xf32>
    %144 = tpu.matmul %125, %143, %cst_101 {dimension_numbers = #tpu.dot_dimension_numbers<[1], [0], [0], [1], [0, 0, 1, 1], [], []>} : vector<8x32xbf16>, vector<32x8xbf16>, vector<8x8xf32> -> vector<8x8xf32>
    %c0_102 = arith.constant 0 : index
    %c0_103 = arith.constant 0 : index
    %c0_104 = arith.constant 0 : index
    %c0_105 = arith.constant 0 : index
    %145 = vector.load %arg11[%c0_102, %c0_103, %c0_104, %c0_105] : memref<2x4x1x8xf32, #tpu.memory_space<vmem>>, vector<1x1x1x8xf32>
    %146 = vector.shape_cast %145 : vector<1x1x1x8xf32> to vector<1x8xf32>
    %147 = vector.broadcast %146 : vector<1x8xf32> to vector<8x8xf32>
    %148 = arith.addf %144, %147 : vector<8x8xf32>
    %149 = vector.shape_cast %134 : vector<8x8xf32> to vector<1x8x8xf32>
    %150 = arith.truncf %149 : vector<1x8x8xf32> to vector<1x8x8xbf16>
    %151 = vector.shape_cast %141 : vector<8x8xf32> to vector<1x8x8xf32>
    %152 = arith.truncf %151 : vector<1x8x8xf32> to vector<1x8x8xbf16>
    %153 = vector.shape_cast %148 : vector<8x8xf32> to vector<1x8x8xf32>
    %154 = arith.truncf %153 : vector<1x8x8xf32> to vector<1x8x8xbf16>
    "tpu.trace_start"() <{level = 10 : i32, message = "bqd,bkd->bqk"}> : () -> ()
    %cst_106 = arith.constant dense<0.000000e+00> : vector<1x8x8xf32>
    %155 = tpu.matmul %150, %152, %cst_106 {dimension_numbers = #tpu.dot_dimension_numbers<[2], [2], [1], [1], [0, 0, 0, 1, 1, 1], [0], [0]>} : vector<1x8x8xbf16>, vector<1x8x8xbf16>, vector<1x8x8xf32> -> vector<1x8x8xf32>
    "tpu.trace_stop"() : () -> ()
    %cst_107 = arith.constant dense<0xFF800000> : vector<1x8xf32>
    %156 = vector.multi_reduction <maximumf>, %155, %cst_107 [2] : vector<1x8x8xf32> to vector<1x8xf32>
    %157 = vector.shape_cast %156 : vector<1x8xf32> to vector<1x8x1xf32>
    %158 = vector.broadcast %157 : vector<1x8x1xf32> to vector<1x8x8xf32>
    %159 = arith.subf %155, %158 : vector<1x8x8xf32>
    %160 = math.exp %159 : vector<1x8x8xf32>
    %cst_108 = arith.constant dense<0.000000e+00> : vector<1x8xf32>
    %161 = vector.multi_reduction <add>, %160, %cst_108 [2] : vector<1x8x8xf32> to vector<1x8xf32>
    %162 = vector.shape_cast %161 : vector<1x8xf32> to vector<1x8x1xf32>
    %163 = tpu.reciprocal %162 {approx = true} : vector<1x8x1xf32> -> vector<1x8x1xf32>
    %164 = vector.broadcast %163 : vector<1x8x1xf32> to vector<1x8x8xf32>
    %165 = arith.mulf %160, %164 : vector<1x8x8xf32>
    %166 = arith.truncf %165 : vector<1x8x8xf32> to vector<1x8x8xbf16>
    "tpu.trace_start"() <{level = 10 : i32, message = "bqk,bkd->bqd"}> : () -> ()
    %cst_109 = arith.constant dense<0.000000e+00> : vector<1x8x8xf32>
    %167 = tpu.matmul %166, %154, %cst_109 {dimension_numbers = #tpu.dot_dimension_numbers<[2], [1], [1], [2], [0, 0, 0, 1, 1, 2], [0], [0]>} : vector<1x8x8xbf16>, vector<1x8x8xbf16>, vector<1x8x8xf32> -> vector<1x8x8xf32>
    "tpu.trace_stop"() : () -> ()
    %168 = vector.shape_cast %167 : vector<1x8x8xf32> to vector<8x8xf32>
    %c0_110 = arith.constant 0 : index
    %c1_111 = arith.constant 1 : index
    %c0_112 = arith.constant 0 : index
    %c0_113 = arith.constant 0 : index
    %169 = vector.load %arg6[%c0_110, %c1_111, %c0_112, %c0_113] : memref<2x4x32x8xbf16, #tpu.memory_space<vmem>>, vector<1x1x32x8xbf16>
    %170 = vector.shape_cast %169 : vector<1x1x32x8xbf16> to vector<32x8xbf16>
    %cst_114 = arith.constant dense<0.000000e+00> : vector<8x8xf32>
    %171 = tpu.matmul %125, %170, %cst_114 {dimension_numbers = #tpu.dot_dimension_numbers<[1], [0], [0], [1], [0, 0, 1, 1], [], []>} : vector<8x32xbf16>, vector<32x8xbf16>, vector<8x8xf32> -> vector<8x8xf32>
    %c0_115 = arith.constant 0 : index
    %c1_116 = arith.constant 1 : index
    %c0_117 = arith.constant 0 : index
    %c0_118 = arith.constant 0 : index
    %172 = vector.load %arg9[%c0_115, %c1_116, %c0_117, %c0_118] : memref<2x4x1x8xf32, #tpu.memory_space<vmem>>, vector<1x1x1x8xf32>
    %173 = vector.shape_cast %172 : vector<1x1x1x8xf32> to vector<1x8xf32>
    %174 = vector.broadcast %173 : vector<1x8xf32> to vector<8x8xf32>
    %175 = arith.addf %171, %174 : vector<8x8xf32>
    %cst_119 = arith.constant 0.353553385 : f32
    %176 = vector.broadcast %cst_119 : f32 to vector<8x8xf32>
    %177 = arith.mulf %175, %176 : vector<8x8xf32>
    %c0_120 = arith.constant 0 : index
    %c1_121 = arith.constant 1 : index
    %c0_122 = arith.constant 0 : index
    %c0_123 = arith.constant 0 : index
    %178 = vector.load %arg7[%c0_120, %c1_121, %c0_122, %c0_123] : memref<2x4x32x8xbf16, #tpu.memory_space<vmem>>, vector<1x1x32x8xbf16>
    %179 = vector.shape_cast %178 : vector<1x1x32x8xbf16> to vector<32x8xbf16>
    %cst_124 = arith.constant dense<0.000000e+00> : vector<8x8xf32>
    %180 = tpu.matmul %125, %179, %cst_124 {dimension_numbers = #tpu.dot_dimension_numbers<[1], [0], [0], [1], [0, 0, 1, 1], [], []>} : vector<8x32xbf16>, vector<32x8xbf16>, vector<8x8xf32> -> vector<8x8xf32>
    %c0_125 = arith.constant 0 : index
    %c1_126 = arith.constant 1 : index
    %c0_127 = arith.constant 0 : index
    %c0_128 = arith.constant 0 : index
    %181 = vector.load %arg10[%c0_125, %c1_126, %c0_127, %c0_128] : memref<2x4x1x8xf32, #tpu.memory_space<vmem>>, vector<1x1x1x8xf32>
    %182 = vector.shape_cast %181 : vector<1x1x1x8xf32> to vector<1x8xf32>
    %183 = vector.broadcast %182 : vector<1x8xf32> to vector<8x8xf32>
    %184 = arith.addf %180, %183 : vector<8x8xf32>
    %c0_129 = arith.constant 0 : index
    %c1_130 = arith.constant 1 : index
    %c0_131 = arith.constant 0 : index
    %c0_132 = arith.constant 0 : index
    %185 = vector.load %arg8[%c0_129, %c1_130, %c0_131, %c0_132] : memref<2x4x32x8xbf16, #tpu.memory_space<vmem>>, vector<1x1x32x8xbf16>
    %186 = vector.shape_cast %185 : vector<1x1x32x8xbf16> to vector<32x8xbf16>
    %cst_133 = arith.constant dense<0.000000e+00> : vector<8x8xf32>
    %187 = tpu.matmul %125, %186, %cst_133 {dimension_numbers = #tpu.dot_dimension_numbers<[1], [0], [0], [1], [0, 0, 1, 1], [], []>} : vector<8x32xbf16>, vector<32x8xbf16>, vector<8x8xf32> -> vector<8x8xf32>
    %c0_134 = arith.constant 0 : index
    %c1_135 = arith.constant 1 : index
    %c0_136 = arith.constant 0 : index
    %c0_137 = arith.constant 0 : index
    %188 = vector.load %arg11[%c0_134, %c1_135, %c0_136, %c0_137] : memref<2x4x1x8xf32, #tpu.memory_space<vmem>>, vector<1x1x1x8xf32>
    %189 = vector.shape_cast %188 : vector<1x1x1x8xf32> to vector<1x8xf32>
    %190 = vector.broadcast %189 : vector<1x8xf32> to vector<8x8xf32>
    %191 = arith.addf %187, %190 : vector<8x8xf32>
    %192 = vector.shape_cast %177 : vector<8x8xf32> to vector<1x8x8xf32>
    %193 = arith.truncf %192 : vector<1x8x8xf32> to vector<1x8x8xbf16>
    %194 = vector.shape_cast %184 : vector<8x8xf32> to vector<1x8x8xf32>
    %195 = arith.truncf %194 : vector<1x8x8xf32> to vector<1x8x8xbf16>
    %196 = vector.shape_cast %191 : vector<8x8xf32> to vector<1x8x8xf32>
    %197 = arith.truncf %196 : vector<1x8x8xf32> to vector<1x8x8xbf16>
    "tpu.trace_start"() <{level = 10 : i32, message = "bqd,bkd->bqk"}> : () -> ()
    %cst_138 = arith.constant dense<0.000000e+00> : vector<1x8x8xf32>
    %198 = tpu.matmul %193, %195, %cst_138 {dimension_numbers = #tpu.dot_dimension_numbers<[2], [2], [1], [1], [0, 0, 0, 1, 1, 1], [0], [0]>} : vector<1x8x8xbf16>, vector<1x8x8xbf16>, vector<1x8x8xf32> -> vector<1x8x8xf32>
    "tpu.trace_stop"() : () -> ()
    %cst_139 = arith.constant dense<0xFF800000> : vector<1x8xf32>
    %199 = vector.multi_reduction <maximumf>, %198, %cst_139 [2] : vector<1x8x8xf32> to vector<1x8xf32>
    %200 = vector.shape_cast %199 : vector<1x8xf32> to vector<1x8x1xf32>
    %201 = vector.broadcast %200 : vector<1x8x1xf32> to vector<1x8x8xf32>
    %202 = arith.subf %198, %201 : vector<1x8x8xf32>
    %203 = math.exp %202 : vector<1x8x8xf32>
    %cst_140 = arith.constant dense<0.000000e+00> : vector<1x8xf32>
    %204 = vector.multi_reduction <add>, %203, %cst_140 [2] : vector<1x8x8xf32> to vector<1x8xf32>
    %205 = vector.shape_cast %204 : vector<1x8xf32> to vector<1x8x1xf32>
    %206 = tpu.reciprocal %205 {approx = true} : vector<1x8x1xf32> -> vector<1x8x1xf32>
    %207 = vector.broadcast %206 : vector<1x8x1xf32> to vector<1x8x8xf32>
    %208 = arith.mulf %203, %207 : vector<1x8x8xf32>
    %209 = arith.truncf %208 : vector<1x8x8xf32> to vector<1x8x8xbf16>
    "tpu.trace_start"() <{level = 10 : i32, message = "bqk,bkd->bqd"}> : () -> ()
    %cst_141 = arith.constant dense<0.000000e+00> : vector<1x8x8xf32>
    %210 = tpu.matmul %209, %197, %cst_141 {dimension_numbers = #tpu.dot_dimension_numbers<[2], [1], [1], [2], [0, 0, 0, 1, 1, 2], [0], [0]>} : vector<1x8x8xbf16>, vector<1x8x8xbf16>, vector<1x8x8xf32> -> vector<1x8x8xf32>
    "tpu.trace_stop"() : () -> ()
    %211 = vector.shape_cast %210 : vector<1x8x8xf32> to vector<8x8xf32>
    %c0_142 = arith.constant 0 : index
    %c2_143 = arith.constant 2 : index
    %c0_144 = arith.constant 0 : index
    %c0_145 = arith.constant 0 : index
    %212 = vector.load %arg6[%c0_142, %c2_143, %c0_144, %c0_145] : memref<2x4x32x8xbf16, #tpu.memory_space<vmem>>, vector<1x1x32x8xbf16>
    %213 = vector.shape_cast %212 : vector<1x1x32x8xbf16> to vector<32x8xbf16>
    %cst_146 = arith.constant dense<0.000000e+00> : vector<8x8xf32>
    %214 = tpu.matmul %125, %213, %cst_146 {dimension_numbers = #tpu.dot_dimension_numbers<[1], [0], [0], [1], [0, 0, 1, 1], [], []>} : vector<8x32xbf16>, vector<32x8xbf16>, vector<8x8xf32> -> vector<8x8xf32>
    %c0_147 = arith.constant 0 : index
    %c2_148 = arith.constant 2 : index
    %c0_149 = arith.constant 0 : index
    %c0_150 = arith.constant 0 : index
    %215 = vector.load %arg9[%c0_147, %c2_148, %c0_149, %c0_150] : memref<2x4x1x8xf32, #tpu.memory_space<vmem>>, vector<1x1x1x8xf32>
    %216 = vector.shape_cast %215 : vector<1x1x1x8xf32> to vector<1x8xf32>
    %217 = vector.broadcast %216 : vector<1x8xf32> to vector<8x8xf32>
    %218 = arith.addf %214, %217 : vector<8x8xf32>
    %cst_151 = arith.constant 0.353553385 : f32
    %219 = vector.broadcast %cst_151 : f32 to vector<8x8xf32>
    %220 = arith.mulf %218, %219 : vector<8x8xf32>
    %c0_152 = arith.constant 0 : index
    %c2_153 = arith.constant 2 : index
    %c0_154 = arith.constant 0 : index
    %c0_155 = arith.constant 0 : index
    %221 = vector.load %arg7[%c0_152, %c2_153, %c0_154, %c0_155] : memref<2x4x32x8xbf16, #tpu.memory_space<vmem>>, vector<1x1x32x8xbf16>
    %222 = vector.shape_cast %221 : vector<1x1x32x8xbf16> to vector<32x8xbf16>
    %cst_156 = arith.constant dense<0.000000e+00> : vector<8x8xf32>
    %223 = tpu.matmul %125, %222, %cst_156 {dimension_numbers = #tpu.dot_dimension_numbers<[1], [0], [0], [1], [0, 0, 1, 1], [], []>} : vector<8x32xbf16>, vector<32x8xbf16>, vector<8x8xf32> -> vector<8x8xf32>
    %c0_157 = arith.constant 0 : index
    %c2_158 = arith.constant 2 : index
    %c0_159 = arith.constant 0 : index
    %c0_160 = arith.constant 0 : index
    %224 = vector.load %arg10[%c0_157, %c2_158, %c0_159, %c0_160] : memref<2x4x1x8xf32, #tpu.memory_space<vmem>>, vector<1x1x1x8xf32>
    %225 = vector.shape_cast %224 : vector<1x1x1x8xf32> to vector<1x8xf32>
    %226 = vector.broadcast %225 : vector<1x8xf32> to vector<8x8xf32>
    %227 = arith.addf %223, %226 : vector<8x8xf32>
    %c0_161 = arith.constant 0 : index
    %c2_162 = arith.constant 2 : index
    %c0_163 = arith.constant 0 : index
    %c0_164 = arith.constant 0 : index
    %228 = vector.load %arg8[%c0_161, %c2_162, %c0_163, %c0_164] : memref<2x4x32x8xbf16, #tpu.memory_space<vmem>>, vector<1x1x32x8xbf16>
    %229 = vector.shape_cast %228 : vector<1x1x32x8xbf16> to vector<32x8xbf16>
    %cst_165 = arith.constant dense<0.000000e+00> : vector<8x8xf32>
    %230 = tpu.matmul %125, %229, %cst_165 {dimension_numbers = #tpu.dot_dimension_numbers<[1], [0], [0], [1], [0, 0, 1, 1], [], []>} : vector<8x32xbf16>, vector<32x8xbf16>, vector<8x8xf32> -> vector<8x8xf32>
    %c0_166 = arith.constant 0 : index
    %c2_167 = arith.constant 2 : index
    %c0_168 = arith.constant 0 : index
    %c0_169 = arith.constant 0 : index
    %231 = vector.load %arg11[%c0_166, %c2_167, %c0_168, %c0_169] : memref<2x4x1x8xf32, #tpu.memory_space<vmem>>, vector<1x1x1x8xf32>
    %232 = vector.shape_cast %231 : vector<1x1x1x8xf32> to vector<1x8xf32>
    %233 = vector.broadcast %232 : vector<1x8xf32> to vector<8x8xf32>
    %234 = arith.addf %230, %233 : vector<8x8xf32>
    %235 = vector.shape_cast %220 : vector<8x8xf32> to vector<1x8x8xf32>
    %236 = arith.truncf %235 : vector<1x8x8xf32> to vector<1x8x8xbf16>
    %237 = vector.shape_cast %227 : vector<8x8xf32> to vector<1x8x8xf32>
    %238 = arith.truncf %237 : vector<1x8x8xf32> to vector<1x8x8xbf16>
    %239 = vector.shape_cast %234 : vector<8x8xf32> to vector<1x8x8xf32>
    %240 = arith.truncf %239 : vector<1x8x8xf32> to vector<1x8x8xbf16>
    "tpu.trace_start"() <{level = 10 : i32, message = "bqd,bkd->bqk"}> : () -> ()
    %cst_170 = arith.constant dense<0.000000e+00> : vector<1x8x8xf32>
    %241 = tpu.matmul %236, %238, %cst_170 {dimension_numbers = #tpu.dot_dimension_numbers<[2], [2], [1], [1], [0, 0, 0, 1, 1, 1], [0], [0]>} : vector<1x8x8xbf16>, vector<1x8x8xbf16>, vector<1x8x8xf32> -> vector<1x8x8xf32>
    "tpu.trace_stop"() : () -> ()
    %cst_171 = arith.constant dense<0xFF800000> : vector<1x8xf32>
    %242 = vector.multi_reduction <maximumf>, %241, %cst_171 [2] : vector<1x8x8xf32> to vector<1x8xf32>
    %243 = vector.shape_cast %242 : vector<1x8xf32> to vector<1x8x1xf32>
    %244 = vector.broadcast %243 : vector<1x8x1xf32> to vector<1x8x8xf32>
    %245 = arith.subf %241, %244 : vector<1x8x8xf32>
    %246 = math.exp %245 : vector<1x8x8xf32>
    %cst_172 = arith.constant dense<0.000000e+00> : vector<1x8xf32>
    %247 = vector.multi_reduction <add>, %246, %cst_172 [2] : vector<1x8x8xf32> to vector<1x8xf32>
    %248 = vector.shape_cast %247 : vector<1x8xf32> to vector<1x8x1xf32>
    %249 = tpu.reciprocal %248 {approx = true} : vector<1x8x1xf32> -> vector<1x8x1xf32>
    %250 = vector.broadcast %249 : vector<1x8x1xf32> to vector<1x8x8xf32>
    %251 = arith.mulf %246, %250 : vector<1x8x8xf32>
    %252 = arith.truncf %251 : vector<1x8x8xf32> to vector<1x8x8xbf16>
    "tpu.trace_start"() <{level = 10 : i32, message = "bqk,bkd->bqd"}> : () -> ()
    %cst_173 = arith.constant dense<0.000000e+00> : vector<1x8x8xf32>
    %253 = tpu.matmul %252, %240, %cst_173 {dimension_numbers = #tpu.dot_dimension_numbers<[2], [1], [1], [2], [0, 0, 0, 1, 1, 2], [0], [0]>} : vector<1x8x8xbf16>, vector<1x8x8xbf16>, vector<1x8x8xf32> -> vector<1x8x8xf32>
    "tpu.trace_stop"() : () -> ()
    %254 = vector.shape_cast %253 : vector<1x8x8xf32> to vector<8x8xf32>
    %c0_174 = arith.constant 0 : index
    %c3_175 = arith.constant 3 : index
    %c0_176 = arith.constant 0 : index
    %c0_177 = arith.constant 0 : index
    %255 = vector.load %arg6[%c0_174, %c3_175, %c0_176, %c0_177] : memref<2x4x32x8xbf16, #tpu.memory_space<vmem>>, vector<1x1x32x8xbf16>
    %256 = vector.shape_cast %255 : vector<1x1x32x8xbf16> to vector<32x8xbf16>
    %cst_178 = arith.constant dense<0.000000e+00> : vector<8x8xf32>
    %257 = tpu.matmul %125, %256, %cst_178 {dimension_numbers = #tpu.dot_dimension_numbers<[1], [0], [0], [1], [0, 0, 1, 1], [], []>} : vector<8x32xbf16>, vector<32x8xbf16>, vector<8x8xf32> -> vector<8x8xf32>
    %c0_179 = arith.constant 0 : index
    %c3_180 = arith.constant 3 : index
    %c0_181 = arith.constant 0 : index
    %c0_182 = arith.constant 0 : index
    %258 = vector.load %arg9[%c0_179, %c3_180, %c0_181, %c0_182] : memref<2x4x1x8xf32, #tpu.memory_space<vmem>>, vector<1x1x1x8xf32>
    %259 = vector.shape_cast %258 : vector<1x1x1x8xf32> to vector<1x8xf32>
    %260 = vector.broadcast %259 : vector<1x8xf32> to vector<8x8xf32>
    %261 = arith.addf %257, %260 : vector<8x8xf32>
    %cst_183 = arith.constant 0.353553385 : f32
    %262 = vector.broadcast %cst_183 : f32 to vector<8x8xf32>
    %263 = arith.mulf %261, %262 : vector<8x8xf32>
    %c0_184 = arith.constant 0 : index
    %c3_185 = arith.constant 3 : index
    %c0_186 = arith.constant 0 : index
    %c0_187 = arith.constant 0 : index
    %264 = vector.load %arg7[%c0_184, %c3_185, %c0_186, %c0_187] : memref<2x4x32x8xbf16, #tpu.memory_space<vmem>>, vector<1x1x32x8xbf16>
    %265 = vector.shape_cast %264 : vector<1x1x32x8xbf16> to vector<32x8xbf16>
    %cst_188 = arith.constant dense<0.000000e+00> : vector<8x8xf32>
    %266 = tpu.matmul %125, %265, %cst_188 {dimension_numbers = #tpu.dot_dimension_numbers<[1], [0], [0], [1], [0, 0, 1, 1], [], []>} : vector<8x32xbf16>, vector<32x8xbf16>, vector<8x8xf32> -> vector<8x8xf32>
    %c0_189 = arith.constant 0 : index
    %c3_190 = arith.constant 3 : index
    %c0_191 = arith.constant 0 : index
    %c0_192 = arith.constant 0 : index
    %267 = vector.load %arg10[%c0_189, %c3_190, %c0_191, %c0_192] : memref<2x4x1x8xf32, #tpu.memory_space<vmem>>, vector<1x1x1x8xf32>
    %268 = vector.shape_cast %267 : vector<1x1x1x8xf32> to vector<1x8xf32>
    %269 = vector.broadcast %268 : vector<1x8xf32> to vector<8x8xf32>
    %270 = arith.addf %266, %269 : vector<8x8xf32>
    %c0_193 = arith.constant 0 : index
    %c3_194 = arith.constant 3 : index
    %c0_195 = arith.constant 0 : index
    %c0_196 = arith.constant 0 : index
    %271 = vector.load %arg8[%c0_193, %c3_194, %c0_195, %c0_196] : memref<2x4x32x8xbf16, #tpu.memory_space<vmem>>, vector<1x1x32x8xbf16>
    %272 = vector.shape_cast %271 : vector<1x1x32x8xbf16> to vector<32x8xbf16>
    %cst_197 = arith.constant dense<0.000000e+00> : vector<8x8xf32>
    %273 = tpu.matmul %125, %272, %cst_197 {dimension_numbers = #tpu.dot_dimension_numbers<[1], [0], [0], [1], [0, 0, 1, 1], [], []>} : vector<8x32xbf16>, vector<32x8xbf16>, vector<8x8xf32> -> vector<8x8xf32>
    %c0_198 = arith.constant 0 : index
    %c3_199 = arith.constant 3 : index
    %c0_200 = arith.constant 0 : index
    %c0_201 = arith.constant 0 : index
    %274 = vector.load %arg11[%c0_198, %c3_199, %c0_200, %c0_201] : memref<2x4x1x8xf32, #tpu.memory_space<vmem>>, vector<1x1x1x8xf32>
    %275 = vector.shape_cast %274 : vector<1x1x1x8xf32> to vector<1x8xf32>
    %276 = vector.broadcast %275 : vector<1x8xf32> to vector<8x8xf32>
    %277 = arith.addf %273, %276 : vector<8x8xf32>
    %278 = vector.shape_cast %263 : vector<8x8xf32> to vector<1x8x8xf32>
    %279 = arith.truncf %278 : vector<1x8x8xf32> to vector<1x8x8xbf16>
    %280 = vector.shape_cast %270 : vector<8x8xf32> to vector<1x8x8xf32>
    %281 = arith.truncf %280 : vector<1x8x8xf32> to vector<1x8x8xbf16>
    %282 = vector.shape_cast %277 : vector<8x8xf32> to vector<1x8x8xf32>
    %283 = arith.truncf %282 : vector<1x8x8xf32> to vector<1x8x8xbf16>
    "tpu.trace_start"() <{level = 10 : i32, message = "bqd,bkd->bqk"}> : () -> ()
    %cst_202 = arith.constant dense<0.000000e+00> : vector<1x8x8xf32>
    %284 = tpu.matmul %279, %281, %cst_202 {dimension_numbers = #tpu.dot_dimension_numbers<[2], [2], [1], [1], [0, 0, 0, 1, 1, 1], [0], [0]>} : vector<1x8x8xbf16>, vector<1x8x8xbf16>, vector<1x8x8xf32> -> vector<1x8x8xf32>
    "tpu.trace_stop"() : () -> ()
    %cst_203 = arith.constant dense<0xFF800000> : vector<1x8xf32>
    %285 = vector.multi_reduction <maximumf>, %284, %cst_203 [2] : vector<1x8x8xf32> to vector<1x8xf32>
    %286 = vector.shape_cast %285 : vector<1x8xf32> to vector<1x8x1xf32>
    %287 = vector.broadcast %286 : vector<1x8x1xf32> to vector<1x8x8xf32>
    %288 = arith.subf %284, %287 : vector<1x8x8xf32>
    %289 = math.exp %288 : vector<1x8x8xf32>
    %cst_204 = arith.constant dense<0.000000e+00> : vector<1x8xf32>
    %290 = vector.multi_reduction <add>, %289, %cst_204 [2] : vector<1x8x8xf32> to vector<1x8xf32>
    %291 = vector.shape_cast %290 : vector<1x8xf32> to vector<1x8x1xf32>
    %292 = tpu.reciprocal %291 {approx = true} : vector<1x8x1xf32> -> vector<1x8x1xf32>
    %293 = vector.broadcast %292 : vector<1x8x1xf32> to vector<1x8x8xf32>
    %294 = arith.mulf %289, %293 : vector<1x8x8xf32>
    %295 = arith.truncf %294 : vector<1x8x8xf32> to vector<1x8x8xbf16>
    "tpu.trace_start"() <{level = 10 : i32, message = "bqk,bkd->bqd"}> : () -> ()
    %cst_205 = arith.constant dense<0.000000e+00> : vector<1x8x8xf32>
    %296 = tpu.matmul %295, %283, %cst_205 {dimension_numbers = #tpu.dot_dimension_numbers<[2], [1], [1], [2], [0, 0, 0, 1, 1, 2], [0], [0]>} : vector<1x8x8xbf16>, vector<1x8x8xbf16>, vector<1x8x8xf32> -> vector<1x8x8xf32>
    "tpu.trace_stop"() : () -> ()
    %297 = vector.shape_cast %296 : vector<1x8x8xf32> to vector<8x8xf32>
    %298 = tpu.concatenate %168, %211, %254, %297 in 1 : vector<8x8xf32>, vector<8x8xf32>, vector<8x8xf32>, vector<8x8xf32> -> vector<8x32xf32>
    %299 = arith.truncf %298 : vector<8x32xf32> to vector<8x32xbf16>
    %c0_206 = arith.constant 0 : index
    %c0_207 = arith.constant 0 : index
    %c0_208 = arith.constant 0 : index
    %300 = vector.load %arg12[%c0_206, %c0_207, %c0_208] : memref<2x32x32xbf16, #tpu.memory_space<vmem>>, vector<1x32x32xbf16>
    %301 = vector.shape_cast %300 : vector<1x32x32xbf16> to vector<32x32xbf16>
    %cst_209 = arith.constant dense<0.000000e+00> : vector<8x32xf32>
    %302 = tpu.matmul %299, %301, %cst_209 {dimension_numbers = #tpu.dot_dimension_numbers<[1], [0], [0], [1], [0, 0, 1, 1], [], []>} : vector<8x32xbf16>, vector<32x32xbf16>, vector<8x32xf32> -> vector<8x32xf32>
    %c0_210 = arith.constant 0 : index
    %c0_211 = arith.constant 0 : index
    %c0_212 = arith.constant 0 : index
    %303 = vector.load %arg13[%c0_210, %c0_211, %c0_212] : memref<2x1x32xf32, #tpu.memory_space<vmem>>, vector<1x1x32xf32>
    %304 = vector.shape_cast %303 : vector<1x1x32xf32> to vector<1x32xf32>
    %305 = vector.broadcast %304 : vector<1x32xf32> to vector<8x32xf32>
    %306 = arith.addf %302, %305 : vector<8x32xf32>
    %307 = arith.addf %98, %306 : vector<8x32xf32>
    %c0_213 = arith.constant 0 : index
    %c0_214 = arith.constant 0 : index
    %c0_215 = arith.constant 0 : index
    %308 = vector.load %arg14[%c0_213, %c0_214, %c0_215] : memref<2x1x32xf32, #tpu.memory_space<vmem>>, vector<1x1x32xf32>
    %309 = vector.shape_cast %308 : vector<1x1x32xf32> to vector<1x32xf32>
    %c0_216 = arith.constant 0 : index
    %c0_217 = arith.constant 0 : index
    %c0_218 = arith.constant 0 : index
    %310 = vector.load %arg15[%c0_216, %c0_217, %c0_218] : memref<2x1x32xf32, #tpu.memory_space<vmem>>, vector<1x1x32xf32>
    %311 = vector.shape_cast %310 : vector<1x1x32xf32> to vector<1x32xf32>
    %cst_219 = arith.constant dense<0.000000e+00> : vector<8xf32>
    %312 = vector.multi_reduction <add>, %307, %cst_219 [1] : vector<8x32xf32> to vector<8xf32>
    %313 = vector.shape_cast %312 : vector<8xf32> to vector<8x1xf32>
    %cst_220 = arith.constant 3.200000e+01 : f32
    %314 = vector.broadcast %cst_220 : f32 to vector<8x1xf32>
    %315 = arith.divf %313, %314 : vector<8x1xf32>
    %316 = vector.broadcast %315 : vector<8x1xf32> to vector<8x32xf32>
    %317 = arith.subf %307, %316 : vector<8x32xf32>
    %318 = arith.mulf %317, %317 : vector<8x32xf32>
    %cst_221 = arith.constant dense<0.000000e+00> : vector<8xf32>
    %319 = vector.multi_reduction <add>, %318, %cst_221 [1] : vector<8x32xf32> to vector<8xf32>
    %320 = vector.shape_cast %319 : vector<8xf32> to vector<8x1xf32>
    %cst_222 = arith.constant 3.200000e+01 : f32
    %321 = vector.broadcast %cst_222 : f32 to vector<8x1xf32>
    %322 = arith.divf %320, %321 : vector<8x1xf32>
    %323 = vector.broadcast %315 : vector<8x1xf32> to vector<8x32xf32>
    %324 = arith.subf %307, %323 : vector<8x32xf32>
    %cst_223 = arith.constant 9.99999974E-6 : f32
    %325 = vector.broadcast %cst_223 : f32 to vector<8x1xf32>
    %326 = arith.addf %322, %325 : vector<8x1xf32>
    %327 = math.rsqrt %326 : vector<8x1xf32>
    %328 = vector.broadcast %327 : vector<8x1xf32> to vector<8x32xf32>
    %329 = arith.mulf %324, %328 : vector<8x32xf32>
    %330 = vector.broadcast %309 : vector<1x32xf32> to vector<8x32xf32>
    %331 = arith.mulf %329, %330 : vector<8x32xf32>
    %332 = vector.broadcast %311 : vector<1x32xf32> to vector<8x32xf32>
    %333 = arith.addf %331, %332 : vector<8x32xf32>
    %334 = arith.truncf %333 : vector<8x32xf32> to vector<8x32xbf16>
    %c0_224 = arith.constant 0 : index
    %c0_225 = arith.constant 0 : index
    %c0_226 = arith.constant 0 : index
    %335 = vector.load %arg16[%c0_224, %c0_225, %c0_226] : memref<2x32x64xbf16, #tpu.memory_space<vmem>>, vector<1x32x64xbf16>
    %336 = vector.shape_cast %335 : vector<1x32x64xbf16> to vector<32x64xbf16>
    %cst_227 = arith.constant dense<0.000000e+00> : vector<8x64xf32>
    %337 = tpu.matmul %334, %336, %cst_227 {dimension_numbers = #tpu.dot_dimension_numbers<[1], [0], [0], [1], [0, 0, 1, 1], [], []>} : vector<8x32xbf16>, vector<32x64xbf16>, vector<8x64xf32> -> vector<8x64xf32>
    %c0_228 = arith.constant 0 : index
    %c0_229 = arith.constant 0 : index
    %c0_230 = arith.constant 0 : index
    %338 = vector.load %arg17[%c0_228, %c0_229, %c0_230] : memref<2x1x64xf32, #tpu.memory_space<vmem>>, vector<1x1x64xf32>
    %339 = vector.shape_cast %338 : vector<1x1x64xf32> to vector<1x64xf32>
    %340 = vector.broadcast %339 : vector<1x64xf32> to vector<8x64xf32>
    %341 = arith.addf %337, %340 : vector<8x64xf32>
    %cst_231 = arith.constant 5.000000e-01 : f32
    %342 = vector.broadcast %cst_231 : f32 to vector<8x64xf32>
    %343 = arith.mulf %342, %341 : vector<8x64xf32>
    %cst_232 = arith.constant 0.707106769 : f32
    %344 = vector.broadcast %cst_232 : f32 to vector<8x64xf32>
    %345 = arith.mulf %341, %344 : vector<8x64xf32>
    %346 = math.erf %345 : vector<8x64xf32>
    %cst_233 = arith.constant 1.000000e+00 : f32
    %347 = vector.broadcast %cst_233 : f32 to vector<8x64xf32>
    %348 = arith.addf %347, %346 : vector<8x64xf32>
    %349 = arith.mulf %343, %348 : vector<8x64xf32>
    %350 = arith.truncf %349 : vector<8x64xf32> to vector<8x64xbf16>
    %c0_234 = arith.constant 0 : index
    %c0_235 = arith.constant 0 : index
    %c0_236 = arith.constant 0 : index
    %351 = vector.load %arg18[%c0_234, %c0_235, %c0_236] : memref<2x64x32xbf16, #tpu.memory_space<vmem>>, vector<1x64x32xbf16>
    %352 = vector.shape_cast %351 : vector<1x64x32xbf16> to vector<64x32xbf16>
    %cst_237 = arith.constant dense<0.000000e+00> : vector<8x32xf32>
    %353 = tpu.matmul %350, %352, %cst_237 {dimension_numbers = #tpu.dot_dimension_numbers<[1], [0], [0], [1], [0, 0, 1, 1], [], []>} : vector<8x64xbf16>, vector<64x32xbf16>, vector<8x32xf32> -> vector<8x32xf32>
    %c0_238 = arith.constant 0 : index
    %c0_239 = arith.constant 0 : index
    %c0_240 = arith.constant 0 : index
    %354 = vector.load %arg19[%c0_238, %c0_239, %c0_240] : memref<2x1x32xf32, #tpu.memory_space<vmem>>, vector<1x1x32xf32>
    %355 = vector.shape_cast %354 : vector<1x1x32xf32> to vector<1x32xf32>
    %356 = vector.broadcast %355 : vector<1x32xf32> to vector<8x32xf32>
    %357 = arith.addf %353, %356 : vector<8x32xf32>
    %358 = arith.addf %307, %357 : vector<8x32xf32>
    %c1_241 = arith.constant 1 : index
    %c0_242 = arith.constant 0 : index
    %c0_243 = arith.constant 0 : index
    %359 = vector.load %arg4[%c1_241, %c0_242, %c0_243] : memref<2x1x32xf32, #tpu.memory_space<vmem>>, vector<1x1x32xf32>
    %360 = vector.shape_cast %359 : vector<1x1x32xf32> to vector<1x32xf32>
    %c1_244 = arith.constant 1 : index
    %c0_245 = arith.constant 0 : index
    %c0_246 = arith.constant 0 : index
    %361 = vector.load %arg5[%c1_244, %c0_245, %c0_246] : memref<2x1x32xf32, #tpu.memory_space<vmem>>, vector<1x1x32xf32>
    %362 = vector.shape_cast %361 : vector<1x1x32xf32> to vector<1x32xf32>
    %cst_247 = arith.constant dense<0.000000e+00> : vector<8xf32>
    %363 = vector.multi_reduction <add>, %358, %cst_247 [1] : vector<8x32xf32> to vector<8xf32>
    %364 = vector.shape_cast %363 : vector<8xf32> to vector<8x1xf32>
    %cst_248 = arith.constant 3.200000e+01 : f32
    %365 = vector.broadcast %cst_248 : f32 to vector<8x1xf32>
    %366 = arith.divf %364, %365 : vector<8x1xf32>
    %367 = vector.broadcast %366 : vector<8x1xf32> to vector<8x32xf32>
    %368 = arith.subf %358, %367 : vector<8x32xf32>
    %369 = arith.mulf %368, %368 : vector<8x32xf32>
    %cst_249 = arith.constant dense<0.000000e+00> : vector<8xf32>
    %370 = vector.multi_reduction <add>, %369, %cst_249 [1] : vector<8x32xf32> to vector<8xf32>
    %371 = vector.shape_cast %370 : vector<8xf32> to vector<8x1xf32>
    %cst_250 = arith.constant 3.200000e+01 : f32
    %372 = vector.broadcast %cst_250 : f32 to vector<8x1xf32>
    %373 = arith.divf %371, %372 : vector<8x1xf32>
    %374 = vector.broadcast %366 : vector<8x1xf32> to vector<8x32xf32>
    %375 = arith.subf %358, %374 : vector<8x32xf32>
    %cst_251 = arith.constant 9.99999974E-6 : f32
    %376 = vector.broadcast %cst_251 : f32 to vector<8x1xf32>
    %377 = arith.addf %373, %376 : vector<8x1xf32>
    %378 = math.rsqrt %377 : vector<8x1xf32>
    %379 = vector.broadcast %378 : vector<8x1xf32> to vector<8x32xf32>
    %380 = arith.mulf %375, %379 : vector<8x32xf32>
    %381 = vector.broadcast %360 : vector<1x32xf32> to vector<8x32xf32>
    %382 = arith.mulf %380, %381 : vector<8x32xf32>
    %383 = vector.broadcast %362 : vector<1x32xf32> to vector<8x32xf32>
    %384 = arith.addf %382, %383 : vector<8x32xf32>
    %385 = arith.truncf %384 : vector<8x32xf32> to vector<8x32xbf16>
    %c1_252 = arith.constant 1 : index
    %c0_253 = arith.constant 0 : index
    %c0_254 = arith.constant 0 : index
    %c0_255 = arith.constant 0 : index
    %386 = vector.load %arg6[%c1_252, %c0_253, %c0_254, %c0_255] : memref<2x4x32x8xbf16, #tpu.memory_space<vmem>>, vector<1x1x32x8xbf16>
    %387 = vector.shape_cast %386 : vector<1x1x32x8xbf16> to vector<32x8xbf16>
    %cst_256 = arith.constant dense<0.000000e+00> : vector<8x8xf32>
    %388 = tpu.matmul %385, %387, %cst_256 {dimension_numbers = #tpu.dot_dimension_numbers<[1], [0], [0], [1], [0, 0, 1, 1], [], []>} : vector<8x32xbf16>, vector<32x8xbf16>, vector<8x8xf32> -> vector<8x8xf32>
    %c1_257 = arith.constant 1 : index
    %c0_258 = arith.constant 0 : index
    %c0_259 = arith.constant 0 : index
    %c0_260 = arith.constant 0 : index
    %389 = vector.load %arg9[%c1_257, %c0_258, %c0_259, %c0_260] : memref<2x4x1x8xf32, #tpu.memory_space<vmem>>, vector<1x1x1x8xf32>
    %390 = vector.shape_cast %389 : vector<1x1x1x8xf32> to vector<1x8xf32>
    %391 = vector.broadcast %390 : vector<1x8xf32> to vector<8x8xf32>
    %392 = arith.addf %388, %391 : vector<8x8xf32>
    %cst_261 = arith.constant 0.353553385 : f32
    %393 = vector.broadcast %cst_261 : f32 to vector<8x8xf32>
    %394 = arith.mulf %392, %393 : vector<8x8xf32>
    %c1_262 = arith.constant 1 : index
    %c0_263 = arith.constant 0 : index
    %c0_264 = arith.constant 0 : index
    %c0_265 = arith.constant 0 : index
    %395 = vector.load %arg7[%c1_262, %c0_263, %c0_264, %c0_265] : memref<2x4x32x8xbf16, #tpu.memory_space<vmem>>, vector<1x1x32x8xbf16>
    %396 = vector.shape_cast %395 : vector<1x1x32x8xbf16> to vector<32x8xbf16>
    %cst_266 = arith.constant dense<0.000000e+00> : vector<8x8xf32>
    %397 = tpu.matmul %385, %396, %cst_266 {dimension_numbers = #tpu.dot_dimension_numbers<[1], [0], [0], [1], [0, 0, 1, 1], [], []>} : vector<8x32xbf16>, vector<32x8xbf16>, vector<8x8xf32> -> vector<8x8xf32>
    %c1_267 = arith.constant 1 : index
    %c0_268 = arith.constant 0 : index
    %c0_269 = arith.constant 0 : index
    %c0_270 = arith.constant 0 : index
    %398 = vector.load %arg10[%c1_267, %c0_268, %c0_269, %c0_270] : memref<2x4x1x8xf32, #tpu.memory_space<vmem>>, vector<1x1x1x8xf32>
    %399 = vector.shape_cast %398 : vector<1x1x1x8xf32> to vector<1x8xf32>
    %400 = vector.broadcast %399 : vector<1x8xf32> to vector<8x8xf32>
    %401 = arith.addf %397, %400 : vector<8x8xf32>
    %c1_271 = arith.constant 1 : index
    %c0_272 = arith.constant 0 : index
    %c0_273 = arith.constant 0 : index
    %c0_274 = arith.constant 0 : index
    %402 = vector.load %arg8[%c1_271, %c0_272, %c0_273, %c0_274] : memref<2x4x32x8xbf16, #tpu.memory_space<vmem>>, vector<1x1x32x8xbf16>
    %403 = vector.shape_cast %402 : vector<1x1x32x8xbf16> to vector<32x8xbf16>
    %cst_275 = arith.constant dense<0.000000e+00> : vector<8x8xf32>
    %404 = tpu.matmul %385, %403, %cst_275 {dimension_numbers = #tpu.dot_dimension_numbers<[1], [0], [0], [1], [0, 0, 1, 1], [], []>} : vector<8x32xbf16>, vector<32x8xbf16>, vector<8x8xf32> -> vector<8x8xf32>
    %c1_276 = arith.constant 1 : index
    %c0_277 = arith.constant 0 : index
    %c0_278 = arith.constant 0 : index
    %c0_279 = arith.constant 0 : index
    %405 = vector.load %arg11[%c1_276, %c0_277, %c0_278, %c0_279] : memref<2x4x1x8xf32, #tpu.memory_space<vmem>>, vector<1x1x1x8xf32>
    %406 = vector.shape_cast %405 : vector<1x1x1x8xf32> to vector<1x8xf32>
    %407 = vector.broadcast %406 : vector<1x8xf32> to vector<8x8xf32>
    %408 = arith.addf %404, %407 : vector<8x8xf32>
    %409 = vector.shape_cast %394 : vector<8x8xf32> to vector<1x8x8xf32>
    %410 = arith.truncf %409 : vector<1x8x8xf32> to vector<1x8x8xbf16>
    %411 = vector.shape_cast %401 : vector<8x8xf32> to vector<1x8x8xf32>
    %412 = arith.truncf %411 : vector<1x8x8xf32> to vector<1x8x8xbf16>
    %413 = vector.shape_cast %408 : vector<8x8xf32> to vector<1x8x8xf32>
    %414 = arith.truncf %413 : vector<1x8x8xf32> to vector<1x8x8xbf16>
    "tpu.trace_start"() <{level = 10 : i32, message = "bqd,bkd->bqk"}> : () -> ()
    %cst_280 = arith.constant dense<0.000000e+00> : vector<1x8x8xf32>
    %415 = tpu.matmul %410, %412, %cst_280 {dimension_numbers = #tpu.dot_dimension_numbers<[2], [2], [1], [1], [0, 0, 0, 1, 1, 1], [0], [0]>} : vector<1x8x8xbf16>, vector<1x8x8xbf16>, vector<1x8x8xf32> -> vector<1x8x8xf32>
    "tpu.trace_stop"() : () -> ()
    %cst_281 = arith.constant dense<0xFF800000> : vector<1x8xf32>
    %416 = vector.multi_reduction <maximumf>, %415, %cst_281 [2] : vector<1x8x8xf32> to vector<1x8xf32>
    %417 = vector.shape_cast %416 : vector<1x8xf32> to vector<1x8x1xf32>
    %418 = vector.broadcast %417 : vector<1x8x1xf32> to vector<1x8x8xf32>
    %419 = arith.subf %415, %418 : vector<1x8x8xf32>
    %420 = math.exp %419 : vector<1x8x8xf32>
    %cst_282 = arith.constant dense<0.000000e+00> : vector<1x8xf32>
    %421 = vector.multi_reduction <add>, %420, %cst_282 [2] : vector<1x8x8xf32> to vector<1x8xf32>
    %422 = vector.shape_cast %421 : vector<1x8xf32> to vector<1x8x1xf32>
    %423 = tpu.reciprocal %422 {approx = true} : vector<1x8x1xf32> -> vector<1x8x1xf32>
    %424 = vector.broadcast %423 : vector<1x8x1xf32> to vector<1x8x8xf32>
    %425 = arith.mulf %420, %424 : vector<1x8x8xf32>
    %426 = arith.truncf %425 : vector<1x8x8xf32> to vector<1x8x8xbf16>
    "tpu.trace_start"() <{level = 10 : i32, message = "bqk,bkd->bqd"}> : () -> ()
    %cst_283 = arith.constant dense<0.000000e+00> : vector<1x8x8xf32>
    %427 = tpu.matmul %426, %414, %cst_283 {dimension_numbers = #tpu.dot_dimension_numbers<[2], [1], [1], [2], [0, 0, 0, 1, 1, 2], [0], [0]>} : vector<1x8x8xbf16>, vector<1x8x8xbf16>, vector<1x8x8xf32> -> vector<1x8x8xf32>
    "tpu.trace_stop"() : () -> ()
    %428 = vector.shape_cast %427 : vector<1x8x8xf32> to vector<8x8xf32>
    %c1_284 = arith.constant 1 : index
    %c1_285 = arith.constant 1 : index
    %c0_286 = arith.constant 0 : index
    %c0_287 = arith.constant 0 : index
    %429 = vector.load %arg6[%c1_284, %c1_285, %c0_286, %c0_287] : memref<2x4x32x8xbf16, #tpu.memory_space<vmem>>, vector<1x1x32x8xbf16>
    %430 = vector.shape_cast %429 : vector<1x1x32x8xbf16> to vector<32x8xbf16>
    %cst_288 = arith.constant dense<0.000000e+00> : vector<8x8xf32>
    %431 = tpu.matmul %385, %430, %cst_288 {dimension_numbers = #tpu.dot_dimension_numbers<[1], [0], [0], [1], [0, 0, 1, 1], [], []>} : vector<8x32xbf16>, vector<32x8xbf16>, vector<8x8xf32> -> vector<8x8xf32>
    %c1_289 = arith.constant 1 : index
    %c1_290 = arith.constant 1 : index
    %c0_291 = arith.constant 0 : index
    %c0_292 = arith.constant 0 : index
    %432 = vector.load %arg9[%c1_289, %c1_290, %c0_291, %c0_292] : memref<2x4x1x8xf32, #tpu.memory_space<vmem>>, vector<1x1x1x8xf32>
    %433 = vector.shape_cast %432 : vector<1x1x1x8xf32> to vector<1x8xf32>
    %434 = vector.broadcast %433 : vector<1x8xf32> to vector<8x8xf32>
    %435 = arith.addf %431, %434 : vector<8x8xf32>
    %cst_293 = arith.constant 0.353553385 : f32
    %436 = vector.broadcast %cst_293 : f32 to vector<8x8xf32>
    %437 = arith.mulf %435, %436 : vector<8x8xf32>
    %c1_294 = arith.constant 1 : index
    %c1_295 = arith.constant 1 : index
    %c0_296 = arith.constant 0 : index
    %c0_297 = arith.constant 0 : index
    %438 = vector.load %arg7[%c1_294, %c1_295, %c0_296, %c0_297] : memref<2x4x32x8xbf16, #tpu.memory_space<vmem>>, vector<1x1x32x8xbf16>
    %439 = vector.shape_cast %438 : vector<1x1x32x8xbf16> to vector<32x8xbf16>
    %cst_298 = arith.constant dense<0.000000e+00> : vector<8x8xf32>
    %440 = tpu.matmul %385, %439, %cst_298 {dimension_numbers = #tpu.dot_dimension_numbers<[1], [0], [0], [1], [0, 0, 1, 1], [], []>} : vector<8x32xbf16>, vector<32x8xbf16>, vector<8x8xf32> -> vector<8x8xf32>
    %c1_299 = arith.constant 1 : index
    %c1_300 = arith.constant 1 : index
    %c0_301 = arith.constant 0 : index
    %c0_302 = arith.constant 0 : index
    %441 = vector.load %arg10[%c1_299, %c1_300, %c0_301, %c0_302] : memref<2x4x1x8xf32, #tpu.memory_space<vmem>>, vector<1x1x1x8xf32>
    %442 = vector.shape_cast %441 : vector<1x1x1x8xf32> to vector<1x8xf32>
    %443 = vector.broadcast %442 : vector<1x8xf32> to vector<8x8xf32>
    %444 = arith.addf %440, %443 : vector<8x8xf32>
    %c1_303 = arith.constant 1 : index
    %c1_304 = arith.constant 1 : index
    %c0_305 = arith.constant 0 : index
    %c0_306 = arith.constant 0 : index
    %445 = vector.load %arg8[%c1_303, %c1_304, %c0_305, %c0_306] : memref<2x4x32x8xbf16, #tpu.memory_space<vmem>>, vector<1x1x32x8xbf16>
    %446 = vector.shape_cast %445 : vector<1x1x32x8xbf16> to vector<32x8xbf16>
    %cst_307 = arith.constant dense<0.000000e+00> : vector<8x8xf32>
    %447 = tpu.matmul %385, %446, %cst_307 {dimension_numbers = #tpu.dot_dimension_numbers<[1], [0], [0], [1], [0, 0, 1, 1], [], []>} : vector<8x32xbf16>, vector<32x8xbf16>, vector<8x8xf32> -> vector<8x8xf32>
    %c1_308 = arith.constant 1 : index
    %c1_309 = arith.constant 1 : index
    %c0_310 = arith.constant 0 : index
    %c0_311 = arith.constant 0 : index
    %448 = vector.load %arg11[%c1_308, %c1_309, %c0_310, %c0_311] : memref<2x4x1x8xf32, #tpu.memory_space<vmem>>, vector<1x1x1x8xf32>
    %449 = vector.shape_cast %448 : vector<1x1x1x8xf32> to vector<1x8xf32>
    %450 = vector.broadcast %449 : vector<1x8xf32> to vector<8x8xf32>
    %451 = arith.addf %447, %450 : vector<8x8xf32>
    %452 = vector.shape_cast %437 : vector<8x8xf32> to vector<1x8x8xf32>
    %453 = arith.truncf %452 : vector<1x8x8xf32> to vector<1x8x8xbf16>
    %454 = vector.shape_cast %444 : vector<8x8xf32> to vector<1x8x8xf32>
    %455 = arith.truncf %454 : vector<1x8x8xf32> to vector<1x8x8xbf16>
    %456 = vector.shape_cast %451 : vector<8x8xf32> to vector<1x8x8xf32>
    %457 = arith.truncf %456 : vector<1x8x8xf32> to vector<1x8x8xbf16>
    "tpu.trace_start"() <{level = 10 : i32, message = "bqd,bkd->bqk"}> : () -> ()
    %cst_312 = arith.constant dense<0.000000e+00> : vector<1x8x8xf32>
    %458 = tpu.matmul %453, %455, %cst_312 {dimension_numbers = #tpu.dot_dimension_numbers<[2], [2], [1], [1], [0, 0, 0, 1, 1, 1], [0], [0]>} : vector<1x8x8xbf16>, vector<1x8x8xbf16>, vector<1x8x8xf32> -> vector<1x8x8xf32>
    "tpu.trace_stop"() : () -> ()
    %cst_313 = arith.constant dense<0xFF800000> : vector<1x8xf32>
    %459 = vector.multi_reduction <maximumf>, %458, %cst_313 [2] : vector<1x8x8xf32> to vector<1x8xf32>
    %460 = vector.shape_cast %459 : vector<1x8xf32> to vector<1x8x1xf32>
    %461 = vector.broadcast %460 : vector<1x8x1xf32> to vector<1x8x8xf32>
    %462 = arith.subf %458, %461 : vector<1x8x8xf32>
    %463 = math.exp %462 : vector<1x8x8xf32>
    %cst_314 = arith.constant dense<0.000000e+00> : vector<1x8xf32>
    %464 = vector.multi_reduction <add>, %463, %cst_314 [2] : vector<1x8x8xf32> to vector<1x8xf32>
    %465 = vector.shape_cast %464 : vector<1x8xf32> to vector<1x8x1xf32>
    %466 = tpu.reciprocal %465 {approx = true} : vector<1x8x1xf32> -> vector<1x8x1xf32>
    %467 = vector.broadcast %466 : vector<1x8x1xf32> to vector<1x8x8xf32>
    %468 = arith.mulf %463, %467 : vector<1x8x8xf32>
    %469 = arith.truncf %468 : vector<1x8x8xf32> to vector<1x8x8xbf16>
    "tpu.trace_start"() <{level = 10 : i32, message = "bqk,bkd->bqd"}> : () -> ()
    %cst_315 = arith.constant dense<0.000000e+00> : vector<1x8x8xf32>
    %470 = tpu.matmul %469, %457, %cst_315 {dimension_numbers = #tpu.dot_dimension_numbers<[2], [1], [1], [2], [0, 0, 0, 1, 1, 2], [0], [0]>} : vector<1x8x8xbf16>, vector<1x8x8xbf16>, vector<1x8x8xf32> -> vector<1x8x8xf32>
    "tpu.trace_stop"() : () -> ()
    %471 = vector.shape_cast %470 : vector<1x8x8xf32> to vector<8x8xf32>
    %c1_316 = arith.constant 1 : index
    %c2_317 = arith.constant 2 : index
    %c0_318 = arith.constant 0 : index
    %c0_319 = arith.constant 0 : index
    %472 = vector.load %arg6[%c1_316, %c2_317, %c0_318, %c0_319] : memref<2x4x32x8xbf16, #tpu.memory_space<vmem>>, vector<1x1x32x8xbf16>
    %473 = vector.shape_cast %472 : vector<1x1x32x8xbf16> to vector<32x8xbf16>
    %cst_320 = arith.constant dense<0.000000e+00> : vector<8x8xf32>
    %474 = tpu.matmul %385, %473, %cst_320 {dimension_numbers = #tpu.dot_dimension_numbers<[1], [0], [0], [1], [0, 0, 1, 1], [], []>} : vector<8x32xbf16>, vector<32x8xbf16>, vector<8x8xf32> -> vector<8x8xf32>
    %c1_321 = arith.constant 1 : index
    %c2_322 = arith.constant 2 : index
    %c0_323 = arith.constant 0 : index
    %c0_324 = arith.constant 0 : index
    %475 = vector.load %arg9[%c1_321, %c2_322, %c0_323, %c0_324] : memref<2x4x1x8xf32, #tpu.memory_space<vmem>>, vector<1x1x1x8xf32>
    %476 = vector.shape_cast %475 : vector<1x1x1x8xf32> to vector<1x8xf32>
    %477 = vector.broadcast %476 : vector<1x8xf32> to vector<8x8xf32>
    %478 = arith.addf %474, %477 : vector<8x8xf32>
    %cst_325 = arith.constant 0.353553385 : f32
    %479 = vector.broadcast %cst_325 : f32 to vector<8x8xf32>
    %480 = arith.mulf %478, %479 : vector<8x8xf32>
    %c1_326 = arith.constant 1 : index
    %c2_327 = arith.constant 2 : index
    %c0_328 = arith.constant 0 : index
    %c0_329 = arith.constant 0 : index
    %481 = vector.load %arg7[%c1_326, %c2_327, %c0_328, %c0_329] : memref<2x4x32x8xbf16, #tpu.memory_space<vmem>>, vector<1x1x32x8xbf16>
    %482 = vector.shape_cast %481 : vector<1x1x32x8xbf16> to vector<32x8xbf16>
    %cst_330 = arith.constant dense<0.000000e+00> : vector<8x8xf32>
    %483 = tpu.matmul %385, %482, %cst_330 {dimension_numbers = #tpu.dot_dimension_numbers<[1], [0], [0], [1], [0, 0, 1, 1], [], []>} : vector<8x32xbf16>, vector<32x8xbf16>, vector<8x8xf32> -> vector<8x8xf32>
    %c1_331 = arith.constant 1 : index
    %c2_332 = arith.constant 2 : index
    %c0_333 = arith.constant 0 : index
    %c0_334 = arith.constant 0 : index
    %484 = vector.load %arg10[%c1_331, %c2_332, %c0_333, %c0_334] : memref<2x4x1x8xf32, #tpu.memory_space<vmem>>, vector<1x1x1x8xf32>
    %485 = vector.shape_cast %484 : vector<1x1x1x8xf32> to vector<1x8xf32>
    %486 = vector.broadcast %485 : vector<1x8xf32> to vector<8x8xf32>
    %487 = arith.addf %483, %486 : vector<8x8xf32>
    %c1_335 = arith.constant 1 : index
    %c2_336 = arith.constant 2 : index
    %c0_337 = arith.constant 0 : index
    %c0_338 = arith.constant 0 : index
    %488 = vector.load %arg8[%c1_335, %c2_336, %c0_337, %c0_338] : memref<2x4x32x8xbf16, #tpu.memory_space<vmem>>, vector<1x1x32x8xbf16>
    %489 = vector.shape_cast %488 : vector<1x1x32x8xbf16> to vector<32x8xbf16>
    %cst_339 = arith.constant dense<0.000000e+00> : vector<8x8xf32>
    %490 = tpu.matmul %385, %489, %cst_339 {dimension_numbers = #tpu.dot_dimension_numbers<[1], [0], [0], [1], [0, 0, 1, 1], [], []>} : vector<8x32xbf16>, vector<32x8xbf16>, vector<8x8xf32> -> vector<8x8xf32>
    %c1_340 = arith.constant 1 : index
    %c2_341 = arith.constant 2 : index
    %c0_342 = arith.constant 0 : index
    %c0_343 = arith.constant 0 : index
    %491 = vector.load %arg11[%c1_340, %c2_341, %c0_342, %c0_343] : memref<2x4x1x8xf32, #tpu.memory_space<vmem>>, vector<1x1x1x8xf32>
    %492 = vector.shape_cast %491 : vector<1x1x1x8xf32> to vector<1x8xf32>
    %493 = vector.broadcast %492 : vector<1x8xf32> to vector<8x8xf32>
    %494 = arith.addf %490, %493 : vector<8x8xf32>
    %495 = vector.shape_cast %480 : vector<8x8xf32> to vector<1x8x8xf32>
    %496 = arith.truncf %495 : vector<1x8x8xf32> to vector<1x8x8xbf16>
    %497 = vector.shape_cast %487 : vector<8x8xf32> to vector<1x8x8xf32>
    %498 = arith.truncf %497 : vector<1x8x8xf32> to vector<1x8x8xbf16>
    %499 = vector.shape_cast %494 : vector<8x8xf32> to vector<1x8x8xf32>
    %500 = arith.truncf %499 : vector<1x8x8xf32> to vector<1x8x8xbf16>
    "tpu.trace_start"() <{level = 10 : i32, message = "bqd,bkd->bqk"}> : () -> ()
    %cst_344 = arith.constant dense<0.000000e+00> : vector<1x8x8xf32>
    %501 = tpu.matmul %496, %498, %cst_344 {dimension_numbers = #tpu.dot_dimension_numbers<[2], [2], [1], [1], [0, 0, 0, 1, 1, 1], [0], [0]>} : vector<1x8x8xbf16>, vector<1x8x8xbf16>, vector<1x8x8xf32> -> vector<1x8x8xf32>
    "tpu.trace_stop"() : () -> ()
    %cst_345 = arith.constant dense<0xFF800000> : vector<1x8xf32>
    %502 = vector.multi_reduction <maximumf>, %501, %cst_345 [2] : vector<1x8x8xf32> to vector<1x8xf32>
    %503 = vector.shape_cast %502 : vector<1x8xf32> to vector<1x8x1xf32>
    %504 = vector.broadcast %503 : vector<1x8x1xf32> to vector<1x8x8xf32>
    %505 = arith.subf %501, %504 : vector<1x8x8xf32>
    %506 = math.exp %505 : vector<1x8x8xf32>
    %cst_346 = arith.constant dense<0.000000e+00> : vector<1x8xf32>
    %507 = vector.multi_reduction <add>, %506, %cst_346 [2] : vector<1x8x8xf32> to vector<1x8xf32>
    %508 = vector.shape_cast %507 : vector<1x8xf32> to vector<1x8x1xf32>
    %509 = tpu.reciprocal %508 {approx = true} : vector<1x8x1xf32> -> vector<1x8x1xf32>
    %510 = vector.broadcast %509 : vector<1x8x1xf32> to vector<1x8x8xf32>
    %511 = arith.mulf %506, %510 : vector<1x8x8xf32>
    %512 = arith.truncf %511 : vector<1x8x8xf32> to vector<1x8x8xbf16>
    "tpu.trace_start"() <{level = 10 : i32, message = "bqk,bkd->bqd"}> : () -> ()
    %cst_347 = arith.constant dense<0.000000e+00> : vector<1x8x8xf32>
    %513 = tpu.matmul %512, %500, %cst_347 {dimension_numbers = #tpu.dot_dimension_numbers<[2], [1], [1], [2], [0, 0, 0, 1, 1, 2], [0], [0]>} : vector<1x8x8xbf16>, vector<1x8x8xbf16>, vector<1x8x8xf32> -> vector<1x8x8xf32>
    "tpu.trace_stop"() : () -> ()
    %514 = vector.shape_cast %513 : vector<1x8x8xf32> to vector<8x8xf32>
    %c1_348 = arith.constant 1 : index
    %c3_349 = arith.constant 3 : index
    %c0_350 = arith.constant 0 : index
    %c0_351 = arith.constant 0 : index
    %515 = vector.load %arg6[%c1_348, %c3_349, %c0_350, %c0_351] : memref<2x4x32x8xbf16, #tpu.memory_space<vmem>>, vector<1x1x32x8xbf16>
    %516 = vector.shape_cast %515 : vector<1x1x32x8xbf16> to vector<32x8xbf16>
    %cst_352 = arith.constant dense<0.000000e+00> : vector<8x8xf32>
    %517 = tpu.matmul %385, %516, %cst_352 {dimension_numbers = #tpu.dot_dimension_numbers<[1], [0], [0], [1], [0, 0, 1, 1], [], []>} : vector<8x32xbf16>, vector<32x8xbf16>, vector<8x8xf32> -> vector<8x8xf32>
    %c1_353 = arith.constant 1 : index
    %c3_354 = arith.constant 3 : index
    %c0_355 = arith.constant 0 : index
    %c0_356 = arith.constant 0 : index
    %518 = vector.load %arg9[%c1_353, %c3_354, %c0_355, %c0_356] : memref<2x4x1x8xf32, #tpu.memory_space<vmem>>, vector<1x1x1x8xf32>
    %519 = vector.shape_cast %518 : vector<1x1x1x8xf32> to vector<1x8xf32>
    %520 = vector.broadcast %519 : vector<1x8xf32> to vector<8x8xf32>
    %521 = arith.addf %517, %520 : vector<8x8xf32>
    %cst_357 = arith.constant 0.353553385 : f32
    %522 = vector.broadcast %cst_357 : f32 to vector<8x8xf32>
    %523 = arith.mulf %521, %522 : vector<8x8xf32>
    %c1_358 = arith.constant 1 : index
    %c3_359 = arith.constant 3 : index
    %c0_360 = arith.constant 0 : index
    %c0_361 = arith.constant 0 : index
    %524 = vector.load %arg7[%c1_358, %c3_359, %c0_360, %c0_361] : memref<2x4x32x8xbf16, #tpu.memory_space<vmem>>, vector<1x1x32x8xbf16>
    %525 = vector.shape_cast %524 : vector<1x1x32x8xbf16> to vector<32x8xbf16>
    %cst_362 = arith.constant dense<0.000000e+00> : vector<8x8xf32>
    %526 = tpu.matmul %385, %525, %cst_362 {dimension_numbers = #tpu.dot_dimension_numbers<[1], [0], [0], [1], [0, 0, 1, 1], [], []>} : vector<8x32xbf16>, vector<32x8xbf16>, vector<8x8xf32> -> vector<8x8xf32>
    %c1_363 = arith.constant 1 : index
    %c3_364 = arith.constant 3 : index
    %c0_365 = arith.constant 0 : index
    %c0_366 = arith.constant 0 : index
    %527 = vector.load %arg10[%c1_363, %c3_364, %c0_365, %c0_366] : memref<2x4x1x8xf32, #tpu.memory_space<vmem>>, vector<1x1x1x8xf32>
    %528 = vector.shape_cast %527 : vector<1x1x1x8xf32> to vector<1x8xf32>
    %529 = vector.broadcast %528 : vector<1x8xf32> to vector<8x8xf32>
    %530 = arith.addf %526, %529 : vector<8x8xf32>
    %c1_367 = arith.constant 1 : index
    %c3_368 = arith.constant 3 : index
    %c0_369 = arith.constant 0 : index
    %c0_370 = arith.constant 0 : index
    %531 = vector.load %arg8[%c1_367, %c3_368, %c0_369, %c0_370] : memref<2x4x32x8xbf16, #tpu.memory_space<vmem>>, vector<1x1x32x8xbf16>
    %532 = vector.shape_cast %531 : vector<1x1x32x8xbf16> to vector<32x8xbf16>
    %cst_371 = arith.constant dense<0.000000e+00> : vector<8x8xf32>
    %533 = tpu.matmul %385, %532, %cst_371 {dimension_numbers = #tpu.dot_dimension_numbers<[1], [0], [0], [1], [0, 0, 1, 1], [], []>} : vector<8x32xbf16>, vector<32x8xbf16>, vector<8x8xf32> -> vector<8x8xf32>
    %c1_372 = arith.constant 1 : index
    %c3_373 = arith.constant 3 : index
    %c0_374 = arith.constant 0 : index
    %c0_375 = arith.constant 0 : index
    %534 = vector.load %arg11[%c1_372, %c3_373, %c0_374, %c0_375] : memref<2x4x1x8xf32, #tpu.memory_space<vmem>>, vector<1x1x1x8xf32>
    %535 = vector.shape_cast %534 : vector<1x1x1x8xf32> to vector<1x8xf32>
    %536 = vector.broadcast %535 : vector<1x8xf32> to vector<8x8xf32>
    %537 = arith.addf %533, %536 : vector<8x8xf32>
    %538 = vector.shape_cast %523 : vector<8x8xf32> to vector<1x8x8xf32>
    %539 = arith.truncf %538 : vector<1x8x8xf32> to vector<1x8x8xbf16>
    %540 = vector.shape_cast %530 : vector<8x8xf32> to vector<1x8x8xf32>
    %541 = arith.truncf %540 : vector<1x8x8xf32> to vector<1x8x8xbf16>
    %542 = vector.shape_cast %537 : vector<8x8xf32> to vector<1x8x8xf32>
    %543 = arith.truncf %542 : vector<1x8x8xf32> to vector<1x8x8xbf16>
    "tpu.trace_start"() <{level = 10 : i32, message = "bqd,bkd->bqk"}> : () -> ()
    %cst_376 = arith.constant dense<0.000000e+00> : vector<1x8x8xf32>
    %544 = tpu.matmul %539, %541, %cst_376 {dimension_numbers = #tpu.dot_dimension_numbers<[2], [2], [1], [1], [0, 0, 0, 1, 1, 1], [0], [0]>} : vector<1x8x8xbf16>, vector<1x8x8xbf16>, vector<1x8x8xf32> -> vector<1x8x8xf32>
    "tpu.trace_stop"() : () -> ()
    %cst_377 = arith.constant dense<0xFF800000> : vector<1x8xf32>
    %545 = vector.multi_reduction <maximumf>, %544, %cst_377 [2] : vector<1x8x8xf32> to vector<1x8xf32>
    %546 = vector.shape_cast %545 : vector<1x8xf32> to vector<1x8x1xf32>
    %547 = vector.broadcast %546 : vector<1x8x1xf32> to vector<1x8x8xf32>
    %548 = arith.subf %544, %547 : vector<1x8x8xf32>
    %549 = math.exp %548 : vector<1x8x8xf32>
    %cst_378 = arith.constant dense<0.000000e+00> : vector<1x8xf32>
    %550 = vector.multi_reduction <add>, %549, %cst_378 [2] : vector<1x8x8xf32> to vector<1x8xf32>
    %551 = vector.shape_cast %550 : vector<1x8xf32> to vector<1x8x1xf32>
    %552 = tpu.reciprocal %551 {approx = true} : vector<1x8x1xf32> -> vector<1x8x1xf32>
    %553 = vector.broadcast %552 : vector<1x8x1xf32> to vector<1x8x8xf32>
    %554 = arith.mulf %549, %553 : vector<1x8x8xf32>
    %555 = arith.truncf %554 : vector<1x8x8xf32> to vector<1x8x8xbf16>
    "tpu.trace_start"() <{level = 10 : i32, message = "bqk,bkd->bqd"}> : () -> ()
    %cst_379 = arith.constant dense<0.000000e+00> : vector<1x8x8xf32>
    %556 = tpu.matmul %555, %543, %cst_379 {dimension_numbers = #tpu.dot_dimension_numbers<[2], [1], [1], [2], [0, 0, 0, 1, 1, 2], [0], [0]>} : vector<1x8x8xbf16>, vector<1x8x8xbf16>, vector<1x8x8xf32> -> vector<1x8x8xf32>
    "tpu.trace_stop"() : () -> ()
    %557 = vector.shape_cast %556 : vector<1x8x8xf32> to vector<8x8xf32>
    %558 = tpu.concatenate %428, %471, %514, %557 in 1 : vector<8x8xf32>, vector<8x8xf32>, vector<8x8xf32>, vector<8x8xf32> -> vector<8x32xf32>
    %559 = arith.truncf %558 : vector<8x32xf32> to vector<8x32xbf16>
    %c1_380 = arith.constant 1 : index
    %c0_381 = arith.constant 0 : index
    %c0_382 = arith.constant 0 : index
    %560 = vector.load %arg12[%c1_380, %c0_381, %c0_382] : memref<2x32x32xbf16, #tpu.memory_space<vmem>>, vector<1x32x32xbf16>
    %561 = vector.shape_cast %560 : vector<1x32x32xbf16> to vector<32x32xbf16>
    %cst_383 = arith.constant dense<0.000000e+00> : vector<8x32xf32>
    %562 = tpu.matmul %559, %561, %cst_383 {dimension_numbers = #tpu.dot_dimension_numbers<[1], [0], [0], [1], [0, 0, 1, 1], [], []>} : vector<8x32xbf16>, vector<32x32xbf16>, vector<8x32xf32> -> vector<8x32xf32>
    %c1_384 = arith.constant 1 : index
    %c0_385 = arith.constant 0 : index
    %c0_386 = arith.constant 0 : index
    %563 = vector.load %arg13[%c1_384, %c0_385, %c0_386] : memref<2x1x32xf32, #tpu.memory_space<vmem>>, vector<1x1x32xf32>
    %564 = vector.shape_cast %563 : vector<1x1x32xf32> to vector<1x32xf32>
    %565 = vector.broadcast %564 : vector<1x32xf32> to vector<8x32xf32>
    %566 = arith.addf %562, %565 : vector<8x32xf32>
    %567 = arith.addf %358, %566 : vector<8x32xf32>
    %c1_387 = arith.constant 1 : index
    %c0_388 = arith.constant 0 : index
    %c0_389 = arith.constant 0 : index
    %568 = vector.load %arg14[%c1_387, %c0_388, %c0_389] : memref<2x1x32xf32, #tpu.memory_space<vmem>>, vector<1x1x32xf32>
    %569 = vector.shape_cast %568 : vector<1x1x32xf32> to vector<1x32xf32>
    %c1_390 = arith.constant 1 : index
    %c0_391 = arith.constant 0 : index
    %c0_392 = arith.constant 0 : index
    %570 = vector.load %arg15[%c1_390, %c0_391, %c0_392] : memref<2x1x32xf32, #tpu.memory_space<vmem>>, vector<1x1x32xf32>
    %571 = vector.shape_cast %570 : vector<1x1x32xf32> to vector<1x32xf32>
    %cst_393 = arith.constant dense<0.000000e+00> : vector<8xf32>
    %572 = vector.multi_reduction <add>, %567, %cst_393 [1] : vector<8x32xf32> to vector<8xf32>
    %573 = vector.shape_cast %572 : vector<8xf32> to vector<8x1xf32>
    %cst_394 = arith.constant 3.200000e+01 : f32
    %574 = vector.broadcast %cst_394 : f32 to vector<8x1xf32>
    %575 = arith.divf %573, %574 : vector<8x1xf32>
    %576 = vector.broadcast %575 : vector<8x1xf32> to vector<8x32xf32>
    %577 = arith.subf %567, %576 : vector<8x32xf32>
    %578 = arith.mulf %577, %577 : vector<8x32xf32>
    %cst_395 = arith.constant dense<0.000000e+00> : vector<8xf32>
    %579 = vector.multi_reduction <add>, %578, %cst_395 [1] : vector<8x32xf32> to vector<8xf32>
    %580 = vector.shape_cast %579 : vector<8xf32> to vector<8x1xf32>
    %cst_396 = arith.constant 3.200000e+01 : f32
    %581 = vector.broadcast %cst_396 : f32 to vector<8x1xf32>
    %582 = arith.divf %580, %581 : vector<8x1xf32>
    %583 = vector.broadcast %575 : vector<8x1xf32> to vector<8x32xf32>
    %584 = arith.subf %567, %583 : vector<8x32xf32>
    %cst_397 = arith.constant 9.99999974E-6 : f32
    %585 = vector.broadcast %cst_397 : f32 to vector<8x1xf32>
    %586 = arith.addf %582, %585 : vector<8x1xf32>
    %587 = math.rsqrt %586 : vector<8x1xf32>
    %588 = vector.broadcast %587 : vector<8x1xf32> to vector<8x32xf32>
    %589 = arith.mulf %584, %588 : vector<8x32xf32>
    %590 = vector.broadcast %569 : vector<1x32xf32> to vector<8x32xf32>
    %591 = arith.mulf %589, %590 : vector<8x32xf32>
    %592 = vector.broadcast %571 : vector<1x32xf32> to vector<8x32xf32>
    %593 = arith.addf %591, %592 : vector<8x32xf32>
    %594 = arith.truncf %593 : vector<8x32xf32> to vector<8x32xbf16>
    %c1_398 = arith.constant 1 : index
    %c0_399 = arith.constant 0 : index
    %c0_400 = arith.constant 0 : index
    %595 = vector.load %arg16[%c1_398, %c0_399, %c0_400] : memref<2x32x64xbf16, #tpu.memory_space<vmem>>, vector<1x32x64xbf16>
    %596 = vector.shape_cast %595 : vector<1x32x64xbf16> to vector<32x64xbf16>
    %cst_401 = arith.constant dense<0.000000e+00> : vector<8x64xf32>
    %597 = tpu.matmul %594, %596, %cst_401 {dimension_numbers = #tpu.dot_dimension_numbers<[1], [0], [0], [1], [0, 0, 1, 1], [], []>} : vector<8x32xbf16>, vector<32x64xbf16>, vector<8x64xf32> -> vector<8x64xf32>
    %c1_402 = arith.constant 1 : index
    %c0_403 = arith.constant 0 : index
    %c0_404 = arith.constant 0 : index
    %598 = vector.load %arg17[%c1_402, %c0_403, %c0_404] : memref<2x1x64xf32, #tpu.memory_space<vmem>>, vector<1x1x64xf32>
    %599 = vector.shape_cast %598 : vector<1x1x64xf32> to vector<1x64xf32>
    %600 = vector.broadcast %599 : vector<1x64xf32> to vector<8x64xf32>
    %601 = arith.addf %597, %600 : vector<8x64xf32>
    %cst_405 = arith.constant 5.000000e-01 : f32
    %602 = vector.broadcast %cst_405 : f32 to vector<8x64xf32>
    %603 = arith.mulf %602, %601 : vector<8x64xf32>
    %cst_406 = arith.constant 0.707106769 : f32
    %604 = vector.broadcast %cst_406 : f32 to vector<8x64xf32>
    %605 = arith.mulf %601, %604 : vector<8x64xf32>
    %606 = math.erf %605 : vector<8x64xf32>
    %cst_407 = arith.constant 1.000000e+00 : f32
    %607 = vector.broadcast %cst_407 : f32 to vector<8x64xf32>
    %608 = arith.addf %607, %606 : vector<8x64xf32>
    %609 = arith.mulf %603, %608 : vector<8x64xf32>
    %610 = arith.truncf %609 : vector<8x64xf32> to vector<8x64xbf16>
    %c1_408 = arith.constant 1 : index
    %c0_409 = arith.constant 0 : index
    %c0_410 = arith.constant 0 : index
    %611 = vector.load %arg18[%c1_408, %c0_409, %c0_410] : memref<2x64x32xbf16, #tpu.memory_space<vmem>>, vector<1x64x32xbf16>
    %612 = vector.shape_cast %611 : vector<1x64x32xbf16> to vector<64x32xbf16>
    %cst_411 = arith.constant dense<0.000000e+00> : vector<8x32xf32>
    %613 = tpu.matmul %610, %612, %cst_411 {dimension_numbers = #tpu.dot_dimension_numbers<[1], [0], [0], [1], [0, 0, 1, 1], [], []>} : vector<8x64xbf16>, vector<64x32xbf16>, vector<8x32xf32> -> vector<8x32xf32>
    %c1_412 = arith.constant 1 : index
    %c0_413 = arith.constant 0 : index
    %c0_414 = arith.constant 0 : index
    %614 = vector.load %arg19[%c1_412, %c0_413, %c0_414] : memref<2x1x32xf32, #tpu.memory_space<vmem>>, vector<1x1x32xf32>
    %615 = vector.shape_cast %614 : vector<1x1x32xf32> to vector<1x32xf32>
    %616 = vector.broadcast %615 : vector<1x32xf32> to vector<8x32xf32>
    %617 = arith.addf %613, %616 : vector<8x32xf32>
    %618 = arith.addf %567, %617 : vector<8x32xf32>
    %c0_415 = arith.constant 0 : index
    %c0_416 = arith.constant 0 : index
    %619 = vector.load %arg20[%c0_415, %c0_416] : memref<1x32xf32, #tpu.memory_space<vmem>>, vector<1x32xf32>
    %c0_417 = arith.constant 0 : index
    %c0_418 = arith.constant 0 : index
    %620 = vector.load %arg21[%c0_417, %c0_418] : memref<1x32xf32, #tpu.memory_space<vmem>>, vector<1x32xf32>
    %cst_419 = arith.constant dense<0.000000e+00> : vector<8xf32>
    %621 = vector.multi_reduction <add>, %618, %cst_419 [1] : vector<8x32xf32> to vector<8xf32>
    %622 = vector.shape_cast %621 : vector<8xf32> to vector<8x1xf32>
    %cst_420 = arith.constant 3.200000e+01 : f32
    %623 = vector.broadcast %cst_420 : f32 to vector<8x1xf32>
    %624 = arith.divf %622, %623 : vector<8x1xf32>
    %625 = vector.broadcast %624 : vector<8x1xf32> to vector<8x32xf32>
    %626 = arith.subf %618, %625 : vector<8x32xf32>
    %627 = arith.mulf %626, %626 : vector<8x32xf32>
    %cst_421 = arith.constant dense<0.000000e+00> : vector<8xf32>
    %628 = vector.multi_reduction <add>, %627, %cst_421 [1] : vector<8x32xf32> to vector<8xf32>
    %629 = vector.shape_cast %628 : vector<8xf32> to vector<8x1xf32>
    %cst_422 = arith.constant 3.200000e+01 : f32
    %630 = vector.broadcast %cst_422 : f32 to vector<8x1xf32>
    %631 = arith.divf %629, %630 : vector<8x1xf32>
    %632 = vector.broadcast %624 : vector<8x1xf32> to vector<8x32xf32>
    %633 = arith.subf %618, %632 : vector<8x32xf32>
    %cst_423 = arith.constant 9.99999974E-6 : f32
    %634 = vector.broadcast %cst_423 : f32 to vector<8x1xf32>
    %635 = arith.addf %631, %634 : vector<8x1xf32>
    %636 = math.rsqrt %635 : vector<8x1xf32>
    %637 = vector.broadcast %636 : vector<8x1xf32> to vector<8x32xf32>
    %638 = arith.mulf %633, %637 : vector<8x32xf32>
    %639 = vector.broadcast %619 : vector<1x32xf32> to vector<8x32xf32>
    %640 = arith.mulf %638, %639 : vector<8x32xf32>
    %641 = vector.broadcast %620 : vector<1x32xf32> to vector<8x32xf32>
    %642 = arith.addf %640, %641 : vector<8x32xf32>
    %643 = arith.truncf %642 : vector<8x32xf32> to vector<8x32xbf16>
    %c0_424 = arith.constant 0 : index
    %c0_425 = arith.constant 0 : index
    %644 = vector.load %arg22[%c0_424, %c0_425] : memref<32x64xbf16, #tpu.memory_space<vmem>>, vector<32x64xbf16>
    %cst_426 = arith.constant dense<0.000000e+00> : vector<8x64xf32>
    %645 = tpu.matmul %643, %644, %cst_426 {dimension_numbers = #tpu.dot_dimension_numbers<[1], [0], [0], [1], [0, 0, 1, 1], [], []>} : vector<8x32xbf16>, vector<32x64xbf16>, vector<8x64xf32> -> vector<8x64xf32>
    %646 = vector.shape_cast %645 : vector<8x64xf32> to vector<1x8x64xf32>
    %c0_427 = arith.constant 0 : index
    %c0_428 = arith.constant 0 : index
    %c0_429 = arith.constant 0 : index
    %647 = vector.load %arg23[%c0_427, %c0_428, %c0_429] : memref<1x8x64xf32, #tpu.memory_space<vmem>>, vector<1x8x64xf32>
    tpu.vector_store %arg23[%c0_427, %c0_428, %c0_429], %646 {strides = array<i32>} : memref<1x8x64xf32, #tpu.memory_space<vmem>>, vector<1x8x64xf32>,
    return
  }
  func.func @transform_1(%arg0: i32, %arg1: memref<2x8xi32, #tpu.memory_space<smem>>) -> (i32, i32) {
    %c0_i32 = arith.constant 0 : i32
    %c0_i32_0 = arith.constant 0 : i32
    %c0_i32_1 = arith.constant 0 : i32
    return %c0_i32, %c0_i32_0 : i32, i32
  }
  func.func @transform_2(%arg0: i32, %arg1: memref<2x8xi32, #tpu.memory_space<smem>>) -> (i32, i32, i32) {
    %c0_i32 = arith.constant 0 : i32
    %c0_i32_0 = arith.constant 0 : i32
    %c0_i32_1 = arith.constant 0 : i32
    %c0_i32_2 = arith.constant 0 : i32
    return %c0_i32, %c0_i32_0, %c0_i32_1 : i32, i32, i32
  }
  func.func @transform_3(%arg0: i32, %arg1: memref<2x8xi32, #tpu.memory_space<smem>>) -> (i32, i32, i32) {
    %c0_i32 = arith.constant 0 : i32
    %c0_i32_0 = arith.constant 0 : i32
    %c0_i32_1 = arith.constant 0 : i32
    %c0_i32_2 = arith.constant 0 : i32
    return %c0_i32, %c0_i32_0, %c0_i32_1 : i32, i32, i32
  }
  func.func @transform_4(%arg0: i32, %arg1: memref<2x8xi32, #tpu.memory_space<smem>>) -> (i32, i32, i32, i32) {
    %c0_i32 = arith.constant 0 : i32
    %c0_i32_0 = arith.constant 0 : i32
    %c0_i32_1 = arith.constant 0 : i32
    %c0_i32_2 = arith.constant 0 : i32
    %c0_i32_3 = arith.constant 0 : i32
    return %c0_i32, %c0_i32_0, %c0_i32_1, %c0_i32_2 : i32, i32, i32, i32
  }
  func.func @transform_5(%arg0: i32, %arg1: memref<2x8xi32, #tpu.memory_space<smem>>) -> (i32, i32, i32, i32) {
    %c0_i32 = arith.constant 0 : i32
    %c0_i32_0 = arith.constant 0 : i32
    %c0_i32_1 = arith.constant 0 : i32
    %c0_i32_2 = arith.constant 0 : i32
    %c0_i32_3 = arith.constant 0 : i32
    return %c0_i32, %c0_i32_0, %c0_i32_1, %c0_i32_2 : i32, i32, i32, i32
  }
  func.func @transform_6(%arg0: i32, %arg1: memref<2x8xi32, #tpu.memory_space<smem>>) -> (i32, i32, i32, i32) {
    %c0_i32 = arith.constant 0 : i32
    %c0_i32_0 = arith.constant 0 : i32
    %c0_i32_1 = arith.constant 0 : i32
    %c0_i32_2 = arith.constant 0 : i32
    %c0_i32_3 = arith.constant 0 : i32
    return %c0_i32, %c0_i32_0, %c0_i32_1, %c0_i32_2 : i32, i32, i32, i32
  }
  func.func @transform_7(%arg0: i32, %arg1: memref<2x8xi32, #tpu.memory_space<smem>>) -> (i32, i32, i32, i32) {
    %c0_i32 = arith.constant 0 : i32
    %c0_i32_0 = arith.constant 0 : i32
    %c0_i32_1 = arith.constant 0 : i32
    %c0_i32_2 = arith.constant 0 : i32
    %c0_i32_3 = arith.constant 0 : i32
    return %c0_i32, %c0_i32_0, %c0_i32_1, %c0_i32_2 : i32, i32, i32, i32
  }
  func.func @transform_8(%arg0: i32, %arg1: memref<2x8xi32, #tpu.memory_space<smem>>) -> (i32, i32, i32, i32) {
    %c0_i32 = arith.constant 0 : i32
    %c0_i32_0 = arith.constant 0 : i32
    %c0_i32_1 = arith.constant 0 : i32
    %c0_i32_2 = arith.constant 0 : i32
    %c0_i32_3 = arith.constant 0 : i32
    return %c0_i32, %c0_i32_0, %c0_i32_1, %c0_i32_2 : i32, i32, i32, i32
  }
  func.func @transform_9(%arg0: i32, %arg1: memref<2x8xi32, #tpu.memory_space<smem>>) -> (i32, i32, i32, i32) {
    %c0_i32 = arith.constant 0 : i32
    %c0_i32_0 = arith.constant 0 : i32
    %c0_i32_1 = arith.constant 0 : i32
    %c0_i32_2 = arith.constant 0 : i32
    %c0_i32_3 = arith.constant 0 : i32
    return %c0_i32, %c0_i32_0, %c0_i32_1, %c0_i32_2 : i32, i32, i32, i32
  }
  func.func @transform_10(%arg0: i32, %arg1: memref<2x8xi32, #tpu.memory_space<smem>>) -> (i32, i32, i32) {
    %c0_i32 = arith.constant 0 : i32
    %c0_i32_0 = arith.constant 0 : i32
    %c0_i32_1 = arith.constant 0 : i32
    %c0_i32_2 = arith.constant 0 : i32
    return %c0_i32, %c0_i32_0, %c0_i32_1 : i32, i32, i32
  }
  func.func @transform_11(%arg0: i32, %arg1: memref<2x8xi32, #tpu.memory_space<smem>>) -> (i32, i32, i32) {
    %c0_i32 = arith.constant 0 : i32
    %c0_i32_0 = arith.constant 0 : i32
    %c0_i32_1 = arith.constant 0 : i32
    %c0_i32_2 = arith.constant 0 : i32
    return %c0_i32, %c0_i32_0, %c0_i32_1 : i32, i32, i32
  }
  func.func @transform_12(%arg0: i32, %arg1: memref<2x8xi32, #tpu.memory_space<smem>>) -> (i32, i32, i32) {
    %c0_i32 = arith.constant 0 : i32
    %c0_i32_0 = arith.constant 0 : i32
    %c0_i32_1 = arith.constant 0 : i32
    %c0_i32_2 = arith.constant 0 : i32
    return %c0_i32, %c0_i32_0, %c0_i32_1 : i32, i32, i32
  }
  func.func @transform_13(%arg0: i32, %arg1: memref<2x8xi32, #tpu.memory_space<smem>>) -> (i32, i32, i32) {
    %c0_i32 = arith.constant 0 : i32
    %c0_i32_0 = arith.constant 0 : i32
    %c0_i32_1 = arith.constant 0 : i32
    %c0_i32_2 = arith.constant 0 : i32
    return %c0_i32, %c0_i32_0, %c0_i32_1 : i32, i32, i32
  }
  func.func @transform_14(%arg0: i32, %arg1: memref<2x8xi32, #tpu.memory_space<smem>>) -> (i32, i32, i32) {
    %c0_i32 = arith.constant 0 : i32
    %c0_i32_0 = arith.constant 0 : i32
    %c0_i32_1 = arith.constant 0 : i32
    %c0_i32_2 = arith.constant 0 : i32
    return %c0_i32, %c0_i32_0, %c0_i32_1 : i32, i32, i32
  }
  func.func @transform_15(%arg0: i32, %arg1: memref<2x8xi32, #tpu.memory_space<smem>>) -> (i32, i32, i32) {
    %c0_i32 = arith.constant 0 : i32
    %c0_i32_0 = arith.constant 0 : i32
    %c0_i32_1 = arith.constant 0 : i32
    %c0_i32_2 = arith.constant 0 : i32
    return %c0_i32, %c0_i32_0, %c0_i32_1 : i32, i32, i32
  }
  func.func @transform_16(%arg0: i32, %arg1: memref<2x8xi32, #tpu.memory_space<smem>>) -> (i32, i32, i32) {
    %c0_i32 = arith.constant 0 : i32
    %c0_i32_0 = arith.constant 0 : i32
    %c0_i32_1 = arith.constant 0 : i32
    %c0_i32_2 = arith.constant 0 : i32
    return %c0_i32, %c0_i32_0, %c0_i32_1 : i32, i32, i32
  }
  func.func @transform_17(%arg0: i32, %arg1: memref<2x8xi32, #tpu.memory_space<smem>>) -> (i32, i32, i32) {
    %c0_i32 = arith.constant 0 : i32
    %c0_i32_0 = arith.constant 0 : i32
    %c0_i32_1 = arith.constant 0 : i32
    %c0_i32_2 = arith.constant 0 : i32
    return %c0_i32, %c0_i32_0, %c0_i32_1 : i32, i32, i32
  }
  func.func @transform_18(%arg0: i32, %arg1: memref<2x8xi32, #tpu.memory_space<smem>>) -> (i32, i32) {
    %c0_i32 = arith.constant 0 : i32
    %c0_i32_0 = arith.constant 0 : i32
    %c0_i32_1 = arith.constant 0 : i32
    return %c0_i32, %c0_i32_0 : i32, i32
  }
  func.func @transform_19(%arg0: i32, %arg1: memref<2x8xi32, #tpu.memory_space<smem>>) -> (i32, i32) {
    %c0_i32 = arith.constant 0 : i32
    %c0_i32_0 = arith.constant 0 : i32
    %c0_i32_1 = arith.constant 0 : i32
    return %c0_i32, %c0_i32_0 : i32, i32
  }
  func.func @transform_20(%arg0: i32, %arg1: memref<2x8xi32, #tpu.memory_space<smem>>) -> (i32, i32) {
    %c0_i32 = arith.constant 0 : i32
    %c0_i32_0 = arith.constant 0 : i32
    %c0_i32_1 = arith.constant 0 : i32
    return %c0_i32, %c0_i32_0 : i32, i32
  }
  func.func @transform_21(%arg0: i32, %arg1: memref<2x8xi32, #tpu.memory_space<smem>>) -> (i32, i32, i32) {
    %c0_i32 = arith.constant 0 : i32
    %c0_i32_0 = arith.constant 0 : i32
    %c0_i32_1 = arith.constant 0 : i32
    return %arg0, %c0_i32, %c0_i32_0 : i32, i32, i32
  }
}

</mosaic_0001>

<llo_original>
// kernel: tpu_custom_call.1
$region0: #{tpu_custom_call.1}
  #allocation0 [shape = 'u32[]', space=smem, size = 0x4, offset = 0x4, fixed_abs, tag = 'smem constant byte address 0x4 - core index']
  #allocation1 [shape = 'u32[144,128]{1,0:T(1,128)}', space=vmem, size = 0x12000, scoped, tag = 'internal scratch']
  #allocation2 [shape = 'f32[8,32]{1,0:T(8,128)}', space=vmem, size = 0x1000, scoped, tag = 'scratch operand']
  #allocation3 [shape = 's32[8]{0}', space=sflag, size = 0x20, scoped, tag = 'scratch operand']
  #allocation4 [shape = 's32[1]{0}', space=sflag, size = 0x4, scoped, tag = 'scoped memory for tpu_custom_call.1']
  #allocation5 [shape = 'u8[1024]{0}', space=smem, size = 0x400, scoped, tag = 'prefetched SMEM operand 0']
  #allocation8 [shape = 's32[]', space=sflag, size = 0x4, offset = 0, fixed_abs, tag = 'sflag constant byte address 0x0 - dummy sync flag']
  #allocation9 [shape = 's32[]', space=sflag, size = 0x4, offset = 0, fixed_abs, tag = 'sflag constant byte address 0x0 - dummy sync flag']
  #allocation10 [shape = 's32[]', space=sflag, size = 0x4, offset = 0, fixed_abs, tag = 'sflag constant byte address 0x0 - dummy sync flag']
  #allocation11 [shape = 's32[]', space=sflag, size = 0x4, offset = 0, fixed_abs, tag = 'sflag constant byte address 0x0 - dummy sync flag']
  #allocation12 [shape = 's32[]', space=sflag, size = 0x4, offset = 0, fixed_abs, tag = 'sflag constant byte address 0x0 - dummy sync flag']
  #allocation13 [shape = 's32[]', space=sflag, size = 0x4, offset = 0, fixed_abs, tag = 'sflag constant byte address 0x0 - dummy sync flag']
  #allocation14 [shape = 's32[]', space=sflag, size = 0x4, offset = 0, fixed_abs, tag = 'sflag constant byte address 0x0 - dummy sync flag']
  #allocation15 [shape = 's32[]', space=sflag, size = 0x4, offset = 0, fixed_abs, tag = 'sflag constant byte address 0x0 - dummy sync flag']
  %s0 = inlined_call_operand.vmem [shape: s32[2,8], index: 0, kind: input, shape index: {}]
  %s1 = inlined_call_operand.vmem [shape: f32[64,32], index: 1, kind: input, shape index: {}]
  %s2 = inlined_call_operand.vmem [shape: f32[8,32], index: 2, kind: input, shape index: {}]
  %s3 = inlined_call_operand.vmem [shape: f32[2,1,32], index: 3, kind: input, shape index: {}]
  %s4 = inlined_call_operand.vmem [shape: f32[2,1,32], index: 4, kind: input, shape index: {}]
  %s5 = inlined_call_operand.vmem [shape: bf16[2,4,32,8], index: 5, kind: input, shape index: {}]
  %s6 = inlined_call_operand.vmem [shape: bf16[2,4,32,8], index: 6, kind: input, shape index: {}]
  %s7 = inlined_call_operand.vmem [shape: bf16[2,4,32,8], index: 7, kind: input, shape index: {}]
  %s8 = inlined_call_operand.vmem [shape: f32[2,4,1,8], index: 8, kind: input, shape index: {}]
  %s9 = inlined_call_operand.vmem [shape: f32[2,4,1,8], index: 9, kind: input, shape index: {}]
  %s10 = inlined_call_operand.vmem [shape: f32[2,4,1,8], index: 10, kind: input, shape index: {}]
  %s11 = inlined_call_operand.vmem [shape: bf16[2,32,32], index: 11, kind: input, shape index: {}]
  %s12 = inlined_call_operand.vmem [shape: f32[2,1,32], index: 12, kind: input, shape index: {}]
  %s13 = inlined_call_operand.vmem [shape: f32[2,1,32], index: 13, kind: input, shape index: {}]
  %s14 = inlined_call_operand.vmem [shape: f32[2,1,32], index: 14, kind: input, shape index: {}]
  %s15 = inlined_call_operand.vmem [shape: bf16[2,32,64], index: 15, kind: input, shape index: {}]
  %s16 = inlined_call_operand.vmem [shape: f32[2,1,64], index: 16, kind: input, shape index: {}]
  %s17 = inlined_call_operand.vmem [shape: bf16[2,64,32], index: 17, kind: input, shape index: {}]
  %s18 = inlined_call_operand.vmem [shape: f32[2,1,32], index: 18, kind: input, shape index: {}]
  %s19 = inlined_call_operand.vmem [shape: f32[1,32], index: 19, kind: input, shape index: {}]
  %s20 = inlined_call_operand.vmem [shape: f32[1,32], index: 20, kind: input, shape index: {}]
  %s21 = inlined_call_operand.vmem [shape: bf16[32,64], index: 21, kind: input, shape index: {}]
  %s22 = inlined_call_operand.hbm [shape: f32[2,8,64], index: 22, kind: output, shape index: {}]
  %s23 = sld [smem:[#allocation0]]
  $region353: #{tpu_custom_call.1} parent=0
    _
  %s25 = ssub.s32 1, %s23
  %s26 = scalar_select 0, %s25, %s23
  %s27 = sshll.u32 %s0, 4
  %s28 = int_to_ptr.vmem [resolvable:$true] %s27
  %30 = dma.vmem_to_smem %s28, 32, [#allocation5], [#allocation4]
  %31 = dma.done [#allocation4], 32
  %32 = sfence
  $region1: #{tpu_custom_call.1} parent=0
    #allocation6 [shape = 'u8[8192]{0}', space=vmem, size = 0x2000, scoped, tag = 'output window, operand 0']
    #allocation7 [shape = 's32[2]{0}', space=sflag, size = 0x8, scoped, tag = 'scoped memory for tpu_custom_call.1']
    %33 = vsyncpa [#allocation7], 0
    %s34 = scalar_lea.sflag [#allocation7], 1
    %35 = vsyncpa %s34, 0
    loop: start=0, step=1, limit=4
    $region2: #{tpu_custom_call.1} parent=1 // loop_pre_header
      _
    $region3: #{tpu_custom_call.1} parent=1 // loop_header
      %s37 = sphi 0, %s41
      %p38 = scmp.ge.s32.totalorder %s37, 4
      %s45 = sphi 0, %s45
      %s47 = sphi 0, %s45
      %s48 = sphi 0, %s47
      %s62 = sphi 0, %s48
      %s66 = sphi 0, %s66
      %s68 = sphi 0, %s66
      %s69 = sphi 0, %s68
      %s83 = sphi 0, %s69
      %s87 = sphi 0, %s87
      %s89 = sphi 0, %s87
      %s90 = sphi 0, %s89
      %s104 = sphi 0, %s90
      %s108 = sphi 0, %s108
      %s110 = sphi 0, %s108
      %s111 = sphi 0, %s110
      %s125 = sphi 0, %s111
      %s129 = sphi 0, %s129
      %s131 = sphi 0, %s129
      %s132 = sphi 0, %s131
      %s146 = sphi 0, %s132
      %s150 = sphi 0, %s150
      %s152 = sphi 0, %s150
      %s153 = sphi 0, %s152
      %s167 = sphi 0, %s153
      %s171 = sphi 0, %s171
      %s173 = sphi 0, %s171
      %s174 = sphi 0, %s173
      %s188 = sphi 0, %s174
      %s192 = sphi 0, %s192
      %s194 = sphi 0, %s192
      %s195 = sphi 0, %s194
      %s209 = sphi 0, %s195
      %s213 = sphi 0, %s213
      %s215 = sphi 0, %s213
      %s216 = sphi 0, %s215
      %s230 = sphi 0, %s216
      %s234 = sphi 0, %s234
      %s236 = sphi 0, %s234
      %s237 = sphi 0, %s236
      %s251 = sphi 0, %s237
      %s255 = sphi 0, %s255
      %s257 = sphi 0, %s255
      %s258 = sphi 0, %s257
      %s272 = sphi 0, %s258
      %s276 = sphi 0, %s276
      %s278 = sphi 0, %s276
      %s279 = sphi 0, %s278
      %s293 = sphi 0, %s279
      %s297 = sphi 0, %s297
      %s299 = sphi 0, %s297
      %s300 = sphi 0, %s299
      %s314 = sphi 0, %s300
      %s318 = sphi 0, %s318
      %s320 = sphi 0, %s318
      %s321 = sphi 0, %s320
      %s335 = sphi 0, %s321
      %s339 = sphi 0, %s339
      %s341 = sphi 0, %s339
      %s342 = sphi 0, %s341
      %s356 = sphi 0, %s342
      %s360 = sphi 0, %s360
      %s362 = sphi 0, %s360
      %s363 = sphi 0, %s362
      %s377 = sphi 0, %s363
      %s381 = sphi 0, %s381
      %s383 = sphi 0, %s381
      %s384 = sphi 0, %s383
      %s398 = sphi 0, %s384
      %s402 = sphi 0, %s402
      %s404 = sphi 0, %s402
      %s405 = sphi 0, %s404
      %s419 = sphi 0, %s405
      %s423 = sphi 0, %s423
      %s425 = sphi 0, %s423
      %s426 = sphi 0, %s425
      %s440 = sphi 0, %s426
      %s444 = sphi 0, %s444
      %s446 = sphi 0, %s444
      %s447 = sphi 0, %s446
      %s461 = sphi 0, %s447
      %s467 = sphi 0, %s469
      %s470 = sphi 0, %s467
      %s471 = sphi 0, %s470
      %s487 = sphi 0, %s471
    $region4: #{tpu_custom_call.1} parent=1 // loop_header_branch
      %40 = sbr.rel (%p38) target = $region8
    $region5: #{tpu_custom_call.1} parent=1 // loop_body
      %s42 = ssub.s32 %s37, 1
      %s43 = ssub.s32 %s37, 2
      %s44 = sadd.s32 %s37, 1
      %s46 = sadd.s32 %s45, 1
      %p49 = scmp.eq.s32.totalorder %s37, 1
      %p50 = scmp.ne.s32.totalorder %s45, %s47
      %p51 = scmp.eq.s32.totalorder %s37, 0
      %p52 = por %p50, %p51
      %p53 = scmp.ne.s32.totalorder %s45, %s47
      %p54 = scmp.eq.s32.totalorder %s42, 1
      %p55 = por %p53, %p54
      %p56 = scmp.ne.s32.totalorder %s47, %s48
      %p57 = scmp.eq.s32.totalorder %s42, 0
      %p58 = por %p56, %p57
      %p59 = scmp.ne.s32.totalorder %s47, %s48
      %p60 = scmp.eq.s32.totalorder %s43, 1
      %p61 = por %p59, %p60
      %p63 = scmp.ne.s32.totalorder %s48, %s62
      %p64 = scmp.eq.s32.totalorder %s43, 0
      %p65 = por %p63, %p64
      %s67 = sadd.s32 %s66, 1
      %p70 = scmp.eq.s32.totalorder %s37, 1
      %p71 = scmp.ne.s32.totalorder %s66, %s68
      %p72 = scmp.eq.s32.totalorder %s37, 0
      %p73 = por %p71, %p72
      %p74 = scmp.ne.s32.totalorder %s66, %s68
      %p75 = scmp.eq.s32.totalorder %s42, 1
      %p76 = por %p74, %p75
      %p77 = scmp.ne.s32.totalorder %s68, %s69
      %p78 = scmp.eq.s32.totalorder %s42, 0
      %p79 = por %p77, %p78
      %p80 = scmp.ne.s32.totalorder %s68, %s69
      %p81 = scmp.eq.s32.totalorder %s43, 1
      %p82 = por %p80, %p81
      %p84 = scmp.ne.s32.totalorder %s69, %s83
      %p85 = scmp.eq.s32.totalorder %s43, 0
      %p86 = por %p84, %p85
      %s88 = sadd.s32 %s87, 1
      %p91 = scmp.eq.s32.totalorder %s37, 1
      %p92 = scmp.ne.s32.totalorder %s87, %s89
      %p93 = scmp.eq.s32.totalorder %s37, 0
      %p94 = por %p92, %p93
      %p95 = scmp.ne.s32.totalorder %s87, %s89
      %p96 = scmp.eq.s32.totalorder %s42, 1
      %p97 = por %p95, %p96
      %p98 = scmp.ne.s32.totalorder %s89, %s90
      %p99 = scmp.eq.s32.totalorder %s42, 0
      %p100 = por %p98, %p99
      %p101 = scmp.ne.s32.totalorder %s89, %s90
      %p102 = scmp.eq.s32.totalorder %s43, 1
      %p103 = por %p101, %p102
      %p105 = scmp.ne.s32.totalorder %s90, %s104
      %p106 = scmp.eq.s32.totalorder %s43, 0
      %p107 = por %p105, %p106
      %s109 = sadd.s32 %s108, 1
      %p112 = scmp.eq.s32.totalorder %s37, 1
      %p113 = scmp.ne.s32.totalorder %s108, %s110
      %p114 = scmp.eq.s32.totalorder %s37, 0
      %p115 = por %p113, %p114
      %p116 = scmp.ne.s32.totalorder %s108, %s110
      %p117 = scmp.eq.s32.totalorder %s42, 1
      %p118 = por %p116, %p117
      %p119 = scmp.ne.s32.totalorder %s110, %s111
      %p120 = scmp.eq.s32.totalorder %s42, 0
      %p121 = por %p119, %p120
      %p122 = scmp.ne.s32.totalorder %s110, %s111
      %p123 = scmp.eq.s32.totalorder %s43, 1
      %p124 = por %p122, %p123
      %p126 = scmp.ne.s32.totalorder %s111, %s125
      %p127 = scmp.eq.s32.totalorder %s43, 0
      %p128 = por %p126, %p127
      %s130 = sadd.s32 %s129, 1
      %p133 = scmp.eq.s32.totalorder %s37, 1
      %p134 = scmp.ne.s32.totalorder %s129, %s131
      %p135 = scmp.eq.s32.totalorder %s37, 0
      %p136 = por %p134, %p135
      %p137 = scmp.ne.s32.totalorder %s129, %s131
      %p138 = scmp.eq.s32.totalorder %s42, 1
      %p139 = por %p137, %p138
      %p140 = scmp.ne.s32.totalorder %s131, %s132
      %p141 = scmp.eq.s32.totalorder %s42, 0
      %p142 = por %p140, %p141
      %p143 = scmp.ne.s32.totalorder %s131, %s132
      %p144 = scmp.eq.s32.totalorder %s43, 1
      %p145 = por %p143, %p144
      %p147 = scmp.ne.s32.totalorder %s132, %s146
      %p148 = scmp.eq.s32.totalorder %s43, 0
      %p149 = por %p147, %p148
      %s151 = sadd.s32 %s150, 1
      %p154 = scmp.eq.s32.totalorder %s37, 1
      %p155 = scmp.ne.s32.totalorder %s150, %s152
      %p156 = scmp.eq.s32.totalorder %s37, 0
      %p157 = por %p155, %p156
      %p158 = scmp.ne.s32.totalorder %s150, %s152
      %p159 = scmp.eq.s32.totalorder %s42, 1
      %p160 = por %p158, %p159
      %p161 = scmp.ne.s32.totalorder %s152, %s153
      %p162 = scmp.eq.s32.totalorder %s42, 0
      %p163 = por %p161, %p162
      %p164 = scmp.ne.s32.totalorder %s152, %s153
      %p165 = scmp.eq.s32.totalorder %s43, 1
      %p166 = por %p164, %p165
      %p168 = scmp.ne.s32.totalorder %s153, %s167
      %p169 = scmp.eq.s32.totalorder %s43, 0
      %p170 = por %p168, %p169
      %s172 = sadd.s32 %s171, 1
      %p175 = scmp.eq.s32.totalorder %s37, 1
      %p176 = scmp.ne.s32.totalorder %s171, %s173
      %p177 = scmp.eq.s32.totalorder %s37, 0
      %p178 = por %p176, %p177
      %p179 = scmp.ne.s32.totalorder %s171, %s173
      %p180 = scmp.eq.s32.totalorder %s42, 1
      %p181 = por %p179, %p180
      %p182 = scmp.ne.s32.totalorder %s173, %s174
      %p183 = scmp.eq.s32.totalorder %s42, 0
      %p184 = por %p182, %p183
      %p185 = scmp.ne.s32.totalorder %s173, %s174
      %p186 = scmp.eq.s32.totalorder %s43, 1
      %p187 = por %p185, %p186
      %p189 = scmp.ne.s32.totalorder %s174, %s188
      %p190 = scmp.eq.s32.totalorder %s43, 0
      %p191 = por %p189, %p190
      %s193 = sadd.s32 %s192, 1
      %p196 = scmp.eq.s32.totalorder %s37, 1
      %p197 = scmp.ne.s32.totalorder %s192, %s194
      %p198 = scmp.eq.s32.totalorder %s37, 0
      %p199 = por %p197, %p198
      %p200 = scmp.ne.s32.totalorder %s192, %s194
      %p201 = scmp.eq.s32.totalorder %s42, 1
      %p202 = por %p200, %p201
      %p203 = scmp.ne.s32.totalorder %s194, %s195
      %p204 = scmp.eq.s32.totalorder %s42, 0
      %p205 = por %p203, %p204
      %p206 = scmp.ne.s32.totalorder %s194, %s195
      %p207 = scmp.eq.s32.totalorder %s43, 1
      %p208 = por %p206, %p207
      %p210 = scmp.ne.s32.totalorder %s195, %s209
      %p211 = scmp.eq.s32.totalorder %s43, 0
      %p212 = por %p210, %p211
      %s214 = sadd.s32 %s213, 1
      %p217 = scmp.eq.s32.totalorder %s37, 1
      %p218 = scmp.ne.s32.totalorder %s213, %s215
      %p219 = scmp.eq.s32.totalorder %s37, 0
      %p220 = por %p218, %p219
      %p221 = scmp.ne.s32.totalorder %s213, %s215
      %p222 = scmp.eq.s32.totalorder %s42, 1
      %p223 = por %p221, %p222
      %p224 = scmp.ne.s32.totalorder %s215, %s216
      %p225 = scmp.eq.s32.totalorder %s42, 0
      %p226 = por %p224, %p225
      %p227 = scmp.ne.s32.totalorder %s215, %s216
      %p228 = scmp.eq.s32.totalorder %s43, 1
      %p229 = por %p227, %p228
      %p231 = scmp.ne.s32.totalorder %s216, %s230
      %p232 = scmp.eq.s32.totalorder %s43, 0
      %p233 = por %p231, %p232
      %s235 = sadd.s32 %s234, 1
      %p238 = scmp.eq.s32.totalorder %s37, 1
      %p239 = scmp.ne.s32.totalorder %s234, %s236
      %p240 = scmp.eq.s32.totalorder %s37, 0
      %p241 = por %p239, %p240
      %p242 = scmp.ne.s32.totalorder %s234, %s236
      %p243 = scmp.eq.s32.totalorder %s42, 1
      %p244 = por %p242, %p243
      %p245 = scmp.ne.s32.totalorder %s236, %s237
      %p246 = scmp.eq.s32.totalorder %s42, 0
      %p247 = por %p245, %p246
      %p248 = scmp.ne.s32.totalorder %s236, %s237
      %p249 = scmp.eq.s32.totalorder %s43, 1
      %p250 = por %p248, %p249
      %p252 = scmp.ne.s32.totalorder %s237, %s251
      %p253 = scmp.eq.s32.totalorder %s43, 0
      %p254 = por %p252, %p253
      %s256 = sadd.s32 %s255, 1
      %p259 = scmp.eq.s32.totalorder %s37, 1
      %p260 = scmp.ne.s32.totalorder %s255, %s257
      %p261 = scmp.eq.s32.totalorder %s37, 0
      %p262 = por %p260, %p261
      %p263 = scmp.ne.s32.totalorder %s255, %s257
      %p264 = scmp.eq.s32.totalorder %s42, 1
      %p265 = por %p263, %p264
      %p266 = scmp.ne.s32.totalorder %s257, %s258
      %p267 = scmp.eq.s32.totalorder %s42, 0
      %p268 = por %p266, %p267
      %p269 = scmp.ne.s32.totalorder %s257, %s258
      %p270 = scmp.eq.s32.totalorder %s43, 1
      %p271 = por %p269, %p270
      %p273 = scmp.ne.s32.totalorder %s258, %s272
      %p274 = scmp.eq.s32.totalorder %s43, 0
      %p275 = por %p273, %p274
      %s277 = sadd.s32 %s276, 1
      %p280 = scmp.eq.s32.totalorder %s37, 1
      %p281 = scmp.ne.s32.totalorder %s276, %s278
      %p282 = scmp.eq.s32.totalorder %s37, 0
      %p283 = por %p281, %p282
      %p284 = scmp.ne.s32.totalorder %s276, %s278
      %p285 = scmp.eq.s32.totalorder %s42, 1
      %p286 = por %p284, %p285
      %p287 = scmp.ne.s32.totalorder %s278, %s279
      %p288 = scmp.eq.s32.totalorder %s42, 0
      %p289 = por %p287, %p288
      %p290 = scmp.ne.s32.totalorder %s278, %s279
      %p291 = scmp.eq.s32.totalorder %s43, 1
      %p292 = por %p290, %p291
      %p294 = scmp.ne.s32.totalorder %s279, %s293
      %p295 = scmp.eq.s32.totalorder %s43, 0
      %p296 = por %p294, %p295
      %s298 = sadd.s32 %s297, 1
      %p301 = scmp.eq.s32.totalorder %s37, 1
      %p302 = scmp.ne.s32.totalorder %s297, %s299
      %p303 = scmp.eq.s32.totalorder %s37, 0
      %p304 = por %p302, %p303
      %p305 = scmp.ne.s32.totalorder %s297, %s299
      %p306 = scmp.eq.s32.totalorder %s42, 1
      %p307 = por %p305, %p306
      %p308 = scmp.ne.s32.totalorder %s299, %s300
      %p309 = scmp.eq.s32.totalorder %s42, 0
      %p310 = por %p308, %p309
      %p311 = scmp.ne.s32.totalorder %s299, %s300
      %p312 = scmp.eq.s32.totalorder %s43, 1
      %p313 = por %p311, %p312
      %p315 = scmp.ne.s32.totalorder %s300, %s314
      %p316 = scmp.eq.s32.totalorder %s43, 0
      %p317 = por %p315, %p316
      %s319 = sadd.s32 %s318, 1
      %p322 = scmp.eq.s32.totalorder %s37, 1
      %p323 = scmp.ne.s32.totalorder %s318, %s320
      %p324 = scmp.eq.s32.totalorder %s37, 0
      %p325 = por %p323, %p324
      %p326 = scmp.ne.s32.totalorder %s318, %s320
      %p327 = scmp.eq.s32.totalorder %s42, 1
      %p328 = por %p326, %p327
      %p329 = scmp.ne.s32.totalorder %s320, %s321
      %p330 = scmp.eq.s32.totalorder %s42, 0
      %p331 = por %p329, %p330
      %p332 = scmp.ne.s32.totalorder %s320, %s321
      %p333 = scmp.eq.s32.totalorder %s43, 1
      %p334 = por %p332, %p333
      %p336 = scmp.ne.s32.totalorder %s321, %s335
      %p337 = scmp.eq.s32.totalorder %s43, 0
      %p338 = por %p336, %p337
      %s340 = sadd.s32 %s339, 1
      %p343 = scmp.eq.s32.totalorder %s37, 1
      %p344 = scmp.ne.s32.totalorder %s339, %s341
      %p345 = scmp.eq.s32.totalorder %s37, 0
      %p346 = por %p344, %p345
      %p347 = scmp.ne.s32.totalorder %s339, %s341
      %p348 = scmp.eq.s32.totalorder %s42, 1
      %p349 = por %p347, %p348
      %p350 = scmp.ne.s32.totalorder %s341, %s342
      %p351 = scmp.eq.s32.totalorder %s42, 0
      %p352 = por %p350, %p351
      %p353 = scmp.ne.s32.totalorder %s341, %s342
      %p354 = scmp.eq.s32.totalorder %s43, 1
      %p355 = por %p353, %p354
      %p357 = scmp.ne.s32.totalorder %s342, %s356
      %p358 = scmp.eq.s32.totalorder %s43, 0
      %p359 = por %p357, %p358
      %s361 = sadd.s32 %s360, 1
      %p364 = scmp.eq.s32.totalorder %s37, 1
      %p365 = scmp.ne.s32.totalorder %s360, %s362
      %p366 = scmp.eq.s32.totalorder %s37, 0
      %p367 = por %p365, %p366
      %p368 = scmp.ne.s32.totalorder %s360, %s362
      %p369 = scmp.eq.s32.totalorder %s42, 1
      %p370 = por %p368, %p369
      %p371 = scmp.ne.s32.totalorder %s362, %s363
      %p372 = scmp.eq.s32.totalorder %s42, 0
      %p373 = por %p371, %p372
      %p374 = scmp.ne.s32.totalorder %s362, %s363
      %p375 = scmp.eq.s32.totalorder %s43, 1
      %p376 = por %p374, %p375
      %p378 = scmp.ne.s32.totalorder %s363, %s377
      %p379 = scmp.eq.s32.totalorder %s43, 0
      %p380 = por %p378, %p379
      %s382 = sadd.s32 %s381, 1
      %p385 = scmp.eq.s32.totalorder %s37, 1
      %p386 = scmp.ne.s32.totalorder %s381, %s383
      %p387 = scmp.eq.s32.totalorder %s37, 0
      %p388 = por %p386, %p387
      %p389 = scmp.ne.s32.totalorder %s381, %s383
      %p390 = scmp.eq.s32.totalorder %s42, 1
      %p391 = por %p389, %p390
      %p392 = scmp.ne.s32.totalorder %s383, %s384
      %p393 = scmp.eq.s32.totalorder %s42, 0
      %p394 = por %p392, %p393
      %p395 = scmp.ne.s32.totalorder %s383, %s384
      %p396 = scmp.eq.s32.totalorder %s43, 1
      %p397 = por %p395, %p396
      %p399 = scmp.ne.s32.totalorder %s384, %s398
      %p400 = scmp.eq.s32.totalorder %s43, 0
      %p401 = por %p399, %p400
      %s403 = sadd.s32 %s402, 1
      %p406 = scmp.eq.s32.totalorder %s37, 1
      %p407 = scmp.ne.s32.totalorder %s402, %s404
      %p408 = scmp.eq.s32.totalorder %s37, 0
      %p409 = por %p407, %p408
      %p410 = scmp.ne.s32.totalorder %s402, %s404
      %p411 = scmp.eq.s32.totalorder %s42, 1
      %p412 = por %p410, %p411
      %p413 = scmp.ne.s32.totalorder %s404, %s405
      %p414 = scmp.eq.s32.totalorder %s42, 0
      %p415 = por %p413, %p414
      %p416 = scmp.ne.s32.totalorder %s404, %s405
      %p417 = scmp.eq.s32.totalorder %s43, 1
      %p418 = por %p416, %p417
      %p420 = scmp.ne.s32.totalorder %s405, %s419
      %p421 = scmp.eq.s32.totalorder %s43, 0
      %p422 = por %p420, %p421
      %s424 = sadd.s32 %s423, 1
      %p427 = scmp.eq.s32.totalorder %s37, 1
      %p428 = scmp.ne.s32.totalorder %s423, %s425
      %p429 = scmp.eq.s32.totalorder %s37, 0
      %p430 = por %p428, %p429
      %p431 = scmp.ne.s32.totalorder %s423, %s425
      %p432 = scmp.eq.s32.totalorder %s42, 1
      %p433 = por %p431, %p432
      %p434 = scmp.ne.s32.totalorder %s425, %s426
      %p435 = scmp.eq.s32.totalorder %s42, 0
      %p436 = por %p434, %p435
      %p437 = scmp.ne.s32.totalorder %s425, %s426
      %p438 = scmp.eq.s32.totalorder %s43, 1
      %p439 = por %p437, %p438
      %p441 = scmp.ne.s32.totalorder %s426, %s440
      %p442 = scmp.eq.s32.totalorder %s43, 0
      %p443 = por %p441, %p442
      %s445 = sadd.s32 %s444, 1
      %p448 = scmp.eq.s32.totalorder %s37, 1
      %p449 = scmp.ne.s32.totalorder %s444, %s446
      %p450 = scmp.eq.s32.totalorder %s37, 0
      %p451 = por %p449, %p450
      %p452 = scmp.ne.s32.totalorder %s444, %s446
      %p453 = scmp.eq.s32.totalorder %s42, 1
      %p454 = por %p452, %p453
      %p455 = scmp.ne.s32.totalorder %s446, %s447
      %p456 = scmp.eq.s32.totalorder %s42, 0
      %p457 = por %p455, %p456
      %p458 = scmp.ne.s32.totalorder %s446, %s447
      %p459 = scmp.eq.s32.totalorder %s43, 1
      %p460 = por %p458, %p459
      %p462 = scmp.ne.s32.totalorder %s447, %s461
      %p463 = scmp.eq.s32.totalorder %s43, 0
      %p464 = por %p462, %p463
      %s465 = ssub.s32 %s37, %s44
      %p466 = scmp.eq.s32.totalorder %s465, 0
      %s468 = sadd.s32 %s467, 1
      %s469 = scalar_select %p466, %s467, %s468
      %p472 = pneg %p466
      %p473 = scmp.eq.s32.totalorder %s37, 1
      %p474 = por %p472, %p473
      %p475 = scmp.ne.s32.totalorder %s467, %s470
      %p476 = scmp.eq.s32.totalorder %s37, 0
      %p477 = por %p475, %p476
      %p478 = scmp.ne.s32.totalorder %s467, %s470
      %p479 = scmp.eq.s32.totalorder %s42, 1
      %p480 = por %p478, %p479
      %p481 = scmp.ne.s32.totalorder %s470, %s471
      %p482 = scmp.eq.s32.totalorder %s42, 0
      %p483 = por %p481, %p482
      %p484 = scmp.ne.s32.totalorder %s470, %s471
      %p485 = scmp.eq.s32.totalorder %s43, 1
      %p486 = por %p484, %p485
      %p488 = scmp.ne.s32.totalorder %s471, %s487
      %p489 = scmp.eq.s32.totalorder %s43, 0
      %p490 = por %p488, %p489
      %p491 = scmp.le.s32.totalorder 1, %s37
      %p492 = scmp.lt.s32.totalorder %s37, 3
      %p493 = pnand %p491, %p492
      %p494 = pneg %p493
      // Predicated region
      $region9: #{tpu_custom_call.1} parent=5 // pred_check
        _
      $region10: #{tpu_custom_call.1} parent=5 // pred_check_branch
        %496 = sbr.rel (%p493) target = $region12
      $region11: #{tpu_custom_call.1} parent=5 // pred_region
        %s497 = ssub.s32 %s37, 1
        // Predicated region
        $region13: #{tpu_custom_call.1} parent=11 // pred_check
          %p498 = pneg %p58
        $region14: #{tpu_custom_call.1} parent=11 // pred_check_branch
          %500 = sbr.rel (%p498) target = $region16
        $region15: #{tpu_custom_call.1} parent=11 // pred_region
          _
        $region16: #{tpu_custom_call.1} parent=11 // pred_fallthru
          _
        // Predicated region
        $region17: #{tpu_custom_call.1} parent=11 // pred_check
          %p501 = pneg %p79
        $region18: #{tpu_custom_call.1} parent=11 // pred_check_branch
          %503 = sbr.rel (%p501) target = $region20
        $region19: #{tpu_custom_call.1} parent=11 // pred_region
          _
        $region20: #{tpu_custom_call.1} parent=11 // pred_fallthru
          _
        // Predicated region
        $region21: #{tpu_custom_call.1} parent=11 // pred_check
          %p504 = pneg %p100
        $region22: #{tpu_custom_call.1} parent=11 // pred_check_branch
          %506 = sbr.rel (%p504) target = $region24
        $region23: #{tpu_custom_call.1} parent=11 // pred_region
          _
        $region24: #{tpu_custom_call.1} parent=11 // pred_fallthru
          _
        // Predicated region
        $region25: #{tpu_custom_call.1} parent=11 // pred_check
          %p507 = pneg %p121
        $region26: #{tpu_custom_call.1} parent=11 // pred_check_branch
          %509 = sbr.rel (%p507) target = $region28
        $region27: #{tpu_custom_call.1} parent=11 // pred_region
          _
        $region28: #{tpu_custom_call.1} parent=11 // pred_fallthru
          _
        // Predicated region
        $region29: #{tpu_custom_call.1} parent=11 // pred_check
          %p510 = pneg %p142
        $region30: #{tpu_custom_call.1} parent=11 // pred_check_branch
          %512 = sbr.rel (%p510) target = $region32
        $region31: #{tpu_custom_call.1} parent=11 // pred_region
          _
        $region32: #{tpu_custom_call.1} parent=11 // pred_fallthru
          _
        // Predicated region
        $region33: #{tpu_custom_call.1} parent=11 // pred_check
          %p513 = pneg %p163
        $region34: #{tpu_custom_call.1} parent=11 // pred_check_branch
          %515 = sbr.rel (%p513) target = $region36
        $region35: #{tpu_custom_call.1} parent=11 // pred_region
          _
        $region36: #{tpu_custom_call.1} parent=11 // pred_fallthru
          _
        // Predicated region
        $region37: #{tpu_custom_call.1} parent=11 // pred_check
          %p516 = pneg %p184
        $region38: #{tpu_custom_call.1} parent=11 // pred_check_branch
          %518 = sbr.rel (%p516) target = $region40
        $region39: #{tpu_custom_call.1} parent=11 // pred_region
          _
        $region40: #{tpu_custom_call.1} parent=11 // pred_fallthru
          _
        // Predicated region
        $region41: #{tpu_custom_call.1} parent=11 // pred_check
          %p519 = pneg %p205
        $region42: #{tpu_custom_call.1} parent=11 // pred_check_branch
          %521 = sbr.rel (%p519) target = $region44
        $region43: #{tpu_custom_call.1} parent=11 // pred_region
          _
        $region44: #{tpu_custom_call.1} parent=11 // pred_fallthru
          _
        // Predicated region
        $region45: #{tpu_custom_call.1} parent=11 // pred_check
          %p522 = pneg %p226
        $region46: #{tpu_custom_call.1} parent=11 // pred_check_branch
          %524 = sbr.rel (%p522) target = $region48
        $region47: #{tpu_custom_call.1} parent=11 // pred_region
          _
        $region48: #{tpu_custom_call.1} parent=11 // pred_fallthru
          _
        // Predicated region
        $region49: #{tpu_custom_call.1} parent=11 // pred_check
          %p525 = pneg %p247
        $region50: #{tpu_custom_call.1} parent=11 // pred_check_branch
          %527 = sbr.rel (%p525) target = $region52
        $region51: #{tpu_custom_call.1} parent=11 // pred_region
          _
        $region52: #{tpu_custom_call.1} parent=11 // pred_fallthru
          _
        // Predicated region
        $region53: #{tpu_custom_call.1} parent=11 // pred_check
          %p528 = pneg %p268
        $region54: #{tpu_custom_call.1} parent=11 // pred_check_branch
          %530 = sbr.rel (%p528) target = $region56
        $region55: #{tpu_custom_call.1} parent=11 // pred_region
          _
        $region56: #{tpu_custom_call.1} parent=11 // pred_fallthru
          _
        // Predicated region
        $region57: #{tpu_custom_call.1} parent=11 // pred_check
          %p531 = pneg %p289
        $region58: #{tpu_custom_call.1} parent=11 // pred_check_branch
          %533 = sbr.rel (%p531) target = $region60
        $region59: #{tpu_custom_call.1} parent=11 // pred_region
          _
        $region60: #{tpu_custom_call.1} parent=11 // pred_fallthru
          _
        // Predicated region
        $region61: #{tpu_custom_call.1} parent=11 // pred_check
          %p534 = pneg %p310
        $region62: #{tpu_custom_call.1} parent=11 // pred_check_branch
          %536 = sbr.rel (%p534) target = $region64
        $region63: #{tpu_custom_call.1} parent=11 // pred_region
          _
        $region64: #{tpu_custom_call.1} parent=11 // pred_fallthru
          _
        // Predicated region
        $region65: #{tpu_custom_call.1} parent=11 // pred_check
          %p537 = pneg %p331
        $region66: #{tpu_custom_call.1} parent=11 // pred_check_branch
          %539 = sbr.rel (%p537) target = $region68
        $region67: #{tpu_custom_call.1} parent=11 // pred_region
          _
        $region68: #{tpu_custom_call.1} parent=11 // pred_fallthru
          _
        // Predicated region
        $region69: #{tpu_custom_call.1} parent=11 // pred_check
          %p540 = pneg %p352
        $region70: #{tpu_custom_call.1} parent=11 // pred_check_branch
          %542 = sbr.rel (%p540) target = $region72
        $region71: #{tpu_custom_call.1} parent=11 // pred_region
          _
        $region72: #{tpu_custom_call.1} parent=11 // pred_fallthru
          _
        // Predicated region
        $region73: #{tpu_custom_call.1} parent=11 // pred_check
          %p543 = pneg %p373
        $region74: #{tpu_custom_call.1} parent=11 // pred_check_branch
          %545 = sbr.rel (%p543) target = $region76
        $region75: #{tpu_custom_call.1} parent=11 // pred_region
          _
        $region76: #{tpu_custom_call.1} parent=11 // pred_fallthru
          _
        // Predicated region
        $region77: #{tpu_custom_call.1} parent=11 // pred_check
          %p546 = pneg %p394
        $region78: #{tpu_custom_call.1} parent=11 // pred_check_branch
          %548 = sbr.rel (%p546) target = $region80
        $region79: #{tpu_custom_call.1} parent=11 // pred_region
          _
        $region80: #{tpu_custom_call.1} parent=11 // pred_fallthru
          _
        // Predicated region
        $region81: #{tpu_custom_call.1} parent=11 // pred_check
          %p549 = pneg %p415
        $region82: #{tpu_custom_call.1} parent=11 // pred_check_branch
          %551 = sbr.rel (%p549) target = $region84
        $region83: #{tpu_custom_call.1} parent=11 // pred_region
          _
        $region84: #{tpu_custom_call.1} parent=11 // pred_fallthru
          _
        // Predicated region
        $region85: #{tpu_custom_call.1} parent=11 // pred_check
          %p552 = pneg %p436
        $region86: #{tpu_custom_call.1} parent=11 // pred_check_branch
          %554 = sbr.rel (%p552) target = $region88
        $region87: #{tpu_custom_call.1} parent=11 // pred_region
          _
        $region88: #{tpu_custom_call.1} parent=11 // pred_fallthru
          _
        // Predicated region
        $region89: #{tpu_custom_call.1} parent=11 // pred_check
          %p555 = pneg %p457
        $region90: #{tpu_custom_call.1} parent=11 // pred_check_branch
          %557 = sbr.rel (%p555) target = $region92
        $region91: #{tpu_custom_call.1} parent=11 // pred_region
          _
        $region92: #{tpu_custom_call.1} parent=11 // pred_fallthru
          _
      $region12: #{tpu_custom_call.1} parent=5 // pred_fallthru
        _
      %p558 = scmp.lt.s32.totalorder %s37, 2
      // Predicated region
      $region93: #{tpu_custom_call.1} parent=5 // pred_check
        %p559 = pneg %p558
      $region94: #{tpu_custom_call.1} parent=5 // pred_check_branch
        %561 = sbr.rel (%p559) target = $region96
      $region95: #{tpu_custom_call.1} parent=5 // pred_region
        _
      $region96: #{tpu_custom_call.1} parent=5 // pred_fallthru
        _
      %p562 = scmp.le.s32.totalorder 1, %s37
      %p563 = scmp.lt.s32.totalorder %s37, 3
      %p564 = pnand %p562, %p563
      %p565 = pneg %p564
      // Predicated region
      $region97: #{tpu_custom_call.1} parent=5 // pred_check
        _
      $region98: #{tpu_custom_call.1} parent=5 // pred_check_branch
        %567 = sbr.rel (%p564) target = $region100
      $region99: #{tpu_custom_call.1} parent=5 // pred_region
        %s568 = ssub.s32 %s37, 1
        %p569 = pneg %p58
        %p570 = pneg %p55
        %p571 = pneg %p79
        %p572 = pneg %p76
        %p573 = pneg %p100
        %p574 = pneg %p97
        %p575 = pneg %p121
        %p576 = pneg %p118
        %p577 = pneg %p142
        %p578 = pneg %p139
        %p579 = pneg %p163
        %p580 = pneg %p160
        %p581 = pneg %p184
        %p582 = pneg %p181
        %p583 = pneg %p205
        %p584 = pneg %p202
        %p585 = pneg %p226
        %p586 = pneg %p223
        %p587 = pneg %p247
        %p588 = pneg %p244
        %p589 = pneg %p268
        %p590 = pneg %p265
        %p591 = pneg %p289
        %p592 = pneg %p286
        %p593 = pneg %p310
        %p594 = pneg %p307
        %p595 = pneg %p331
        %p596 = pneg %p328
        %p597 = pneg %p352
        %p598 = pneg %p349
        %p599 = pneg %p373
        %p600 = pneg %p370
        %p601 = pneg %p394
        %p602 = pneg %p391
        %p603 = pneg %p415
        %p604 = pneg %p412
        %p605 = pneg %p436
        %p606 = pneg %p433
        %p607 = pneg %p457
        %p608 = pneg %p454
        %p609 = pneg %p483
        %p610 = pneg %p480
        %s611 = sand.u32 %s470, 1
        %s612 = scalar_lea.sflag [#allocation7], %s611
        %s613 = sand.u32 %s470, 1
        %s614 = smul.addr %s613, 8
        %s615 = scalar_lea.vmem [#allocation6], %s614
        %s617 = smul.u32 %s42, 128
        %s618 = sld [smem:[#allocation5 + %s617]]
        %s619 = scalar_lea.vmem %s1, %s618
        %p621 = scmp.lt.u32.totalorder 1, 8
        %p622 = pneg %p621
        // Predicated region
        $region101: #{tpu_custom_call.1} parent=99 // pred_check
          _
        $region102: #{tpu_custom_call.1} parent=99 // pred_check_branch
          %624 = sbr.rel (%p621) target = $region104
        $region103: #{tpu_custom_call.1} parent=99 // pred_region
          %s639 = sand.u32 1, 7
          %p640 = scmp.eq.s32.totalorder %s639, 0
          %p641 = pneg %p640
          // Predicated region
          $region116: #{tpu_custom_call.1} parent=103 // pred_check
            _
          $region117: #{tpu_custom_call.1} parent=103 // pred_check_branch
            %643 = sbr.rel (%p640) target = $region119
          $region118: #{tpu_custom_call.1} parent=103 // pred_region
            %s644 = sand.u32 1, 7
            %s645 = ssub.s32 1, %s644
            %s646 = scalar_lea.vmem %s619, %s645
            %s647 = ssub.s32 1, %s644
            %s648 = scalar_lea.vmem [#allocation2], %s647
            %s649 = sshllo.u32 0, %s644
            loop: start=0, step=1, limit=1
            $region120: #{tpu_custom_call.1} parent=118 // loop_pre_header
              _
            $region121: #{tpu_custom_call.1} parent=118 // loop_header
              %s651 = sphi 0, %s655
              %p652 = scmp.ge.s32.totalorder %s651, 1
              %s656 = sphi %s646, %s646
              %s657 = sphi %s648, %s648
            $region122: #{tpu_custom_call.1} parent=118 // loop_header_branch
              %654 = sbr.rel (%p652) target = $region126
            $region123: #{tpu_custom_call.1} parent=118 // loop_body
              %v658 = vld [vmem:[%s656] sm:%s649]
              %659 = vst [vmem:[%s657] sm:%s649] %v658
            $region124: #{tpu_custom_call.1} parent=118 // loop_footer
              %s655 = sadd.s32 1, %s651
            $region125: #{tpu_custom_call.1} parent=118 // loop_footer_branch
              %650 = sbr.rel target = $region121
            $region126: #{tpu_custom_call.1} parent=118 // loop_exit
              _
          $region119: #{tpu_custom_call.1} parent=103 // pred_fallthru
            _
        $region104: #{tpu_custom_call.1} parent=99 // pred_fallthru
          _
        // Predicated region
        $region105: #{tpu_custom_call.1} parent=99 // pred_check
          %p625 = pneg %p621
        $region106: #{tpu_custom_call.1} parent=99 // pred_check_branch
          %627 = sbr.rel (%p625) target = $region108
        $region107: #{tpu_custom_call.1} parent=99 // pred_region
          %s628 = sshllo.u32 0, 1
          loop: start=0, step=1, limit=1
          $region109: #{tpu_custom_call.1} parent=107 // loop_pre_header
            _
          $region110: #{tpu_custom_call.1} parent=107 // loop_header
            %s630 = sphi 0, %s634
            %p631 = scmp.ge.s32.totalorder %s630, 1
            %s635 = sphi %s619, %s619
            %s636 = sphi [#allocation2], [#allocation2]
          $region111: #{tpu_custom_call.1} parent=107 // loop_header_branch
            %633 = sbr.rel (%p631) target = $region115
          $region112: #{tpu_custom_call.1} parent=107 // loop_body
            %v637 = vld [vmem:[%s635] sm:%s628]
            %638 = vst [vmem:[%s636] sm:%s628] %v637
          $region113: #{tpu_custom_call.1} parent=107 // loop_footer
            %s634 = sadd.s32 1, %s630
          $region114: #{tpu_custom_call.1} parent=107 // loop_footer_branch
            %629 = sbr.rel target = $region110
          $region115: #{tpu_custom_call.1} parent=107 // loop_exit
            _
        $region108: #{tpu_custom_call.1} parent=99 // pred_fallthru
          _
        // Predicated region
        $region127: #{tpu_custom_call.1} parent=99 // pred_check
          _
        $region128: #{tpu_custom_call.1} parent=99 // pred_check_branch
          %662 = sbr.rel (0) target = $region130
        $region129: #{tpu_custom_call.1} parent=99 // pred_region
          %663 = vsyncadd [#allocation3], 16
        $region130: #{tpu_custom_call.1} parent=99 // pred_fallthru
          _
        %s664 = sadd.s32 %s617, 1
        %s665 = sld [smem:[#allocation5 + %s664]]
        %s666 = scalar_lea.vmem %s1, %s665
        %s667 = scalar_lea.vmem [#allocation2], 1
        %s668 = scalar_lea.sflag [#allocation3], 1
        %p670 = scmp.lt.u32.totalorder 1, 8
        %p671 = pneg %p670
        // Predicated region
        $region131: #{tpu_custom_call.1} parent=99 // pred_check
          _
        $region132: #{tpu_custom_call.1} parent=99 // pred_check_branch
          %673 = sbr.rel (%p670) target = $region134
        $region133: #{tpu_custom_call.1} parent=99 // pred_region
          %s688 = sand.u32 1, 7
          %p689 = scmp.eq.s32.totalorder %s688, 0
          %p690 = pneg %p689
          // Predicated region
          $region146: #{tpu_custom_call.1} parent=133 // pred_check
            _
          $region147: #{tpu_custom_call.1} parent=133 // pred_check_branch
            %692 = sbr.rel (%p689) target = $region149
          $region148: #{tpu_custom_call.1} parent=133 // pred_region
            %s693 = sand.u32 1, 7
            %s694 = ssub.s32 1, %s693
            %s695 = scalar_lea.vmem %s666, %s694
            %s696 = ssub.s32 1, %s693
            %s697 = scalar_lea.vmem %s667, %s696 [#allocation2]
            %s698 = sshllo.u32 0, %s693
            loop: start=0, step=1, limit=1
            $region150: #{tpu_custom_call.1} parent=148 // loop_pre_header
              _
            $region151: #{tpu_custom_call.1} parent=148 // loop_header
              %s700 = sphi 0, %s704
              %p701 = scmp.ge.s32.totalorder %s700, 1
              %s705 = sphi %s695, %s695
              %s706 = sphi %s697, %s697
            $region152: #{tpu_custom_call.1} parent=148 // loop_header_branch
              %703 = sbr.rel (%p701) target = $region156
            $region153: #{tpu_custom_call.1} parent=148 // loop_body
              %v707 = vld [vmem:[%s705] sm:%s698]
              %708 = vst [vmem:[%s706] sm:%s698] %v707
            $region154: #{tpu_custom_call.1} parent=148 // loop_footer
              %s704 = sadd.s32 1, %s700
            $region155: #{tpu_custom_call.1} parent=148 // loop_footer_branch
              %699 = sbr.rel target = $region151
            $region156: #{tpu_custom_call.1} parent=148 // loop_exit
              _
          $region149: #{tpu_custom_call.1} parent=133 // pred_fallthru
            _
        $region134: #{tpu_custom_call.1} parent=99 // pred_fallthru
          _
        // Predicated region
        $region135: #{tpu_custom_call.1} parent=99 // pred_check
          %p674 = pneg %p670
        $region136: #{tpu_custom_call.1} parent=99 // pred_check_branch
          %676 = sbr.rel (%p674) target = $region138
        $region137: #{tpu_custom_call.1} parent=99 // pred_region
          %s677 = sshllo.u32 0, 1
          loop: start=0, step=1, limit=1
          $region139: #{tpu_custom_call.1} parent=137 // loop_pre_header
            _
          $region140: #{tpu_custom_call.1} parent=137 // loop_header
            %s679 = sphi 0, %s683
            %p680 = scmp.ge.s32.totalorder %s679, 1
            %s684 = sphi %s666, %s666
            %s685 = sphi %s667, %s667
          $region141: #{tpu_custom_call.1} parent=137 // loop_header_branch
            %682 = sbr.rel (%p680) target = $region145
          $region142: #{tpu_custom_call.1} parent=137 // loop_body
            %v686 = vld [vmem:[%s684] sm:%s677]
            %687 = vst [vmem:[%s685] sm:%s677] %v686
          $region143: #{tpu_custom_call.1} parent=137 // loop_footer
            %s683 = sadd.s32 1, %s679
          $region144: #{tpu_custom_call.1} parent=137 // loop_footer_branch
            %678 = sbr.rel target = $region140
          $region145: #{tpu_custom_call.1} parent=137 // loop_exit
            _
        $region138: #{tpu_custom_call.1} parent=99 // pred_fallthru
          _
        // Predicated region
        $region157: #{tpu_custom_call.1} parent=99 // pred_check
          _
        $region158: #{tpu_custom_call.1} parent=99 // pred_check_branch
          %711 = sbr.rel (0) target = $region160
        $region159: #{tpu_custom_call.1} parent=99 // pred_region
          %712 = vsyncadd %s668, 16
        $region160: #{tpu_custom_call.1} parent=99 // pred_fallthru
          _
        %s713 = sadd.s32 %s617, 2
        %s714 = sld [smem:[#allocation5 + %s713]]
        %s715 = scalar_lea.vmem %s1, %s714
        %s716 = scalar_lea.vmem [#allocation2], 2
        %s717 = scalar_lea.sflag [#allocation3], 2
        %p719 = scmp.lt.u32.totalorder 1, 8
        %p720 = pneg %p719
        // Predicated region
        $region161: #{tpu_custom_call.1} parent=99 // pred_check
          _
        $region162: #{tpu_custom_call.1} parent=99 // pred_check_branch
          %722 = sbr.rel (%p719) target = $region164
        $region163: #{tpu_custom_call.1} parent=99 // pred_region
          %s737 = sand.u32 1, 7
          %p738 = scmp.eq.s32.totalorder %s737, 0
          %p739 = pneg %p738
          // Predicated region
          $region176: #{tpu_custom_call.1} parent=163 // pred_check
            _
          $region177: #{tpu_custom_call.1} parent=163 // pred_check_branch
            %741 = sbr.rel (%p738) target = $region179
          $region178: #{tpu_custom_call.1} parent=163 // pred_region
            %s742 = sand.u32 1, 7
            %s743 = ssub.s32 1, %s742
            %s744 = scalar_lea.vmem %s715, %s743
            %s745 = ssub.s32 1, %s742
            %s746 = scalar_lea.vmem %s716, %s745 [#allocation2]
            %s747 = sshllo.u32 0, %s742
            loop: start=0, step=1, limit=1
            $region180: #{tpu_custom_call.1} parent=178 // loop_pre_header
              _
            $region181: #{tpu_custom_call.1} parent=178 // loop_header
              %s749 = sphi 0, %s753
              %p750 = scmp.ge.s32.totalorder %s749, 1
              %s754 = sphi %s744, %s744
              %s755 = sphi %s746, %s746
            $region182: #{tpu_custom_call.1} parent=178 // loop_header_branch
              %752 = sbr.rel (%p750) target = $region186
            $region183: #{tpu_custom_call.1} parent=178 // loop_body
              %v756 = vld [vmem:[%s754] sm:%s747]
              %757 = vst [vmem:[%s755] sm:%s747] %v756
            $region184: #{tpu_custom_call.1} parent=178 // loop_footer
              %s753 = sadd.s32 1, %s749
            $region185: #{tpu_custom_call.1} parent=178 // loop_footer_branch
              %748 = sbr.rel target = $region181
            $region186: #{tpu_custom_call.1} parent=178 // loop_exit
              _
          $region179: #{tpu_custom_call.1} parent=163 // pred_fallthru
            _
        $region164: #{tpu_custom_call.1} parent=99 // pred_fallthru
          _
        // Predicated region
        $region165: #{tpu_custom_call.1} parent=99 // pred_check
          %p723 = pneg %p719
        $region166: #{tpu_custom_call.1} parent=99 // pred_check_branch
          %725 = sbr.rel (%p723) target = $region168
        $region167: #{tpu_custom_call.1} parent=99 // pred_region
          %s726 = sshllo.u32 0, 1
          loop: start=0, step=1, limit=1
          $region169: #{tpu_custom_call.1} parent=167 // loop_pre_header
            _
          $region170: #{tpu_custom_call.1} parent=167 // loop_header
            %s728 = sphi 0, %s732
            %p729 = scmp.ge.s32.totalorder %s728, 1
            %s733 = sphi %s715, %s715
            %s734 = sphi %s716, %s716
          $region171: #{tpu_custom_call.1} parent=167 // loop_header_branch
            %731 = sbr.rel (%p729) target = $region175
          $region172: #{tpu_custom_call.1} parent=167 // loop_body
            %v735 = vld [vmem:[%s733] sm:%s726]
            %736 = vst [vmem:[%s734] sm:%s726] %v735
          $region173: #{tpu_custom_call.1} parent=167 // loop_footer
            %s732 = sadd.s32 1, %s728
          $region174: #{tpu_custom_call.1} parent=167 // loop_footer_branch
            %727 = sbr.rel target = $region170
          $region175: #{tpu_custom_call.1} parent=167 // loop_exit
            _
        $region168: #{tpu_custom_call.1} parent=99 // pred_fallthru
          _
        // Predicated region
        $region187: #{tpu_custom_call.1} parent=99 // pred_check
          _
        $region188: #{tpu_custom_call.1} parent=99 // pred_check_branch
          %760 = sbr.rel (0) target = $region190
        $region189: #{tpu_custom_call.1} parent=99 // pred_region
          %761 = vsyncadd %s717, 16
        $region190: #{tpu_custom_call.1} parent=99 // pred_fallthru
          _
        %s762 = sadd.s32 %s617, 3
        %s763 = sld [smem:[#allocation5 + %s762]]
        %s764 = scalar_lea.vmem %s1, %s763
        %s765 = scalar_lea.vmem [#allocation2], 3
        %s766 = scalar_lea.sflag [#allocation3], 3
        %p768 = scmp.lt.u32.totalorder 1, 8
        %p769 = pneg %p768
        // Predicated region
        $region191: #{tpu_custom_call.1} parent=99 // pred_check
          _
        $region192: #{tpu_custom_call.1} parent=99 // pred_check_branch
          %771 = sbr.rel (%p768) target = $region194
        $region193: #{tpu_custom_call.1} parent=99 // pred_region
          %s786 = sand.u32 1, 7
          %p787 = scmp.eq.s32.totalorder %s786, 0
          %p788 = pneg %p787
          // Predicated region
          $region206: #{tpu_custom_call.1} parent=193 // pred_check
            _
          $region207: #{tpu_custom_call.1} parent=193 // pred_check_branch
            %790 = sbr.rel (%p787) target = $region209
          $region208: #{tpu_custom_call.1} parent=193 // pred_region
            %s791 = sand.u32 1, 7
            %s792 = ssub.s32 1, %s791
            %s793 = scalar_lea.vmem %s764, %s792
            %s794 = ssub.s32 1, %s791
            %s795 = scalar_lea.vmem %s765, %s794 [#allocation2]
            %s796 = sshllo.u32 0, %s791
            loop: start=0, step=1, limit=1
            $region210: #{tpu_custom_call.1} parent=208 // loop_pre_header
              _
            $region211: #{tpu_custom_call.1} parent=208 // loop_header
              %s798 = sphi 0, %s802
              %p799 = scmp.ge.s32.totalorder %s798, 1
              %s803 = sphi %s793, %s793
              %s804 = sphi %s795, %s795
            $region212: #{tpu_custom_call.1} parent=208 // loop_header_branch
              %801 = sbr.rel (%p799) target = $region216
            $region213: #{tpu_custom_call.1} parent=208 // loop_body
              %v805 = vld [vmem:[%s803] sm:%s796]
              %806 = vst [vmem:[%s804] sm:%s796] %v805
            $region214: #{tpu_custom_call.1} parent=208 // loop_footer
              %s802 = sadd.s32 1, %s798
            $region215: #{tpu_custom_call.1} parent=208 // loop_footer_branch
              %797 = sbr.rel target = $region211
            $region216: #{tpu_custom_call.1} parent=208 // loop_exit
              _
          $region209: #{tpu_custom_call.1} parent=193 // pred_fallthru
            _
        $region194: #{tpu_custom_call.1} parent=99 // pred_fallthru
          _
        // Predicated region
        $region195: #{tpu_custom_call.1} parent=99 // pred_check
          %p772 = pneg %p768
        $region196: #{tpu_custom_call.1} parent=99 // pred_check_branch
          %774 = sbr.rel (%p772) target = $region198
        $region197: #{tpu_custom_call.1} parent=99 // pred_region
          %s775 = sshllo.u32 0, 1
          loop: start=0, step=1, limit=1
          $region199: #{tpu_custom_call.1} parent=197 // loop_pre_header
            _
          $region200: #{tpu_custom_call.1} parent=197 // loop_header
            %s777 = sphi 0, %s781
            %p778 = scmp.ge.s32.totalorder %s777, 1
            %s782 = sphi %s764, %s764
            %s783 = sphi %s765, %s765
          $region201: #{tpu_custom_call.1} parent=197 // loop_header_branch
            %780 = sbr.rel (%p778) target = $region205
          $region202: #{tpu_custom_call.1} parent=197 // loop_body
            %v784 = vld [vmem:[%s782] sm:%s775]
            %785 = vst [vmem:[%s783] sm:%s775] %v784
          $region203: #{tpu_custom_call.1} parent=197 // loop_footer
            %s781 = sadd.s32 1, %s777
          $region204: #{tpu_custom_call.1} parent=197 // loop_footer_branch
            %776 = sbr.rel target = $region200
          $region205: #{tpu_custom_call.1} parent=197 // loop_exit
            _
        $region198: #{tpu_custom_call.1} parent=99 // pred_fallthru
          _
        // Predicated region
        $region217: #{tpu_custom_call.1} parent=99 // pred_check
          _
        $region218: #{tpu_custom_call.1} parent=99 // pred_check_branch
          %809 = sbr.rel (0) target = $region220
        $region219: #{tpu_custom_call.1} parent=99 // pred_region
          %810 = vsyncadd %s766, 16
        $region220: #{tpu_custom_call.1} parent=99 // pred_fallthru
          _
        %s811 = sadd.s32 %s617, 4
        %s812 = sld [smem:[#allocation5 + %s811]]
        %s813 = scalar_lea.vmem %s1, %s812
        %s814 = scalar_lea.vmem [#allocation2], 4
        %s815 = scalar_lea.sflag [#allocation3], 4
        %p817 = scmp.lt.u32.totalorder 1, 8
        %p818 = pneg %p817
        // Predicated region
        $region221: #{tpu_custom_call.1} parent=99 // pred_check
          _
        $region222: #{tpu_custom_call.1} parent=99 // pred_check_branch
          %820 = sbr.rel (%p817) target = $region224
        $region223: #{tpu_custom_call.1} parent=99 // pred_region
          %s835 = sand.u32 1, 7
          %p836 = scmp.eq.s32.totalorder %s835, 0
          %p837 = pneg %p836
          // Predicated region
          $region236: #{tpu_custom_call.1} parent=223 // pred_check
            _
          $region237: #{tpu_custom_call.1} parent=223 // pred_check_branch
            %839 = sbr.rel (%p836) target = $region239
          $region238: #{tpu_custom_call.1} parent=223 // pred_region
            %s840 = sand.u32 1, 7
            %s841 = ssub.s32 1, %s840
            %s842 = scalar_lea.vmem %s813, %s841
            %s843 = ssub.s32 1, %s840
            %s844 = scalar_lea.vmem %s814, %s843 [#allocation2]
            %s845 = sshllo.u32 0, %s840
            loop: start=0, step=1, limit=1
            $region240: #{tpu_custom_call.1} parent=238 // loop_pre_header
              _
            $region241: #{tpu_custom_call.1} parent=238 // loop_header
              %s847 = sphi 0, %s851
              %p848 = scmp.ge.s32.totalorder %s847, 1
              %s852 = sphi %s842, %s842
              %s853 = sphi %s844, %s844
            $region242: #{tpu_custom_call.1} parent=238 // loop_header_branch
              %850 = sbr.rel (%p848) target = $region246
            $region243: #{tpu_custom_call.1} parent=238 // loop_body
              %v854 = vld [vmem:[%s852] sm:%s845]
              %855 = vst [vmem:[%s853] sm:%s845] %v854
            $region244: #{tpu_custom_call.1} parent=238 // loop_footer
              %s851 = sadd.s32 1, %s847
            $region245: #{tpu_custom_call.1} parent=238 // loop_footer_branch
              %846 = sbr.rel target = $region241
            $region246: #{tpu_custom_call.1} parent=238 // loop_exit
              _
          $region239: #{tpu_custom_call.1} parent=223 // pred_fallthru
            _
        $region224: #{tpu_custom_call.1} parent=99 // pred_fallthru
          _
        // Predicated region
        $region225: #{tpu_custom_call.1} parent=99 // pred_check
          %p821 = pneg %p817
        $region226: #{tpu_custom_call.1} parent=99 // pred_check_branch
          %823 = sbr.rel (%p821) target = $region228
        $region227: #{tpu_custom_call.1} parent=99 // pred_region
          %s824 = sshllo.u32 0, 1
          loop: start=0, step=1, limit=1
          $region229: #{tpu_custom_call.1} parent=227 // loop_pre_header
            _
          $region230: #{tpu_custom_call.1} parent=227 // loop_header
            %s826 = sphi 0, %s830
            %p827 = scmp.ge.s32.totalorder %s826, 1
            %s831 = sphi %s813, %s813
            %s832 = sphi %s814, %s814
          $region231: #{tpu_custom_call.1} parent=227 // loop_header_branch
            %829 = sbr.rel (%p827) target = $region235
          $region232: #{tpu_custom_call.1} parent=227 // loop_body
            %v833 = vld [vmem:[%s831] sm:%s824]
            %834 = vst [vmem:[%s832] sm:%s824] %v833
          $region233: #{tpu_custom_call.1} parent=227 // loop_footer
            %s830 = sadd.s32 1, %s826
          $region234: #{tpu_custom_call.1} parent=227 // loop_footer_branch
            %825 = sbr.rel target = $region230
          $region235: #{tpu_custom_call.1} parent=227 // loop_exit
            _
        $region228: #{tpu_custom_call.1} parent=99 // pred_fallthru
          _
        // Predicated region
        $region247: #{tpu_custom_call.1} parent=99 // pred_check
          _
        $region248: #{tpu_custom_call.1} parent=99 // pred_check_branch
          %858 = sbr.rel (0) target = $region250
        $region249: #{tpu_custom_call.1} parent=99 // pred_region
          %859 = vsyncadd %s815, 16
        $region250: #{tpu_custom_call.1} parent=99 // pred_fallthru
          _
        %s860 = sadd.s32 %s617, 5
        %s861 = sld [smem:[#allocation5 + %s860]]
        %s862 = scalar_lea.vmem %s1, %s861
        %s863 = scalar_lea.vmem [#allocation2], 5
        %s864 = scalar_lea.sflag [#allocation3], 5
        %p866 = scmp.lt.u32.totalorder 1, 8
        %p867 = pneg %p866
        // Predicated region
        $region251: #{tpu_custom_call.1} parent=99 // pred_check
          _
        $region252: #{tpu_custom_call.1} parent=99 // pred_check_branch
          %869 = sbr.rel (%p866) target = $region254
        $region253: #{tpu_custom_call.1} parent=99 // pred_region
          %s884 = sand.u32 1, 7
          %p885 = scmp.eq.s32.totalorder %s884, 0
          %p886 = pneg %p885
          // Predicated region
          $region266: #{tpu_custom_call.1} parent=253 // pred_check
            _
          $region267: #{tpu_custom_call.1} parent=253 // pred_check_branch
            %888 = sbr.rel (%p885) target = $region269
          $region268: #{tpu_custom_call.1} parent=253 // pred_region
            %s889 = sand.u32 1, 7
            %s890 = ssub.s32 1, %s889
            %s891 = scalar_lea.vmem %s862, %s890
            %s892 = ssub.s32 1, %s889
            %s893 = scalar_lea.vmem %s863, %s892 [#allocation2]
            %s894 = sshllo.u32 0, %s889
            loop: start=0, step=1, limit=1
            $region270: #{tpu_custom_call.1} parent=268 // loop_pre_header
              _
            $region271: #{tpu_custom_call.1} parent=268 // loop_header
              %s896 = sphi 0, %s900
              %p897 = scmp.ge.s32.totalorder %s896, 1
              %s901 = sphi %s891, %s891
              %s902 = sphi %s893, %s893
            $region272: #{tpu_custom_call.1} parent=268 // loop_header_branch
              %899 = sbr.rel (%p897) target = $region276
            $region273: #{tpu_custom_call.1} parent=268 // loop_body
              %v903 = vld [vmem:[%s901] sm:%s894]
              %904 = vst [vmem:[%s902] sm:%s894] %v903
            $region274: #{tpu_custom_call.1} parent=268 // loop_footer
              %s900 = sadd.s32 1, %s896
            $region275: #{tpu_custom_call.1} parent=268 // loop_footer_branch
              %895 = sbr.rel target = $region271
            $region276: #{tpu_custom_call.1} parent=268 // loop_exit
              _
          $region269: #{tpu_custom_call.1} parent=253 // pred_fallthru
            _
        $region254: #{tpu_custom_call.1} parent=99 // pred_fallthru
          _
        // Predicated region
        $region255: #{tpu_custom_call.1} parent=99 // pred_check
          %p870 = pneg %p866
        $region256: #{tpu_custom_call.1} parent=99 // pred_check_branch
          %872 = sbr.rel (%p870) target = $region258
        $region257: #{tpu_custom_call.1} parent=99 // pred_region
          %s873 = sshllo.u32 0, 1
          loop: start=0, step=1, limit=1
          $region259: #{tpu_custom_call.1} parent=257 // loop_pre_header
            _
          $region260: #{tpu_custom_call.1} parent=257 // loop_header
            %s875 = sphi 0, %s879
            %p876 = scmp.ge.s32.totalorder %s875, 1
            %s880 = sphi %s862, %s862
            %s881 = sphi %s863, %s863
          $region261: #{tpu_custom_call.1} parent=257 // loop_header_branch
            %878 = sbr.rel (%p876) target = $region265
          $region262: #{tpu_custom_call.1} parent=257 // loop_body
            %v882 = vld [vmem:[%s880] sm:%s873]
            %883 = vst [vmem:[%s881] sm:%s873] %v882
          $region263: #{tpu_custom_call.1} parent=257 // loop_footer
            %s879 = sadd.s32 1, %s875
          $region264: #{tpu_custom_call.1} parent=257 // loop_footer_branch
            %874 = sbr.rel target = $region260
          $region265: #{tpu_custom_call.1} parent=257 // loop_exit
            _
        $region258: #{tpu_custom_call.1} parent=99 // pred_fallthru
          _
        // Predicated region
        $region277: #{tpu_custom_call.1} parent=99 // pred_check
          _
        $region278: #{tpu_custom_call.1} parent=99 // pred_check_branch
          %907 = sbr.rel (0) target = $region280
        $region279: #{tpu_custom_call.1} parent=99 // pred_region
          %908 = vsyncadd %s864, 16
        $region280: #{tpu_custom_call.1} parent=99 // pred_fallthru
          _
        %s909 = sadd.s32 %s617, 6
        %s910 = sld [smem:[#allocation5 + %s909]]
        %s911 = scalar_lea.vmem %s1, %s910
        %s912 = scalar_lea.vmem [#allocation2], 6
        %s913 = scalar_lea.sflag [#allocation3], 6
        %p915 = scmp.lt.u32.totalorder 1, 8
        %p916 = pneg %p915
        // Predicated region
        $region281: #{tpu_custom_call.1} parent=99 // pred_check
          _
        $region282: #{tpu_custom_call.1} parent=99 // pred_check_branch
          %918 = sbr.rel (%p915) target = $region284
        $region283: #{tpu_custom_call.1} parent=99 // pred_region
          %s933 = sand.u32 1, 7
          %p934 = scmp.eq.s32.totalorder %s933, 0
          %p935 = pneg %p934
          // Predicated region
          $region296: #{tpu_custom_call.1} parent=283 // pred_check
            _
          $region297: #{tpu_custom_call.1} parent=283 // pred_check_branch
            %937 = sbr.rel (%p934) target = $region299
          $region298: #{tpu_custom_call.1} parent=283 // pred_region
            %s938 = sand.u32 1, 7
            %s939 = ssub.s32 1, %s938
            %s940 = scalar_lea.vmem %s911, %s939
            %s941 = ssub.s32 1, %s938
            %s942 = scalar_lea.vmem %s912, %s941 [#allocation2]
            %s943 = sshllo.u32 0, %s938
            loop: start=0, step=1, limit=1
            $region300: #{tpu_custom_call.1} parent=298 // loop_pre_header
              _
            $region301: #{tpu_custom_call.1} parent=298 // loop_header
              %s945 = sphi 0, %s949
              %p946 = scmp.ge.s32.totalorder %s945, 1
              %s950 = sphi %s940, %s940
              %s951 = sphi %s942, %s942
            $region302: #{tpu_custom_call.1} parent=298 // loop_header_branch
              %948 = sbr.rel (%p946) target = $region306
            $region303: #{tpu_custom_call.1} parent=298 // loop_body
              %v952 = vld [vmem:[%s950] sm:%s943]
              %953 = vst [vmem:[%s951] sm:%s943] %v952
            $region304: #{tpu_custom_call.1} parent=298 // loop_footer
              %s949 = sadd.s32 1, %s945
            $region305: #{tpu_custom_call.1} parent=298 // loop_footer_branch
              %944 = sbr.rel target = $region301
            $region306: #{tpu_custom_call.1} parent=298 // loop_exit
              _
          $region299: #{tpu_custom_call.1} parent=283 // pred_fallthru
            _
        $region284: #{tpu_custom_call.1} parent=99 // pred_fallthru
          _
        // Predicated region
        $region285: #{tpu_custom_call.1} parent=99 // pred_check
          %p919 = pneg %p915
        $region286: #{tpu_custom_call.1} parent=99 // pred_check_branch
          %921 = sbr.rel (%p919) target = $region288
        $region287: #{tpu_custom_call.1} parent=99 // pred_region
          %s922 = sshllo.u32 0, 1
          loop: start=0, step=1, limit=1
          $region289: #{tpu_custom_call.1} parent=287 // loop_pre_header
            _
          $region290: #{tpu_custom_call.1} parent=287 // loop_header
            %s924 = sphi 0, %s928
            %p925 = scmp.ge.s32.totalorder %s924, 1
            %s929 = sphi %s911, %s911
            %s930 = sphi %s912, %s912
          $region291: #{tpu_custom_call.1} parent=287 // loop_header_branch
            %927 = sbr.rel (%p925) target = $region295
          $region292: #{tpu_custom_call.1} parent=287 // loop_body
            %v931 = vld [vmem:[%s929] sm:%s922]
            %932 = vst [vmem:[%s930] sm:%s922] %v931
          $region293: #{tpu_custom_call.1} parent=287 // loop_footer
            %s928 = sadd.s32 1, %s924
          $region294: #{tpu_custom_call.1} parent=287 // loop_footer_branch
            %923 = sbr.rel target = $region290
          $region295: #{tpu_custom_call.1} parent=287 // loop_exit
            _
        $region288: #{tpu_custom_call.1} parent=99 // pred_fallthru
          _
        // Predicated region
        $region307: #{tpu_custom_call.1} parent=99 // pred_check
          _
        $region308: #{tpu_custom_call.1} parent=99 // pred_check_branch
          %956 = sbr.rel (0) target = $region310
        $region309: #{tpu_custom_call.1} parent=99 // pred_region
          %957 = vsyncadd %s913, 16
        $region310: #{tpu_custom_call.1} parent=99 // pred_fallthru
          _
        %s958 = sadd.s32 %s617, 7
        %s959 = sld [smem:[#allocation5 + %s958]]
        %s960 = scalar_lea.vmem %s1, %s959
        %s961 = scalar_lea.vmem [#allocation2], 7
        %s962 = scalar_lea.sflag [#allocation3], 7
        %p964 = scmp.lt.u32.totalorder 1, 8
        %p965 = pneg %p964
        // Predicated region
        $region311: #{tpu_custom_call.1} parent=99 // pred_check
          _
        $region312: #{tpu_custom_call.1} parent=99 // pred_check_branch
          %967 = sbr.rel (%p964) target = $region314
        $region313: #{tpu_custom_call.1} parent=99 // pred_region
          %s982 = sand.u32 1, 7
          %p983 = scmp.eq.s32.totalorder %s982, 0
          %p984 = pneg %p983
          // Predicated region
          $region326: #{tpu_custom_call.1} parent=313 // pred_check
            _
          $region327: #{tpu_custom_call.1} parent=313 // pred_check_branch
            %986 = sbr.rel (%p983) target = $region329
          $region328: #{tpu_custom_call.1} parent=313 // pred_region
            %s987 = sand.u32 1, 7
            %s988 = ssub.s32 1, %s987
            %s989 = scalar_lea.vmem %s960, %s988
            %s990 = ssub.s32 1, %s987
            %s991 = scalar_lea.vmem %s961, %s990 [#allocation2]
            %s992 = sshllo.u32 0, %s987
            loop: start=0, step=1, limit=1
            $region330: #{tpu_custom_call.1} parent=328 // loop_pre_header
              _
            $region331: #{tpu_custom_call.1} parent=328 // loop_header
              %s994 = sphi 0, %s998
              %p995 = scmp.ge.s32.totalorder %s994, 1
              %s999 = sphi %s989, %s989
              %s1000 = sphi %s991, %s991
            $region332: #{tpu_custom_call.1} parent=328 // loop_header_branch
              %997 = sbr.rel (%p995) target = $region336
            $region333: #{tpu_custom_call.1} parent=328 // loop_body
              %v1001 = vld [vmem:[%s999] sm:%s992]
              %1002 = vst [vmem:[%s1000] sm:%s992] %v1001
            $region334: #{tpu_custom_call.1} parent=328 // loop_footer
              %s998 = sadd.s32 1, %s994
            $region335: #{tpu_custom_call.1} parent=328 // loop_footer_branch
              %993 = sbr.rel target = $region331
            $region336: #{tpu_custom_call.1} parent=328 // loop_exit
              _
          $region329: #{tpu_custom_call.1} parent=313 // pred_fallthru
            _
        $region314: #{tpu_custom_call.1} parent=99 // pred_fallthru
          _
        // Predicated region
        $region315: #{tpu_custom_call.1} parent=99 // pred_check
          %p968 = pneg %p964
        $region316: #{tpu_custom_call.1} parent=99 // pred_check_branch
          %970 = sbr.rel (%p968) target = $region318
        $region317: #{tpu_custom_call.1} parent=99 // pred_region
          %s971 = sshllo.u32 0, 1
          loop: start=0, step=1, limit=1
          $region319: #{tpu_custom_call.1} parent=317 // loop_pre_header
            _
          $region320: #{tpu_custom_call.1} parent=317 // loop_header
            %s973 = sphi 0, %s977
            %p974 = scmp.ge.s32.totalorder %s973, 1
            %s978 = sphi %s960, %s960
            %s979 = sphi %s961, %s961
          $region321: #{tpu_custom_call.1} parent=317 // loop_header_branch
            %976 = sbr.rel (%p974) target = $region325
          $region322: #{tpu_custom_call.1} parent=317 // loop_body
            %v980 = vld [vmem:[%s978] sm:%s971]
            %981 = vst [vmem:[%s979] sm:%s971] %v980
          $region323: #{tpu_custom_call.1} parent=317 // loop_footer
            %s977 = sadd.s32 1, %s973
          $region324: #{tpu_custom_call.1} parent=317 // loop_footer_branch
            %972 = sbr.rel target = $region320
          $region325: #{tpu_custom_call.1} parent=317 // loop_exit
            _
        $region318: #{tpu_custom_call.1} parent=99 // pred_fallthru
          _
        // Predicated region
        $region337: #{tpu_custom_call.1} parent=99 // pred_check
          _
        $region338: #{tpu_custom_call.1} parent=99 // pred_check_branch
          %1005 = sbr.rel (0) target = $region340
        $region339: #{tpu_custom_call.1} parent=99 // pred_region
          %1006 = vsyncadd %s962, 16
        $region340: #{tpu_custom_call.1} parent=99 // pred_fallthru
          _
        %s1007 = sld [smem:[#allocation5 + %s617]]
        %s1008 = smul.u32 1, 1
        %s1009 = sshll.u32 %s1008, 4
        %1010 = dma.done [#allocation3], %s1009
        %s1011 = sld [smem:[#allocation5 + %s664]]
        %s1012 = sshll.u32 %s1008, 4
        %1013 = dma.done %s668, %s1012
        %s1014 = sld [smem:[#allocation5 + %s713]]
        %s1015 = sshll.u32 %s1008, 4
        %1016 = dma.done %s717, %s1015
        %s1017 = sld [smem:[#allocation5 + %s762]]
        %s1018 = sshll.u32 %s1008, 4
        %1019 = dma.done %s766, %s1018
        %s1020 = sld [smem:[#allocation5 + %s811]]
        %s1021 = sshll.u32 %s1008, 4
        %1022 = dma.done %s815, %s1021
        %s1023 = sld [smem:[#allocation5 + %s860]]
        %s1024 = sshll.u32 %s1008, 4
        %1025 = dma.done %s864, %s1024
        %s1026 = sld [smem:[#allocation5 + %s909]]
        %s1027 = sshll.u32 %s1008, 4
        %1028 = dma.done %s913, %s1027
        %s1029 = sld [smem:[#allocation5 + %s958]]
        %s1030 = sshll.u32 %s1008, 4
        %1031 = dma.done %s962, %s1030
        %v1032 = vld [vmem:[#allocation2] sm:$0xff]
        %v1033 = vld [vmem:[%s2] sm:$0xff]
        %v1034 = vadd.f32 %v1032, %v1033
        %v1035 = vld [vmem:[%s3] sm:$0x1]
        %v1036 = vld [vmem:[%s4] sm:$0x1]
        %vm1037 = vcmask 261120
        %v1038 = vsel %vm1037, %v1034, 0.0
        %1039 = vadd.xlane.f32.xlu0 %v1038
        %v1040 = vpop.xlane.xlu0 %1039
        %v1041 = vrcp.pop 32.0
        %v1042 = vmul.f32 %v1040, %v1041
        %v1043 = vsub.f32 %v1034, %v1042
        %v1044 = vmul.f32 %v1043, %v1043
        %v1045 = vsel %vm1037, %v1044, 0.0
        %1046 = vadd.xlane.f32.xlu0 %v1045
        %v1047 = vpop.xlane.xlu0 %1046
        %v1048 = vmul.f32 %v1047, %v1041
        %v1049 = vadd.f32 %v1048, 1e-05
        %v1050 = vrsqrt.pop %v1049
        %v1051 = vmul.f32 %v1043, %v1050
        %v1053 = vlaneseq
        %v1054 = vshrl.u32 %v1053, 7
        %v1055 = vsub.s32 0, %v1054
        %v1056 = vrot.slane %v1035, %v1055
        %v1058 = vmul.f32 %v1051, %v1056
        %v1060 = vlaneseq
        %v1061 = vshrl.u32 %v1060, 7
        %v1062 = vsub.s32 0, %v1061
        %v1063 = vrot.slane %v1036, %v1062
        %v1065 = vadd.f32 %v1058, %v1063
        %v1066 = vpack.c.bf16 %v1065, %v1065
        %v1067 = vld [vmem:[%s5] sm:$0xf]
        %v1068 = vld [vmem:[%s5 + $0x4] sm:$0xf]
        %v1069 = vld [vmem:[%s5 + $0x8] sm:$0xf]
        %v1070 = vld [vmem:[%s5 + $0xc] sm:$0xf]
        %v1071 = vld [vmem:[%s8] sm:$0x1]
        %v1073 = vlaneseq
        %v1074 = vshrl.u32 %v1073, 7
        %v1075 = vsub.s32 0, %v1074
        %v1076 = vrot.slane %v1071, %v1075
        %v1082 = vunpack.c.l.b16 %v1067
        %v1083 = vunpack.c.l.b16 %v1068
        %v1084 = vunpack.c.l.b16 %v1069
        %v1085 = vunpack.c.l.b16 %v1070
        %v1086 = vpack.c.b16 %v1083, %v1082
        %v1087 = vpack.c.b16 %v1085, %v1084
        %v1091 = vsel %vm1037, %v1066, 0
        %1093 = vmatprep.subr.bf16.mxu0 0
        %1094 = vmatpush1.bf16.msra.mxu0 %v1086
        %1095 = vmatprep.subr.bf16.mxu0 0
        %1096 = vmatpush1.bf16.msra.mxu0 %v1087
        %1097 = vmatprep.subr.bf16.mxu0 0
        %1098 = vmatpush1.bf16.msra.mxu0 0
        %1099 = vmatprep.subr.bf16.mxu0 0
        %1100 = vmatpush1.bf16.msra.mxu0 0
        %1101 = vmatprep.subr.bf16.mxu0 0
        %1102 = vmatpush1.bf16.msra.mxu0 0
        %1103 = vmatprep.subr.bf16.mxu0 0
        %1104 = vmatpush1.bf16.msra.mxu0 0
        %1105 = vmatprep.subr.bf16.mxu0 0
        %1106 = vmatpush1.bf16.msra.mxu0 0
        %1107 = vmatprep.subr.bf16.mxu0 0
        %1108 = vmatpush1.bf16.msra.mxu0 0
        %1109 = vmatprep.subr.bf16.mxu0 0
        %1110 = vmatpush1.bf16.msra.mxu0 0
        %1111 = vmatprep.subr.bf16.mxu0 0
        %1112 = vmatpush1.bf16.msra.mxu0 0
        %1113 = vmatprep.subr.bf16.mxu0 0
        %1114 = vmatpush1.bf16.msra.mxu0 0
        %1115 = vmatprep.subr.bf16.mxu0 0
        %1116 = vmatpush1.bf16.msra.mxu0 0
        %1117 = vmatprep.subr.bf16.mxu0 0
        %1118 = vmatpush1.bf16.msra.mxu0 0
        %1119 = vmatprep.subr.bf16.mxu0 0
        %1120 = vmatpush1.bf16.msra.mxu0 0
        %1121 = vmatprep.subr.bf16.mxu0 0
        %1122 = vmatpush1.bf16.msra.mxu0 0
        %1123 = vmatprep.subr.bf16.mxu0 0
        %1124 = vmatpush1.bf16.msra.mxu0 0
        %1125 = vmatprep.mubr.bf16.mxu0 0
        %1126 = vmatmul.mubr.bf16.gmra.mrb[0].mxu0 %v1091
        %v1127 = vpop.f32.mrb[0].mxu0
        %v1128 = vadd.f32 %v1076, %v1127
        %v1129 = vpop.f32.mrb[0].mxu0
        %v1130 = vpop.f32.mrb[0].mxu0
        %v1131 = vpop.f32.mrb[0].mxu0
        %1132 = vdwg.mxu0
        %v1133 = vmul.f32 %v1128, 0.35355338
        %v1134 = vld [vmem:[%s6] sm:$0xf]
        %v1135 = vld [vmem:[%s6 + $0x4] sm:$0xf]
        %v1136 = vld [vmem:[%s6 + $0x8] sm:$0xf]
        %v1137 = vld [vmem:[%s6 + $0xc] sm:$0xf]
        %v1138 = vld [vmem:[%s9] sm:$0x1]
        %v1140 = vlaneseq
        %v1141 = vshrl.u32 %v1140, 7
        %v1142 = vsub.s32 0, %v1141
        %v1143 = vrot.slane %v1138, %v1142
        %v1149 = vunpack.c.l.b16 %v1134
        %v1150 = vunpack.c.l.b16 %v1135
        %v1151 = vunpack.c.l.b16 %v1136
        %v1152 = vunpack.c.l.b16 %v1137
        %v1153 = vpack.c.b16 %v1150, %v1149
        %v1154 = vpack.c.b16 %v1152, %v1151
        %1157 = vmatprep.subr.bf16.mxu0 0
        %1158 = vmatpush1.bf16.msra.mxu0 %v1153
        %1159 = vmatprep.subr.bf16.mxu0 0
        %1160 = vmatpush1.bf16.msra.mxu0 %v1154
        %1161 = vmatprep.subr.bf16.mxu0 0
        %1162 = vmatpush1.bf16.msra.mxu0 0
        %1163 = vmatprep.subr.bf16.mxu0 0
        %1164 = vmatpush1.bf16.msra.mxu0 0
        %1165 = vmatprep.subr.bf16.mxu0 0
        %1166 = vmatpush1.bf16.msra.mxu0 0
        %1167 = vmatprep.subr.bf16.mxu0 0
        %1168 = vmatpush1.bf16.msra.mxu0 0
        %1169 = vmatprep.subr.bf16.mxu0 0
        %1170 = vmatpush1.bf16.msra.mxu0 0
        %1171 = vmatprep.subr.bf16.mxu0 0
        %1172 = vmatpush1.bf16.msra.mxu0 0
        %1173 = vmatprep.subr.bf16.mxu0 0
        %1174 = vmatpush1.bf16.msra.mxu0 0
        %1175 = vmatprep.subr.bf16.mxu0 0
        %1176 = vmatpush1.bf16.msra.mxu0 0
        %1177 = vmatprep.subr.bf16.mxu0 0
        %1178 = vmatpush1.bf16.msra.mxu0 0
        %1179 = vmatprep.subr.bf16.mxu0 0
        %1180 = vmatpush1.bf16.msra.mxu0 0
        %1181 = vmatprep.subr.bf16.mxu0 0
        %1182 = vmatpush1.bf16.msra.mxu0 0
        %1183 = vmatprep.subr.bf16.mxu0 0
        %1184 = vmatpush1.bf16.msra.mxu0 0
        %1185 = vmatprep.subr.bf16.mxu0 0
        %1186 = vmatpush1.bf16.msra.mxu0 0
        %1187 = vmatprep.subr.bf16.mxu0 0
        %1188 = vmatpush1.bf16.msra.mxu0 0
        %1189 = vmatprep.mubr.bf16.mxu0 0
        %1190 = vmatmul.mubr.bf16.gmra.mrb[0].mxu0 %v1091
        %v1191 = vpop.f32.mrb[0].mxu0
        %v1192 = vadd.f32 %v1143, %v1191
        %v1193 = vpop.f32.mrb[0].mxu0
        %v1194 = vpop.f32.mrb[0].mxu0
        %v1195 = vpop.f32.mrb[0].mxu0
        %1196 = vdwg.mxu0
        %v1197 = vld [vmem:[%s7] sm:$0xf]
        %v1198 = vld [vmem:[%s7 + $0x4] sm:$0xf]
        %v1199 = vld [vmem:[%s7 + $0x8] sm:$0xf]
        %v1200 = vld [vmem:[%s7 + $0xc] sm:$0xf]
        %v1201 = vld [vmem:[%s10] sm:$0x1]
        %v1203 = vlaneseq
        %v1204 = vshrl.u32 %v1203, 7
        %v1205 = vsub.s32 0, %v1204
        %v1206 = vrot.slane %v1201, %v1205
        %v1212 = vunpack.c.l.b16 %v1197
        %v1213 = vunpack.c.l.b16 %v1198
        %v1214 = vunpack.c.l.b16 %v1199
        %v1215 = vunpack.c.l.b16 %v1200
        %v1216 = vpack.c.b16 %v1213, %v1212
        %v1217 = vpack.c.b16 %v1215, %v1214
        %1220 = vmatprep.subr.bf16.mxu0 0
        %1221 = vmatpush1.bf16.msra.mxu0 %v1216
        %1222 = vmatprep.subr.bf16.mxu0 0
        %1223 = vmatpush1.bf16.msra.mxu0 %v1217
        %1224 = vmatprep.subr.bf16.mxu0 0
        %1225 = vmatpush1.bf16.msra.mxu0 0
        %1226 = vmatprep.subr.bf16.mxu0 0
        %1227 = vmatpush1.bf16.msra.mxu0 0
        %1228 = vmatprep.subr.bf16.mxu0 0
        %1229 = vmatpush1.bf16.msra.mxu0 0
        %1230 = vmatprep.subr.bf16.mxu0 0
        %1231 = vmatpush1.bf16.msra.mxu0 0
        %1232 = vmatprep.subr.bf16.mxu0 0
        %1233 = vmatpush1.bf16.msra.mxu0 0
        %1234 = vmatprep.subr.bf16.mxu0 0
        %1235 = vmatpush1.bf16.msra.mxu0 0
        %1236 = vmatprep.subr.bf16.mxu0 0
        %1237 = vmatpush1.bf16.msra.mxu0 0
        %1238 = vmatprep.subr.bf16.mxu0 0
        %1239 = vmatpush1.bf16.msra.mxu0 0
        %1240 = vmatprep.subr.bf16.mxu0 0
        %1241 = vmatpush1.bf16.msra.mxu0 0
        %1242 = vmatprep.subr.bf16.mxu0 0
        %1243 = vmatpush1.bf16.msra.mxu0 0
        %1244 = vmatprep.subr.bf16.mxu0 0
        %1245 = vmatpush1.bf16.msra.mxu0 0
        %1246 = vmatprep.subr.bf16.mxu0 0
        %1247 = vmatpush1.bf16.msra.mxu0 0
        %1248 = vmatprep.subr.bf16.mxu0 0
        %1249 = vmatpush1.bf16.msra.mxu0 0
        %1250 = vmatprep.subr.bf16.mxu0 0
        %1251 = vmatpush1.bf16.msra.mxu0 0
        %1252 = vmatprep.mubr.bf16.mxu0 0
        %1253 = vmatmul.mubr.bf16.gmra.mrb[0].mxu0 %v1091
        %v1254 = vpop.f32.mrb[0].mxu0
        %v1255 = vadd.f32 %v1206, %v1254
        %v1256 = vpop.f32.mrb[0].mxu0
        %v1257 = vpop.f32.mrb[0].mxu0
        %v1258 = vpop.f32.mrb[0].mxu0
        %1259 = vdwg.mxu0
        %v1260 = vpack.c.bf16 %v1133, %v1133
        %v1261 = vpack.c.bf16 %v1192, %v1192
        %v1262 = vpack.c.bf16 %v1255, %v1255
        %vm1263 = vcmask 64512
        %v1265 = vsel %vm1263, %v1260, 0
        %v1268 = vsel %vm1263, %v1261, 0
        %1270 = vmatprep.subr.bf16.mxu0 0
        %1271 = vmatpush1.bf16.xpose.msra.mxu0 %v1268
        %1272 = vmatprep.subr.bf16.mxu0 0
        %1273 = vmatpush1.bf16.xpose.msra.mxu0 0
        %1274 = vmatprep.subr.bf16.mxu0 0
        %1275 = vmatpush1.bf16.xpose.msra.mxu0 0
        %1276 = vmatprep.subr.bf16.mxu0 0
        %1277 = vmatpush1.bf16.xpose.msra.mxu0 0
        %1278 = vmatprep.subr.bf16.mxu0 0
        %1279 = vmatpush1.bf16.xpose.msra.mxu0 0
        %1280 = vmatprep.subr.bf16.mxu0 0
        %1281 = vmatpush1.bf16.xpose.msra.mxu0 0
        %1282 = vmatprep.subr.bf16.mxu0 0
        %1283 = vmatpush1.bf16.xpose.msra.mxu0 0
        %1284 = vmatprep.subr.bf16.mxu0 0
        %1285 = vmatpush1.bf16.xpose.msra.mxu0 0
        %1286 = vmatprep.subr.bf16.mxu0 0
        %1287 = vmatpush1.bf16.xpose.msra.mxu0 0
        %1288 = vmatprep.subr.bf16.mxu0 0
        %1289 = vmatpush1.bf16.xpose.msra.mxu0 0
        %1290 = vmatprep.subr.bf16.mxu0 0
        %1291 = vmatpush1.bf16.xpose.msra.mxu0 0
        %1292 = vmatprep.subr.bf16.mxu0 0
        %1293 = vmatpush1.bf16.xpose.msra.mxu0 0
        %1294 = vmatprep.subr.bf16.mxu0 0
        %1295 = vmatpush1.bf16.xpose.msra.mxu0 0
        %1296 = vmatprep.subr.bf16.mxu0 0
        %1297 = vmatpush1.bf16.xpose.msra.mxu0 0
        %1298 = vmatprep.subr.bf16.mxu0 0
        %1299 = vmatpush1.bf16.xpose.msra.mxu0 0
        %1300 = vmatprep.subr.bf16.mxu0 0
        %1301 = vmatpush1.bf16.xpose.msra.mxu0 0
        %1302 = vmatprep.mubr.bf16.mxu0 0
        %1303 = vmatmul.mubr.bf16.gmra.mrb[0].mxu0 %v1265
        %v1304 = vpop.f32.mrb[0].mxu0
        %v1305 = vadd.f32 0.0, %v1304
        %v1306 = vpop.f32.mrb[0].mxu0
        %v1307 = vpop.f32.mrb[0].mxu0
        %v1308 = vpop.f32.mrb[0].mxu0
        %1309 = vdwg.mxu0
        %v1310 = vsel %vm1263, %v1305, -inf
        %1311 = vmax.xlane.f32.xlu0 %v1310
        %v1312 = vpop.xlane.xlu0 %1311
        %v1313 = vsub.f32 %v1305, %v1312
        %v1314 = vmul.f32 %v1313, 1.442695
        %v1315 = vpow.pop %v1314
        %v1316 = vsel %vm1263, %v1315, 0.0
        %1317 = vadd.xlane.f32.xlu0 %v1316
        %v1318 = vpop.xlane.xlu0 %1317
        %v1319 = vrcp.pop %v1318
        %v1320 = vmul.f32 %v1315, %v1319
        %v1321 = vpack.c.bf16 %v1320, %v1320
        %v1323 = vsel %vm1263, %v1321, 0
        %vm1325 = vcmask 1043456
        %v1327 = vsel %vm1325, %v1262, 0
        %1329 = vmatprep.subr.bf16.mxu0 0
        %1330 = vmatpush1.bf16.msra.mxu0 %v1327
        %1331 = vmatprep.subr.bf16.mxu0 0
        %1332 = vmatpush1.bf16.msra.mxu0 0
        %1333 = vmatprep.subr.bf16.mxu0 0
        %1334 = vmatpush1.bf16.msra.mxu0 0
        %1335 = vmatprep.subr.bf16.mxu0 0
        %1336 = vmatpush1.bf16.msra.mxu0 0
        %1337 = vmatprep.subr.bf16.mxu0 0
        %1338 = vmatpush1.bf16.msra.mxu0 0
        %1339 = vmatprep.subr.bf16.mxu0 0
        %1340 = vmatpush1.bf16.msra.mxu0 0
        %1341 = vmatprep.subr.bf16.mxu0 0
        %1342 = vmatpush1.bf16.msra.mxu0 0
        %1343 = vmatprep.subr.bf16.mxu0 0
        %1344 = vmatpush1.bf16.msra.mxu0 0
        %1345 = vmatprep.subr.bf16.mxu0 0
        %1346 = vmatpush1.bf16.msra.mxu0 0
        %1347 = vmatprep.subr.bf16.mxu0 0
        %1348 = vmatpush1.bf16.msra.mxu0 0
        %1349 = vmatprep.subr.bf16.mxu0 0
        %1350 = vmatpush1.bf16.msra.mxu0 0
        %1351 = vmatprep.subr.bf16.mxu0 0
        %1352 = vmatpush1.bf16.msra.mxu0 0
        %1353 = vmatprep.subr.bf16.mxu0 0
        %1354 = vmatpush1.bf16.msra.mxu0 0
        %1355 = vmatprep.subr.bf16.mxu0 0
        %1356 = vmatpush1.bf16.msra.mxu0 0
        %1357 = vmatprep.subr.bf16.mxu0 0
        %1358 = vmatpush1.bf16.msra.mxu0 0
        %1359 = vmatprep.subr.bf16.mxu0 0
        %1360 = vmatpush1.bf16.msra.mxu0 0
        %1361 = vmatprep.mubr.bf16.mxu0 0
        %1362 = vmatmul.mubr.bf16.gmra.mrb[0].mxu0 %v1323
        %v1363 = vpop.f32.mrb[0].mxu0
        %v1364 = vadd.f32 0.0, %v1363
        %v1365 = vpop.f32.mrb[0].mxu0
        %v1366 = vpop.f32.mrb[0].mxu0
        %v1367 = vpop.f32.mrb[0].mxu0
        %1368 = vdwg.mxu0
        %s1369 = scalar_lea.vmem %s5, 16
        %v1370 = vld [vmem:[%s1369] sm:$0xf]
        %v1371 = vld [vmem:[%s1369 + $0x4] sm:$0xf]
        %v1372 = vld [vmem:[%s1369 + $0x8] sm:$0xf]
        %v1373 = vld [vmem:[%s1369 + $0xc] sm:$0xf]
        %s1374 = scalar_lea.vmem %s8, 1
        %v1375 = vld [vmem:[%s1374] sm:$0x1]
        %v1377 = vlaneseq
        %v1378 = vshrl.u32 %v1377, 7
        %v1379 = vsub.s32 0, %v1378
        %v1380 = vrot.slane %v1375, %v1379
        %v1386 = vunpack.c.l.b16 %v1370
        %v1387 = vunpack.c.l.b16 %v1371
        %v1388 = vunpack.c.l.b16 %v1372
        %v1389 = vunpack.c.l.b16 %v1373
        %v1390 = vpack.c.b16 %v1387, %v1386
        %v1391 = vpack.c.b16 %v1389, %v1388
        %1394 = vmatprep.subr.bf16.mxu0 0
        %1395 = vmatpush1.bf16.msra.mxu0 %v1390
        %1396 = vmatprep.subr.bf16.mxu0 0
        %1397 = vmatpush1.bf16.msra.mxu0 %v1391
        %1398 = vmatprep.subr.bf16.mxu0 0
        %1399 = vmatpush1.bf16.msra.mxu0 0
        %1400 = vmatprep.subr.bf16.mxu0 0
        %1401 = vmatpush1.bf16.msra.mxu0 0
        %1402 = vmatprep.subr.bf16.mxu0 0
        %1403 = vmatpush1.bf16.msra.mxu0 0
        %1404 = vmatprep.subr.bf16.mxu0 0
        %1405 = vmatpush1.bf16.msra.mxu0 0
        %1406 = vmatprep.subr.bf16.mxu0 0
        %1407 = vmatpush1.bf16.msra.mxu0 0
        %1408 = vmatprep.subr.bf16.mxu0 0
        %1409 = vmatpush1.bf16.msra.mxu0 0
        %1410 = vmatprep.subr.bf16.mxu0 0
        %1411 = vmatpush1.bf16.msra.mxu0 0
        %1412 = vmatprep.subr.bf16.mxu0 0
        %1413 = vmatpush1.bf16.msra.mxu0 0
        %1414 = vmatprep.subr.bf16.mxu0 0
        %1415 = vmatpush1.bf16.msra.mxu0 0
        %1416 = vmatprep.subr.bf16.mxu0 0
        %1417 = vmatpush1.bf16.msra.mxu0 0
        %1418 = vmatprep.subr.bf16.mxu0 0
        %1419 = vmatpush1.bf16.msra.mxu0 0
        %1420 = vmatprep.subr.bf16.mxu0 0
        %1421 = vmatpush1.bf16.msra.mxu0 0
        %1422 = vmatprep.subr.bf16.mxu0 0
        %1423 = vmatpush1.bf16.msra.mxu0 0
        %1424 = vmatprep.subr.bf16.mxu0 0
        %1425 = vmatpush1.bf16.msra.mxu0 0
        %1426 = vmatprep.mubr.bf16.mxu0 0
        %1427 = vmatmul.mubr.bf16.gmra.mrb[0].mxu0 %v1091
        %v1428 = vpop.f32.mrb[0].mxu0
        %v1429 = vadd.f32 %v1380, %v1428
        %v1430 = vpop.f32.mrb[0].mxu0
        %v1431 = vpop.f32.mrb[0].mxu0
        %v1432 = vpop.f32.mrb[0].mxu0
        %1433 = vdwg.mxu0
        %v1434 = vmul.f32 %v1429, 0.35355338
        %s1435 = scalar_lea.vmem %s6, 16
        %v1436 = vld [vmem:[%s1435] sm:$0xf]
        %v1437 = vld [vmem:[%s1435 + $0x4] sm:$0xf]
        %v1438 = vld [vmem:[%s1435 + $0x8] sm:$0xf]
        %v1439 = vld [vmem:[%s1435 + $0xc] sm:$0xf]
        %s1440 = scalar_lea.vmem %s9, 1
        %v1441 = vld [vmem:[%s1440] sm:$0x1]
        %v1443 = vlaneseq
        %v1444 = vshrl.u32 %v1443, 7
        %v1445 = vsub.s32 0, %v1444
        %v1446 = vrot.slane %v1441, %v1445
        %v1452 = vunpack.c.l.b16 %v1436
        %v1453 = vunpack.c.l.b16 %v1437
        %v1454 = vunpack.c.l.b16 %v1438
        %v1455 = vunpack.c.l.b16 %v1439
        %v1456 = vpack.c.b16 %v1453, %v1452
        %v1457 = vpack.c.b16 %v1455, %v1454
        %1460 = vmatprep.subr.bf16.mxu0 0
        %1461 = vmatpush1.bf16.msra.mxu0 %v1456
        %1462 = vmatprep.subr.bf16.mxu0 0
        %1463 = vmatpush1.bf16.msra.mxu0 %v1457
        %1464 = vmatprep.subr.bf16.mxu0 0
        %1465 = vmatpush1.bf16.msra.mxu0 0
        %1466 = vmatprep.subr.bf16.mxu0 0
        %1467 = vmatpush1.bf16.msra.mxu0 0
        %1468 = vmatprep.subr.bf16.mxu0 0
        %1469 = vmatpush1.bf16.msra.mxu0 0
        %1470 = vmatprep.subr.bf16.mxu0 0
        %1471 = vmatpush1.bf16.msra.mxu0 0
        %1472 = vmatprep.subr.bf16.mxu0 0
        %1473 = vmatpush1.bf16.msra.mxu0 0
        %1474 = vmatprep.subr.bf16.mxu0 0
        %1475 = vmatpush1.bf16.msra.mxu0 0
        %1476 = vmatprep.subr.bf16.mxu0 0
        %1477 = vmatpush1.bf16.msra.mxu0 0
        %1478 = vmatprep.subr.bf16.mxu0 0
        %1479 = vmatpush1.bf16.msra.mxu0 0
        %1480 = vmatprep.subr.bf16.mxu0 0
        %1481 = vmatpush1.bf16.msra.mxu0 0
        %1482 = vmatprep.subr.bf16.mxu0 0
        %1483 = vmatpush1.bf16.msra.mxu0 0
        %1484 = vmatprep.subr.bf16.mxu0 0
        %1485 = vmatpush1.bf16.msra.mxu0 0
        %1486 = vmatprep.subr.bf16.mxu0 0
        %1487 = vmatpush1.bf16.msra.mxu0 0
        %1488 = vmatprep.subr.bf16.mxu0 0
        %1489 = vmatpush1.bf16.msra.mxu0 0
        %1490 = vmatprep.subr.bf16.mxu0 0
        %1491 = vmatpush1.bf16.msra.mxu0 0
        %1492 = vmatprep.mubr.bf16.mxu0 0
        %1493 = vmatmul.mubr.bf16.gmra.mrb[0].mxu0 %v1091
        %v1494 = vpop.f32.mrb[0].mxu0
        %v1495 = vadd.f32 %v1446, %v1494
        %v1496 = vpop.f32.mrb[0].mxu0
        %v1497 = vpop.f32.mrb[0].mxu0
        %v1498 = vpop.f32.mrb[0].mxu0
        %1499 = vdwg.mxu0
        %s1500 = scalar_lea.vmem %s7, 16
        %v1501 = vld [vmem:[%s1500] sm:$0xf]
        %v1502 = vld [vmem:[%s1500 + $0x4] sm:$0xf]
        %v1503 = vld [vmem:[%s1500 + $0x8] sm:$0xf]
        %v1504 = vld [vmem:[%s1500 + $0xc] sm:$0xf]
        %s1505 = scalar_lea.vmem %s10, 1
        %v1506 = vld [vmem:[%s1505] sm:$0x1]
        %v1508 = vlaneseq
        %v1509 = vshrl.u32 %v1508, 7
        %v1510 = vsub.s32 0, %v1509
        %v1511 = vrot.slane %v1506, %v1510
        %v1517 = vunpack.c.l.b16 %v1501
        %v1518 = vunpack.c.l.b16 %v1502
        %v1519 = vunpack.c.l.b16 %v1503
        %v1520 = vunpack.c.l.b16 %v1504
        %v1521 = vpack.c.b16 %v1518, %v1517
        %v1522 = vpack.c.b16 %v1520, %v1519
        %1525 = vmatprep.subr.bf16.mxu0 0
        %1526 = vmatpush1.bf16.msra.mxu0 %v1521
        %1527 = vmatprep.subr.bf16.mxu0 0
        %1528 = vmatpush1.bf16.msra.mxu0 %v1522
        %1529 = vmatprep.subr.bf16.mxu0 0
        %1530 = vmatpush1.bf16.msra.mxu0 0
        %1531 = vmatprep.subr.bf16.mxu0 0
        %1532 = vmatpush1.bf16.msra.mxu0 0
        %1533 = vmatprep.subr.bf16.mxu0 0
        %1534 = vmatpush1.bf16.msra.mxu0 0
        %1535 = vmatprep.subr.bf16.mxu0 0
        %1536 = vmatpush1.bf16.msra.mxu0 0
        %1537 = vmatprep.subr.bf16.mxu0 0
        %1538 = vmatpush1.bf16.msra.mxu0 0
        %1539 = vmatprep.subr.bf16.mxu0 0
        %1540 = vmatpush1.bf16.msra.mxu0 0
        %1541 = vmatprep.subr.bf16.mxu0 0
        %1542 = vmatpush1.bf16.msra.mxu0 0
        %1543 = vmatprep.subr.bf16.mxu0 0
        %1544 = vmatpush1.bf16.msra.mxu0 0
        %1545 = vmatprep.subr.bf16.mxu0 0
        %1546 = vmatpush1.bf16.msra.mxu0 0
        %1547 = vmatprep.subr.bf16.mxu0 0
        %1548 = vmatpush1.bf16.msra.mxu0 0
        %1549 = vmatprep.subr.bf16.mxu0 0
        %1550 = vmatpush1.bf16.msra.mxu0 0
        %1551 = vmatprep.subr.bf16.mxu0 0
        %1552 = vmatpush1.bf16.msra.mxu0 0
        %1553 = vmatprep.subr.bf16.mxu0 0
        %1554 = vmatpush1.bf16.msra.mxu0 0
        %1555 = vmatprep.subr.bf16.mxu0 0
        %1556 = vmatpush1.bf16.msra.mxu0 0
        %1557 = vmatprep.mubr.bf16.mxu0 0
        %1558 = vmatmul.mubr.bf16.gmra.mrb[0].mxu0 %v1091
        %v1559 = vpop.f32.mrb[0].mxu0
        %v1560 = vadd.f32 %v1511, %v1559
        %v1561 = vpop.f32.mrb[0].mxu0
        %v1562 = vpop.f32.mrb[0].mxu0
        %v1563 = vpop.f32.mrb[0].mxu0
        %1564 = vdwg.mxu0
        %v1565 = vpack.c.bf16 %v1434, %v1434
        %v1566 = vpack.c.bf16 %v1495, %v1495
        %v1567 = vpack.c.bf16 %v1560, %v1560
        %v1569 = vsel %vm1263, %v1565, 0
        %v1572 = vsel %vm1263, %v1566, 0
        %1574 = vmatprep.subr.bf16.mxu0 0
        %1575 = vmatpush1.bf16.xpose.msra.mxu0 %v1572
        %1576 = vmatprep.subr.bf16.mxu0 0
        %1577 = vmatpush1.bf16.xpose.msra.mxu0 0
        %1578 = vmatprep.subr.bf16.mxu0 0
        %1579 = vmatpush1.bf16.xpose.msra.mxu0 0
        %1580 = vmatprep.subr.bf16.mxu0 0
        %1581 = vmatpush1.bf16.xpose.msra.mxu0 0
        %1582 = vmatprep.subr.bf16.mxu0 0
        %1583 = vmatpush1.bf16.xpose.msra.mxu0 0
        %1584 = vmatprep.subr.bf16.mxu0 0
        %1585 = vmatpush1.bf16.xpose.msra.mxu0 0
        %1586 = vmatprep.subr.bf16.mxu0 0
        %1587 = vmatpush1.bf16.xpose.msra.mxu0 0
        %1588 = vmatprep.subr.bf16.mxu0 0
        %1589 = vmatpush1.bf16.xpose.msra.mxu0 0
        %1590 = vmatprep.subr.bf16.mxu0 0
        %1591 = vmatpush1.bf16.xpose.msra.mxu0 0
        %1592 = vmatprep.subr.bf16.mxu0 0
        %1593 = vmatpush1.bf16.xpose.msra.mxu0 0
        %1594 = vmatprep.subr.bf16.mxu0 0
        %1595 = vmatpush1.bf16.xpose.msra.mxu0 0
        %1596 = vmatprep.subr.bf16.mxu0 0
        %1597 = vmatpush1.bf16.xpose.msra.mxu0 0
        %1598 = vmatprep.subr.bf16.mxu0 0
        %1599 = vmatpush1.bf16.xpose.msra.mxu0 0
        %1600 = vmatprep.subr.bf16.mxu0 0
        %1601 = vmatpush1.bf16.xpose.msra.mxu0 0
        %1602 = vmatprep.subr.bf16.mxu0 0
        %1603 = vmatpush1.bf16.xpose.msra.mxu0 0
        %1604 = vmatprep.subr.bf16.mxu0 0
        %1605 = vmatpush1.bf16.xpose.msra.mxu0 0
        %1606 = vmatprep.mubr.bf16.mxu0 0
        %1607 = vmatmul.mubr.bf16.gmra.mrb[0].mxu0 %v1569
        %v1608 = vpop.f32.mrb[0].mxu0
        %v1609 = vadd.f32 0.0, %v1608
        %v1610 = vpop.f32.mrb[0].mxu0
        %v1611 = vpop.f32.mrb[0].mxu0
        %v1612 = vpop.f32.mrb[0].mxu0
        %1613 = vdwg.mxu0
        %v1614 = vsel %vm1263, %v1609, -inf
        %1615 = vmax.xlane.f32.xlu0 %v1614
        %v1616 = vpop.xlane.xlu0 %1615
        %v1617 = vsub.f32 %v1609, %v1616
        %v1618 = vmul.f32 %v1617, 1.442695
        %v1619 = vpow.pop %v1618
        %v1620 = vsel %vm1263, %v1619, 0.0
        %1621 = vadd.xlane.f32.xlu0 %v1620
        %v1622 = vpop.xlane.xlu0 %1621
        %v1623 = vrcp.pop %v1622
        %v1624 = vmul.f32 %v1619, %v1623
        %v1625 = vpack.c.bf16 %v1624, %v1624
        %v1627 = vsel %vm1263, %v1625, 0
        %v1630 = vsel %vm1325, %v1567, 0
        %1632 = vmatprep.subr.bf16.mxu0 0
        %1633 = vmatpush1.bf16.msra.mxu0 %v1630
        %1634 = vmatprep.subr.bf16.mxu0 0
        %1635 = vmatpush1.bf16.msra.mxu0 0
        %1636 = vmatprep.subr.bf16.mxu0 0
        %1637 = vmatpush1.bf16.msra.mxu0 0
        %1638 = vmatprep.subr.bf16.mxu0 0
        %1639 = vmatpush1.bf16.msra.mxu0 0
        %1640 = vmatprep.subr.bf16.mxu0 0
        %1641 = vmatpush1.bf16.msra.mxu0 0
        %1642 = vmatprep.subr.bf16.mxu0 0
        %1643 = vmatpush1.bf16.msra.mxu0 0
        %1644 = vmatprep.subr.bf16.mxu0 0
        %1645 = vmatpush1.bf16.msra.mxu0 0
        %1646 = vmatprep.subr.bf16.mxu0 0
        %1647 = vmatpush1.bf16.msra.mxu0 0
        %1648 = vmatprep.subr.bf16.mxu0 0
        %1649 = vmatpush1.bf16.msra.mxu0 0
        %1650 = vmatprep.subr.bf16.mxu0 0
        %1651 = vmatpush1.bf16.msra.mxu0 0
        %1652 = vmatprep.subr.bf16.mxu0 0
        %1653 = vmatpush1.bf16.msra.mxu0 0
        %1654 = vmatprep.subr.bf16.mxu0 0
        %1655 = vmatpush1.bf16.msra.mxu0 0
        %1656 = vmatprep.subr.bf16.mxu0 0
        %1657 = vmatpush1.bf16.msra.mxu0 0
        %1658 = vmatprep.subr.bf16.mxu0 0
        %1659 = vmatpush1.bf16.msra.mxu0 0
        %1660 = vmatprep.subr.bf16.mxu0 0
        %1661 = vmatpush1.bf16.msra.mxu0 0
        %1662 = vmatprep.subr.bf16.mxu0 0
        %1663 = vmatpush1.bf16.msra.mxu0 0
        %1664 = vmatprep.mubr.bf16.mxu0 0
        %1665 = vmatmul.mubr.bf16.gmra.mrb[0].mxu0 %v1627
        %v1666 = vpop.f32.mrb[0].mxu0
        %v1667 = vadd.f32 0.0, %v1666
        %v1668 = vpop.f32.mrb[0].mxu0
        %v1669 = vpop.f32.mrb[0].mxu0
        %v1670 = vpop.f32.mrb[0].mxu0
        %1671 = vdwg.mxu0
        %s1672 = scalar_lea.vmem %s5, 32
        %v1673 = vld [vmem:[%s1672] sm:$0xf]
        %v1674 = vld [vmem:[%s1672 + $0x4] sm:$0xf]
        %v1675 = vld [vmem:[%s1672 + $0x8] sm:$0xf]
        %v1676 = vld [vmem:[%s1672 + $0xc] sm:$0xf]
        %s1677 = scalar_lea.vmem %s8, 2
        %v1678 = vld [vmem:[%s1677] sm:$0x1]
        %v1680 = vlaneseq
        %v1681 = vshrl.u32 %v1680, 7
        %v1682 = vsub.s32 0, %v1681
        %v1683 = vrot.slane %v1678, %v1682
        %v1689 = vunpack.c.l.b16 %v1673
        %v1690 = vunpack.c.l.b16 %v1674
        %v1691 = vunpack.c.l.b16 %v1675
        %v1692 = vunpack.c.l.b16 %v1676
        %v1693 = vpack.c.b16 %v1690, %v1689
        %v1694 = vpack.c.b16 %v1692, %v1691
        %1697 = vmatprep.subr.bf16.mxu0 0
        %1698 = vmatpush1.bf16.msra.mxu0 %v1693
        %1699 = vmatprep.subr.bf16.mxu0 0
        %1700 = vmatpush1.bf16.msra.mxu0 %v1694
        %1701 = vmatprep.subr.bf16.mxu0 0
        %1702 = vmatpush1.bf16.msra.mxu0 0
        %1703 = vmatprep.subr.bf16.mxu0 0
        %1704 = vmatpush1.bf16.msra.mxu0 0
        %1705 = vmatprep.subr.bf16.mxu0 0
        %1706 = vmatpush1.bf16.msra.mxu0 0
        %1707 = vmatprep.subr.bf16.mxu0 0
        %1708 = vmatpush1.bf16.msra.mxu0 0
        %1709 = vmatprep.subr.bf16.mxu0 0
        %1710 = vmatpush1.bf16.msra.mxu0 0
        %1711 = vmatprep.subr.bf16.mxu0 0
        %1712 = vmatpush1.bf16.msra.mxu0 0
        %1713 = vmatprep.subr.bf16.mxu0 0
        %1714 = vmatpush1.bf16.msra.mxu0 0
        %1715 = vmatprep.subr.bf16.mxu0 0
        %1716 = vmatpush1.bf16.msra.mxu0 0
        %1717 = vmatprep.subr.bf16.mxu0 0
        %1718 = vmatpush1.bf16.msra.mxu0 0
        %1719 = vmatprep.subr.bf16.mxu0 0
        %1720 = vmatpush1.bf16.msra.mxu0 0
        %1721 = vmatprep.subr.bf16.mxu0 0
        %1722 = vmatpush1.bf16.msra.mxu0 0
        %1723 = vmatprep.subr.bf16.mxu0 0
        %1724 = vmatpush1.bf16.msra.mxu0 0
        %1725 = vmatprep.subr.bf16.mxu0 0
        %1726 = vmatpush1.bf16.msra.mxu0 0
        %1727 = vmatprep.subr.bf16.mxu0 0
        %1728 = vmatpush1.bf16.msra.mxu0 0
        %1729 = vmatprep.mubr.bf16.mxu0 0
        %1730 = vmatmul.mubr.bf16.gmra.mrb[0].mxu0 %v1091
        %v1731 = vpop.f32.mrb[0].mxu0
        %v1732 = vadd.f32 %v1683, %v1731
        %v1733 = vpop.f32.mrb[0].mxu0
        %v1734 = vpop.f32.mrb[0].mxu0
        %v1735 = vpop.f32.mrb[0].mxu0
        %1736 = vdwg.mxu0
        %v1737 = vmul.f32 %v1732, 0.35355338
        %s1738 = scalar_lea.vmem %s6, 32
        %v1739 = vld [vmem:[%s1738] sm:$0xf]
        %v1740 = vld [vmem:[%s1738 + $0x4] sm:$0xf]
        %v1741 = vld [vmem:[%s1738 + $0x8] sm:$0xf]
        %v1742 = vld [vmem:[%s1738 + $0xc] sm:$0xf]
        %s1743 = scalar_lea.vmem %s9, 2
        %v1744 = vld [vmem:[%s1743] sm:$0x1]
        %v1746 = vlaneseq
        %v1747 = vshrl.u32 %v1746, 7
        %v1748 = vsub.s32 0, %v1747
        %v1749 = vrot.slane %v1744, %v1748
        %v1755 = vunpack.c.l.b16 %v1739
        %v1756 = vunpack.c.l.b16 %v1740
        %v1757 = vunpack.c.l.b16 %v1741
        %v1758 = vunpack.c.l.b16 %v1742
        %v1759 = vpack.c.b16 %v1756, %v1755
        %v1760 = vpack.c.b16 %v1758, %v1757
        %1763 = vmatprep.subr.bf16.mxu0 0
        %1764 = vmatpush1.bf16.msra.mxu0 %v1759
        %1765 = vmatprep.subr.bf16.mxu0 0
        %1766 = vmatpush1.bf16.msra.mxu0 %v1760
        %1767 = vmatprep.subr.bf16.mxu0 0
        %1768 = vmatpush1.bf16.msra.mxu0 0
        %1769 = vmatprep.subr.bf16.mxu0 0
        %1770 = vmatpush1.bf16.msra.mxu0 0
        %1771 = vmatprep.subr.bf16.mxu0 0
        %1772 = vmatpush1.bf16.msra.mxu0 0
        %1773 = vmatprep.subr.bf16.mxu0 0
        %1774 = vmatpush1.bf16.msra.mxu0 0
        %1775 = vmatprep.subr.bf16.mxu0 0
        %1776 = vmatpush1.bf16.msra.mxu0 0
        %1777 = vmatprep.subr.bf16.mxu0 0
        %1778 = vmatpush1.bf16.msra.mxu0 0
        %1779 = vmatprep.subr.bf16.mxu0 0
        %1780 = vmatpush1.bf16.msra.mxu0 0
        %1781 = vmatprep.subr.bf16.mxu0 0
        %1782 = vmatpush1.bf16.msra.mxu0 0
        %1783 = vmatprep.subr.bf16.mxu0 0
        %1784 = vmatpush1.bf16.msra.mxu0 0
        %1785 = vmatprep.subr.bf16.mxu0 0
        %1786 = vmatpush1.bf16.msra.mxu0 0
        %1787 = vmatprep.subr.bf16.mxu0 0
        %1788 = vmatpush1.bf16.msra.mxu0 0
        %1789 = vmatprep.subr.bf16.mxu0 0
        %1790 = vmatpush1.bf16.msra.mxu0 0
        %1791 = vmatprep.subr.bf16.mxu0 0
        %1792 = vmatpush1.bf16.msra.mxu0 0
        %1793 = vmatprep.subr.bf16.mxu0 0
        %1794 = vmatpush1.bf16.msra.mxu0 0
        %1795 = vmatprep.mubr.bf16.mxu0 0
        %1796 = vmatmul.mubr.bf16.gmra.mrb[0].mxu0 %v1091
        %v1797 = vpop.f32.mrb[0].mxu0
        %v1798 = vadd.f32 %v1749, %v1797
        %v1799 = vpop.f32.mrb[0].mxu0
        %v1800 = vpop.f32.mrb[0].mxu0
        %v1801 = vpop.f32.mrb[0].mxu0
        %1802 = vdwg.mxu0
        %s1803 = scalar_lea.vmem %s7, 32
        %v1804 = vld [vmem:[%s1803] sm:$0xf]
        %v1805 = vld [vmem:[%s1803 + $0x4] sm:$0xf]
        %v1806 = vld [vmem:[%s1803 + $0x8] sm:$0xf]
        %v1807 = vld [vmem:[%s1803 + $0xc] sm:$0xf]
        %s1808 = scalar_lea.vmem %s10, 2
        %v1809 = vld [vmem:[%s1808] sm:$0x1]
        %v1811 = vlaneseq
        %v1812 = vshrl.u32 %v1811, 7
        %v1813 = vsub.s32 0, %v1812
        %v1814 = vrot.slane %v1809, %v1813
        %v1820 = vunpack.c.l.b16 %v1804
        %v1821 = vunpack.c.l.b16 %v1805
        %v1822 = vunpack.c.l.b16 %v1806
        %v1823 = vunpack.c.l.b16 %v1807
        %v1824 = vpack.c.b16 %v1821, %v1820
        %v1825 = vpack.c.b16 %v1823, %v1822
        %1828 = vmatprep.subr.bf16.mxu0 0
        %1829 = vmatpush1.bf16.msra.mxu0 %v1824
        %1830 = vmatprep.subr.bf16.mxu0 0
        %1831 = vmatpush1.bf16.msra.mxu0 %v1825
        %1832 = vmatprep.subr.bf16.mxu0 0
        %1833 = vmatpush1.bf16.msra.mxu0 0
        %1834 = vmatprep.subr.bf16.mxu0 0
        %1835 = vmatpush1.bf16.msra.mxu0 0
        %1836 = vmatprep.subr.bf16.mxu0 0
        %1837 = vmatpush1.bf16.msra.mxu0 0
        %1838 = vmatprep.subr.bf16.mxu0 0
        %1839 = vmatpush1.bf16.msra.mxu0 0
        %1840 = vmatprep.subr.bf16.mxu0 0
        %1841 = vmatpush1.bf16.msra.mxu0 0
        %1842 = vmatprep.subr.bf16.mxu0 0
        %1843 = vmatpush1.bf16.msra.mxu0 0
        %1844 = vmatprep.subr.bf16.mxu0 0
        %1845 = vmatpush1.bf16.msra.mxu0 0
        %1846 = vmatprep.subr.bf16.mxu0 0
        %1847 = vmatpush1.bf16.msra.mxu0 0
        %1848 = vmatprep.subr.bf16.mxu0 0
        %1849 = vmatpush1.bf16.msra.mxu0 0
        %1850 = vmatprep.subr.bf16.mxu0 0
        %1851 = vmatpush1.bf16.msra.mxu0 0
        %1852 = vmatprep.subr.bf16.mxu0 0
        %1853 = vmatpush1.bf16.msra.mxu0 0
        %1854 = vmatprep.subr.bf16.mxu0 0
        %1855 = vmatpush1.bf16.msra.mxu0 0
        %1856 = vmatprep.subr.bf16.mxu0 0
        %1857 = vmatpush1.bf16.msra.mxu0 0
        %1858 = vmatprep.subr.bf16.mxu0 0
        %1859 = vmatpush1.bf16.msra.mxu0 0
        %1860 = vmatprep.mubr.bf16.mxu0 0
        %1861 = vmatmul.mubr.bf16.gmra.mrb[0].mxu0 %v1091
        %v1862 = vpop.f32.mrb[0].mxu0
        %v1863 = vadd.f32 %v1814, %v1862
        %v1864 = vpop.f32.mrb[0].mxu0
        %v1865 = vpop.f32.mrb[0].mxu0
        %v1866 = vpop.f32.mrb[0].mxu0
        %1867 = vdwg.mxu0
        %v1868 = vpack.c.bf16 %v1737, %v1737
        %v1869 = vpack.c.bf16 %v1798, %v1798
        %v1870 = vpack.c.bf16 %v1863, %v1863
        %v1872 = vsel %vm1263, %v1868, 0
        %v1875 = vsel %vm1263, %v1869, 0
        %1877 = vmatprep.subr.bf16.mxu0 0
        %1878 = vmatpush1.bf16.xpose.msra.mxu0 %v1875
        %1879 = vmatprep.subr.bf16.mxu0 0
        %1880 = vmatpush1.bf16.xpose.msra.mxu0 0
        %1881 = vmatprep.subr.bf16.mxu0 0
        %1882 = vmatpush1.bf16.xpose.msra.mxu0 0
        %1883 = vmatprep.subr.bf16.mxu0 0
        %1884 = vmatpush1.bf16.xpose.msra.mxu0 0
        %1885 = vmatprep.subr.bf16.mxu0 0
        %1886 = vmatpush1.bf16.xpose.msra.mxu0 0
        %1887 = vmatprep.subr.bf16.mxu0 0
        %1888 = vmatpush1.bf16.xpose.msra.mxu0 0
        %1889 = vmatprep.subr.bf16.mxu0 0
        %1890 = vmatpush1.bf16.xpose.msra.mxu0 0
        %1891 = vmatprep.subr.bf16.mxu0 0
        %1892 = vmatpush1.bf16.xpose.msra.mxu0 0
        %1893 = vmatprep.subr.bf16.mxu0 0
        %1894 = vmatpush1.bf16.xpose.msra.mxu0 0
        %1895 = vmatprep.subr.bf16.mxu0 0
        %1896 = vmatpush1.bf16.xpose.msra.mxu0 0
        %1897 = vmatprep.subr.bf16.mxu0 0
        %1898 = vmatpush1.bf16.xpose.msra.mxu0 0
        %1899 = vmatprep.subr.bf16.mxu0 0
        %1900 = vmatpush1.bf16.xpose.msra.mxu0 0
        %1901 = vmatprep.subr.bf16.mxu0 0
        %1902 = vmatpush1.bf16.xpose.msra.mxu0 0
        %1903 = vmatprep.subr.bf16.mxu0 0
        %1904 = vmatpush1.bf16.xpose.msra.mxu0 0
        %1905 = vmatprep.subr.bf16.mxu0 0
        %1906 = vmatpush1.bf16.xpose.msra.mxu0 0
        %1907 = vmatprep.subr.bf16.mxu0 0
        %1908 = vmatpush1.bf16.xpose.msra.mxu0 0
        %1909 = vmatprep.mubr.bf16.mxu0 0
        %1910 = vmatmul.mubr.bf16.gmra.mrb[0].mxu0 %v1872
        %v1911 = vpop.f32.mrb[0].mxu0
        %v1912 = vadd.f32 0.0, %v1911
        %v1913 = vpop.f32.mrb[0].mxu0
        %v1914 = vpop.f32.mrb[0].mxu0
        %v1915 = vpop.f32.mrb[0].mxu0
        %1916 = vdwg.mxu0
        %v1917 = vsel %vm1263, %v1912, -inf
        %1918 = vmax.xlane.f32.xlu0 %v1917
        %v1919 = vpop.xlane.xlu0 %1918
        %v1920 = vsub.f32 %v1912, %v1919
        %v1921 = vmul.f32 %v1920, 1.442695
        %v1922 = vpow.pop %v1921
        %v1923 = vsel %vm1263, %v1922, 0.0
        %1924 = vadd.xlane.f32.xlu0 %v1923
        %v1925 = vpop.xlane.xlu0 %1924
        %v1926 = vrcp.pop %v1925
        %v1927 = vmul.f32 %v1922, %v1926
        %v1928 = vpack.c.bf16 %v1927, %v1927
        %v1930 = vsel %vm1263, %v1928, 0
        %v1933 = vsel %vm1325, %v1870, 0
        %1935 = vmatprep.subr.bf16.mxu0 0
        %1936 = vmatpush1.bf16.msra.mxu0 %v1933
        %1937 = vmatprep.subr.bf16.mxu0 0
        %1938 = vmatpush1.bf16.msra.mxu0 0
        %1939 = vmatprep.subr.bf16.mxu0 0
        %1940 = vmatpush1.bf16.msra.mxu0 0
        %1941 = vmatprep.subr.bf16.mxu0 0
        %1942 = vmatpush1.bf16.msra.mxu0 0
        %1943 = vmatprep.subr.bf16.mxu0 0
        %1944 = vmatpush1.bf16.msra.mxu0 0
        %1945 = vmatprep.subr.bf16.mxu0 0
        %1946 = vmatpush1.bf16.msra.mxu0 0
        %1947 = vmatprep.subr.bf16.mxu0 0
        %1948 = vmatpush1.bf16.msra.mxu0 0
        %1949 = vmatprep.subr.bf16.mxu0 0
        %1950 = vmatpush1.bf16.msra.mxu0 0
        %1951 = vmatprep.subr.bf16.mxu0 0
        %1952 = vmatpush1.bf16.msra.mxu0 0
        %1953 = vmatprep.subr.bf16.mxu0 0
        %1954 = vmatpush1.bf16.msra.mxu0 0
        %1955 = vmatprep.subr.bf16.mxu0 0
        %1956 = vmatpush1.bf16.msra.mxu0 0
        %1957 = vmatprep.subr.bf16.mxu0 0
        %1958 = vmatpush1.bf16.msra.mxu0 0
        %1959 = vmatprep.subr.bf16.mxu0 0
        %1960 = vmatpush1.bf16.msra.mxu0 0
        %1961 = vmatprep.subr.bf16.mxu0 0
        %1962 = vmatpush1.bf16.msra.mxu0 0
        %1963 = vmatprep.subr.bf16.mxu0 0
        %1964 = vmatpush1.bf16.msra.mxu0 0
        %1965 = vmatprep.subr.bf16.mxu0 0
        %1966 = vmatpush1.bf16.msra.mxu0 0
        %1967 = vmatprep.mubr.bf16.mxu0 0
        %1968 = vmatmul.mubr.bf16.gmra.mrb[0].mxu0 %v1930
        %v1969 = vpop.f32.mrb[0].mxu0
        %v1970 = vadd.f32 0.0, %v1969
        %v1971 = vpop.f32.mrb[0].mxu0
        %v1972 = vpop.f32.mrb[0].mxu0
        %v1973 = vpop.f32.mrb[0].mxu0
        %1974 = vdwg.mxu0
        %s1975 = scalar_lea.vmem %s5, 48
        %v1976 = vld [vmem:[%s1975] sm:$0xf]
        %v1977 = vld [vmem:[%s1975 + $0x4] sm:$0xf]
        %v1978 = vld [vmem:[%s1975 + $0x8] sm:$0xf]
        %v1979 = vld [vmem:[%s1975 + $0xc] sm:$0xf]
        %s1980 = scalar_lea.vmem %s8, 3
        %v1981 = vld [vmem:[%s1980] sm:$0x1]
        %v1983 = vlaneseq
        %v1984 = vshrl.u32 %v1983, 7
        %v1985 = vsub.s32 0, %v1984
        %v1986 = vrot.slane %v1981, %v1985
        %v1992 = vunpack.c.l.b16 %v1976
        %v1993 = vunpack.c.l.b16 %v1977
        %v1994 = vunpack.c.l.b16 %v1978
        %v1995 = vunpack.c.l.b16 %v1979
        %v1996 = vpack.c.b16 %v1993, %v1992
        %v1997 = vpack.c.b16 %v1995, %v1994
        %2000 = vmatprep.subr.bf16.mxu0 0
        %2001 = vmatpush1.bf16.msra.mxu0 %v1996
        %2002 = vmatprep.subr.bf16.mxu0 0
        %2003 = vmatpush1.bf16.msra.mxu0 %v1997
        %2004 = vmatprep.subr.bf16.mxu0 0
        %2005 = vmatpush1.bf16.msra.mxu0 0
        %2006 = vmatprep.subr.bf16.mxu0 0
        %2007 = vmatpush1.bf16.msra.mxu0 0
        %2008 = vmatprep.subr.bf16.mxu0 0
        %2009 = vmatpush1.bf16.msra.mxu0 0
        %2010 = vmatprep.subr.bf16.mxu0 0
        %2011 = vmatpush1.bf16.msra.mxu0 0
        %2012 = vmatprep.subr.bf16.mxu0 0
        %2013 = vmatpush1.bf16.msra.mxu0 0
        %2014 = vmatprep.subr.bf16.mxu0 0
        %2015 = vmatpush1.bf16.msra.mxu0 0
        %2016 = vmatprep.subr.bf16.mxu0 0
        %2017 = vmatpush1.bf16.msra.mxu0 0
        %2018 = vmatprep.subr.bf16.mxu0 0
        %2019 = vmatpush1.bf16.msra.mxu0 0
        %2020 = vmatprep.subr.bf16.mxu0 0
        %2021 = vmatpush1.bf16.msra.mxu0 0
        %2022 = vmatprep.subr.bf16.mxu0 0
        %2023 = vmatpush1.bf16.msra.mxu0 0
        %2024 = vmatprep.subr.bf16.mxu0 0
        %2025 = vmatpush1.bf16.msra.mxu0 0
        %2026 = vmatprep.subr.bf16.mxu0 0
        %2027 = vmatpush1.bf16.msra.mxu0 0
        %2028 = vmatprep.subr.bf16.mxu0 0
        %2029 = vmatpush1.bf16.msra.mxu0 0
        %2030 = vmatprep.subr.bf16.mxu0 0
        %2031 = vmatpush1.bf16.msra.mxu0 0
        %2032 = vmatprep.mubr.bf16.mxu0 0
        %2033 = vmatmul.mubr.bf16.gmra.mrb[0].mxu0 %v1091
        %v2034 = vpop.f32.mrb[0].mxu0
        %v2035 = vadd.f32 %v1986, %v2034
        %v2036 = vpop.f32.mrb[0].mxu0
        %v2037 = vpop.f32.mrb[0].mxu0
        %v2038 = vpop.f32.mrb[0].mxu0
        %2039 = vdwg.mxu0
        %v2040 = vmul.f32 %v2035, 0.35355338
        %s2041 = scalar_lea.vmem %s6, 48
        %v2042 = vld [vmem:[%s2041] sm:$0xf]
        %v2043 = vld [vmem:[%s2041 + $0x4] sm:$0xf]
        %v2044 = vld [vmem:[%s2041 + $0x8] sm:$0xf]
        %v2045 = vld [vmem:[%s2041 + $0xc] sm:$0xf]
        %s2046 = scalar_lea.vmem %s9, 3
        %v2047 = vld [vmem:[%s2046] sm:$0x1]
        %v2049 = vlaneseq
        %v2050 = vshrl.u32 %v2049, 7
        %v2051 = vsub.s32 0, %v2050
        %v2052 = vrot.slane %v2047, %v2051
        %v2058 = vunpack.c.l.b16 %v2042
        %v2059 = vunpack.c.l.b16 %v2043
        %v2060 = vunpack.c.l.b16 %v2044
        %v2061 = vunpack.c.l.b16 %v2045
        %v2062 = vpack.c.b16 %v2059, %v2058
        %v2063 = vpack.c.b16 %v2061, %v2060
        %2066 = vmatprep.subr.bf16.mxu0 0
        %2067 = vmatpush1.bf16.msra.mxu0 %v2062
        %2068 = vmatprep.subr.bf16.mxu0 0
        %2069 = vmatpush1.bf16.msra.mxu0 %v2063
        %2070 = vmatprep.subr.bf16.mxu0 0
        %2071 = vmatpush1.bf16.msra.mxu0 0
        %2072 = vmatprep.subr.bf16.mxu0 0
        %2073 = vmatpush1.bf16.msra.mxu0 0
        %2074 = vmatprep.subr.bf16.mxu0 0
        %2075 = vmatpush1.bf16.msra.mxu0 0
        %2076 = vmatprep.subr.bf16.mxu0 0
        %2077 = vmatpush1.bf16.msra.mxu0 0
        %2078 = vmatprep.subr.bf16.mxu0 0
        %2079 = vmatpush1.bf16.msra.mxu0 0
        %2080 = vmatprep.subr.bf16.mxu0 0
        %2081 = vmatpush1.bf16.msra.mxu0 0
        %2082 = vmatprep.subr.bf16.mxu0 0
        %2083 = vmatpush1.bf16.msra.mxu0 0
        %2084 = vmatprep.subr.bf16.mxu0 0
        %2085 = vmatpush1.bf16.msra.mxu0 0
        %2086 = vmatprep.subr.bf16.mxu0 0
        %2087 = vmatpush1.bf16.msra.mxu0 0
        %2088 = vmatprep.subr.bf16.mxu0 0
        %2089 = vmatpush1.bf16.msra.mxu0 0
        %2090 = vmatprep.subr.bf16.mxu0 0
        %2091 = vmatpush1.bf16.msra.mxu0 0
        %2092 = vmatprep.subr.bf16.mxu0 0
        %2093 = vmatpush1.bf16.msra.mxu0 0
        %2094 = vmatprep.subr.bf16.mxu0 0
        %2095 = vmatpush1.bf16.msra.mxu0 0
        %2096 = vmatprep.subr.bf16.mxu0 0
        %2097 = vmatpush1.bf16.msra.mxu0 0
        %2098 = vmatprep.mubr.bf16.mxu0 0
        %2099 = vmatmul.mubr.bf16.gmra.mrb[0].mxu0 %v1091
        %v2100 = vpop.f32.mrb[0].mxu0
        %v2101 = vadd.f32 %v2052, %v2100
        %v2102 = vpop.f32.mrb[0].mxu0
        %v2103 = vpop.f32.mrb[0].mxu0
        %v2104 = vpop.f32.mrb[0].mxu0
        %2105 = vdwg.mxu0
        %s2106 = scalar_lea.vmem %s7, 48
        %v2107 = vld [vmem:[%s2106] sm:$0xf]
        %v2108 = vld [vmem:[%s2106 + $0x4] sm:$0xf]
        %v2109 = vld [vmem:[%s2106 + $0x8] sm:$0xf]
        %v2110 = vld [vmem:[%s2106 + $0xc] sm:$0xf]
        %s2111 = scalar_lea.vmem %s10, 3
        %v2112 = vld [vmem:[%s2111] sm:$0x1]
        %v2114 = vlaneseq
        %v2115 = vshrl.u32 %v2114, 7
        %v2116 = vsub.s32 0, %v2115
        %v2117 = vrot.slane %v2112, %v2116
        %v2123 = vunpack.c.l.b16 %v2107
        %v2124 = vunpack.c.l.b16 %v2108
        %v2125 = vunpack.c.l.b16 %v2109
        %v2126 = vunpack.c.l.b16 %v2110
        %v2127 = vpack.c.b16 %v2124, %v2123
        %v2128 = vpack.c.b16 %v2126, %v2125
        %2131 = vmatprep.subr.bf16.mxu0 0
        %2132 = vmatpush1.bf16.msra.mxu0 %v2127
        %2133 = vmatprep.subr.bf16.mxu0 0
        %2134 = vmatpush1.bf16.msra.mxu0 %v2128
        %2135 = vmatprep.subr.bf16.mxu0 0
        %2136 = vmatpush1.bf16.msra.mxu0 0
        %2137 = vmatprep.subr.bf16.mxu0 0
        %2138 = vmatpush1.bf16.msra.mxu0 0
        %2139 = vmatprep.subr.bf16.mxu0 0
        %2140 = vmatpush1.bf16.msra.mxu0 0
        %2141 = vmatprep.subr.bf16.mxu0 0
        %2142 = vmatpush1.bf16.msra.mxu0 0
        %2143 = vmatprep.subr.bf16.mxu0 0
        %2144 = vmatpush1.bf16.msra.mxu0 0
        %2145 = vmatprep.subr.bf16.mxu0 0
        %2146 = vmatpush1.bf16.msra.mxu0 0
        %2147 = vmatprep.subr.bf16.mxu0 0
        %2148 = vmatpush1.bf16.msra.mxu0 0
        %2149 = vmatprep.subr.bf16.mxu0 0
        %2150 = vmatpush1.bf16.msra.mxu0 0
        %2151 = vmatprep.subr.bf16.mxu0 0
        %2152 = vmatpush1.bf16.msra.mxu0 0
        %2153 = vmatprep.subr.bf16.mxu0 0
        %2154 = vmatpush1.bf16.msra.mxu0 0
        %2155 = vmatprep.subr.bf16.mxu0 0
        %2156 = vmatpush1.bf16.msra.mxu0 0
        %2157 = vmatprep.subr.bf16.mxu0 0
        %2158 = vmatpush1.bf16.msra.mxu0 0
        %2159 = vmatprep.subr.bf16.mxu0 0
        %2160 = vmatpush1.bf16.msra.mxu0 0
        %2161 = vmatprep.subr.bf16.mxu0 0
        %2162 = vmatpush1.bf16.msra.mxu0 0
        %2163 = vmatprep.mubr.bf16.mxu0 0
        %2164 = vmatmul.mubr.bf16.gmra.mrb[0].mxu0 %v1091
        %v2165 = vpop.f32.mrb[0].mxu0
        %v2166 = vadd.f32 %v2117, %v2165
        %v2167 = vpop.f32.mrb[0].mxu0
        %v2168 = vpop.f32.mrb[0].mxu0
        %v2169 = vpop.f32.mrb[0].mxu0
        %2170 = vdwg.mxu0
        %v2171 = vpack.c.bf16 %v2040, %v2040
        %v2172 = vpack.c.bf16 %v2101, %v2101
        %v2173 = vpack.c.bf16 %v2166, %v2166
        %v2175 = vsel %vm1263, %v2171, 0
        %v2178 = vsel %vm1263, %v2172, 0
        %2180 = vmatprep.subr.bf16.mxu0 0
        %2181 = vmatpush1.bf16.xpose.msra.mxu0 %v2178
        %2182 = vmatprep.subr.bf16.mxu0 0
        %2183 = vmatpush1.bf16.xpose.msra.mxu0 0
        %2184 = vmatprep.subr.bf16.mxu0 0
        %2185 = vmatpush1.bf16.xpose.msra.mxu0 0
        %2186 = vmatprep.subr.bf16.mxu0 0
        %2187 = vmatpush1.bf16.xpose.msra.mxu0 0
        %2188 = vmatprep.subr.bf16.mxu0 0
        %2189 = vmatpush1.bf16.xpose.msra.mxu0 0
        %2190 = vmatprep.subr.bf16.mxu0 0
        %2191 = vmatpush1.bf16.xpose.msra.mxu0 0
        %2192 = vmatprep.subr.bf16.mxu0 0
        %2193 = vmatpush1.bf16.xpose.msra.mxu0 0
        %2194 = vmatprep.subr.bf16.mxu0 0
        %2195 = vmatpush1.bf16.xpose.msra.mxu0 0
        %2196 = vmatprep.subr.bf16.mxu0 0
        %2197 = vmatpush1.bf16.xpose.msra.mxu0 0
        %2198 = vmatprep.subr.bf16.mxu0 0
        %2199 = vmatpush1.bf16.xpose.msra.mxu0 0
        %2200 = vmatprep.subr.bf16.mxu0 0
        %2201 = vmatpush1.bf16.xpose.msra.mxu0 0
        %2202 = vmatprep.subr.bf16.mxu0 0
        %2203 = vmatpush1.bf16.xpose.msra.mxu0 0
        %2204 = vmatprep.subr.bf16.mxu0 0
        %2205 = vmatpush1.bf16.xpose.msra.mxu0 0
        %2206 = vmatprep.subr.bf16.mxu0 0
        %2207 = vmatpush1.bf16.xpose.msra.mxu0 0
        %2208 = vmatprep.subr.bf16.mxu0 0
        %2209 = vmatpush1.bf16.xpose.msra.mxu0 0
        %2210 = vmatprep.subr.bf16.mxu0 0
        %2211 = vmatpush1.bf16.xpose.msra.mxu0 0
        %2212 = vmatprep.mubr.bf16.mxu0 0
        %2213 = vmatmul.mubr.bf16.gmra.mrb[0].mxu0 %v2175
        %v2214 = vpop.f32.mrb[0].mxu0
        %v2215 = vadd.f32 0.0, %v2214
        %v2216 = vpop.f32.mrb[0].mxu0
        %v2217 = vpop.f32.mrb[0].mxu0
        %v2218 = vpop.f32.mrb[0].mxu0
        %2219 = vdwg.mxu0
        %v2220 = vsel %vm1263, %v2215, -inf
        %2221 = vmax.xlane.f32.xlu0 %v2220
        %v2222 = vpop.xlane.xlu0 %2221
        %v2223 = vsub.f32 %v2215, %v2222
        %v2224 = vmul.f32 %v2223, 1.442695
        %v2225 = vpow.pop %v2224
        %v2226 = vsel %vm1263, %v2225, 0.0
        %2227 = vadd.xlane.f32.xlu0 %v2226
        %v2228 = vpop.xlane.xlu0 %2227
        %v2229 = vrcp.pop %v2228
        %v2230 = vmul.f32 %v2225, %v2229
        %v2231 = vpack.c.bf16 %v2230, %v2230
        %v2233 = vsel %vm1263, %v2231, 0
        %v2236 = vsel %vm1325, %v2173, 0
        %2238 = vmatprep.subr.bf16.mxu0 0
        %2239 = vmatpush1.bf16.msra.mxu0 %v2236
        %2240 = vmatprep.subr.bf16.mxu0 0
        %2241 = vmatpush1.bf16.msra.mxu0 0
        %2242 = vmatprep.subr.bf16.mxu0 0
        %2243 = vmatpush1.bf16.msra.mxu0 0
        %2244 = vmatprep.subr.bf16.mxu0 0
        %2245 = vmatpush1.bf16.msra.mxu0 0
        %2246 = vmatprep.subr.bf16.mxu0 0
        %2247 = vmatpush1.bf16.msra.mxu0 0
        %2248 = vmatprep.subr.bf16.mxu0 0
        %2249 = vmatpush1.bf16.msra.mxu0 0
        %2250 = vmatprep.subr.bf16.mxu0 0
        %2251 = vmatpush1.bf16.msra.mxu0 0
        %2252 = vmatprep.subr.bf16.mxu0 0
        %2253 = vmatpush1.bf16.msra.mxu0 0
        %2254 = vmatprep.subr.bf16.mxu0 0
        %2255 = vmatpush1.bf16.msra.mxu0 0
        %2256 = vmatprep.subr.bf16.mxu0 0
        %2257 = vmatpush1.bf16.msra.mxu0 0
        %2258 = vmatprep.subr.bf16.mxu0 0
        %2259 = vmatpush1.bf16.msra.mxu0 0
        %2260 = vmatprep.subr.bf16.mxu0 0
        %2261 = vmatpush1.bf16.msra.mxu0 0
        %2262 = vmatprep.subr.bf16.mxu0 0
        %2263 = vmatpush1.bf16.msra.mxu0 0
        %2264 = vmatprep.subr.bf16.mxu0 0
        %2265 = vmatpush1.bf16.msra.mxu0 0
        %2266 = vmatprep.subr.bf16.mxu0 0
        %2267 = vmatpush1.bf16.msra.mxu0 0
        %2268 = vmatprep.subr.bf16.mxu0 0
        %2269 = vmatpush1.bf16.msra.mxu0 0
        %2270 = vmatprep.mubr.bf16.mxu0 0
        %2271 = vmatmul.mubr.bf16.gmra.mrb[0].mxu0 %v2233
        %v2272 = vpop.f32.mrb[0].mxu0
        %v2273 = vadd.f32 0.0, %v2272
        %v2274 = vpop.f32.mrb[0].mxu0
        %v2275 = vpop.f32.mrb[0].mxu0
        %v2276 = vpop.f32.mrb[0].mxu0
        %2277 = vdwg.mxu0
        %2279 = vrot.lane.b32.xlu0 %v1667, 8
        %v2280 = vpop.permute.xlu0 %2279
        %2283 = vrot.lane.b32.xlu0 %v1970, 16
        %v2284 = vpop.permute.xlu0 %2283
        %2287 = vrot.lane.b32.xlu0 %v2273, 24
        %v2288 = vpop.permute.xlu0 %2287
        %v2290 = vsel %vm1263, %v1364, %v2280
        %vm2291 = vcmask 130048
        %v2292 = vsel %vm2291, %v2290, %v2284
        %vm2293 = vcmask 195584
        %v2294 = vsel %vm2293, %v2292, %v2288
        %v2295 = vpack.c.bf16 %v2294, %v2294
        %v2296 = vld [vmem:[%s11] sm:$0xf]
        %v2297 = vld [vmem:[%s11 + $0x4] sm:$0xf]
        %v2298 = vld [vmem:[%s11 + $0x8] sm:$0xf]
        %v2299 = vld [vmem:[%s11 + $0xc] sm:$0xf]
        %v2300 = vld [vmem:[%s12] sm:$0x1]
        %v2302 = vlaneseq
        %v2303 = vshrl.u32 %v2302, 7
        %v2304 = vsub.s32 0, %v2303
        %v2305 = vrot.slane %v2300, %v2304
        %v2311 = vunpack.c.l.b16 %v2296
        %v2312 = vunpack.c.l.b16 %v2297
        %v2313 = vunpack.c.l.b16 %v2298
        %v2314 = vunpack.c.l.b16 %v2299
        %v2315 = vpack.c.b16 %v2312, %v2311
        %v2316 = vpack.c.b16 %v2314, %v2313
        %v2320 = vsel %vm1037, %v2295, 0
        %2322 = vmatprep.subr.bf16.mxu0 0
        %2323 = vmatpush1.bf16.msra.mxu0 %v2315
        %2324 = vmatprep.subr.bf16.mxu0 0
        %2325 = vmatpush1.bf16.msra.mxu0 %v2316
        %2326 = vmatprep.subr.bf16.mxu0 0
        %2327 = vmatpush1.bf16.msra.mxu0 0
        %2328 = vmatprep.subr.bf16.mxu0 0
        %2329 = vmatpush1.bf16.msra.mxu0 0
        %2330 = vmatprep.subr.bf16.mxu0 0
        %2331 = vmatpush1.bf16.msra.mxu0 0
        %2332 = vmatprep.subr.bf16.mxu0 0
        %2333 = vmatpush1.bf16.msra.mxu0 0
        %2334 = vmatprep.subr.bf16.mxu0 0
        %2335 = vmatpush1.bf16.msra.mxu0 0
        %2336 = vmatprep.subr.bf16.mxu0 0
        %2337 = vmatpush1.bf16.msra.mxu0 0
        %2338 = vmatprep.subr.bf16.mxu0 0
        %2339 = vmatpush1.bf16.msra.mxu0 0
        %2340 = vmatprep.subr.bf16.mxu0 0
        %2341 = vmatpush1.bf16.msra.mxu0 0
        %2342 = vmatprep.subr.bf16.mxu0 0
        %2343 = vmatpush1.bf16.msra.mxu0 0
        %2344 = vmatprep.subr.bf16.mxu0 0
        %2345 = vmatpush1.bf16.msra.mxu0 0
        %2346 = vmatprep.subr.bf16.mxu0 0
        %2347 = vmatpush1.bf16.msra.mxu0 0
        %2348 = vmatprep.subr.bf16.mxu0 0
        %2349 = vmatpush1.bf16.msra.mxu0 0
        %2350 = vmatprep.subr.bf16.mxu0 0
        %2351 = vmatpush1.bf16.msra.mxu0 0
        %2352 = vmatprep.subr.bf16.mxu0 0
        %2353 = vmatpush1.bf16.msra.mxu0 0
        %2354 = vmatprep.mubr.bf16.mxu0 0
        %2355 = vmatmul.mubr.bf16.gmra.mrb[0].mxu0 %v2320
        %v2356 = vpop.f32.mrb[0].mxu0
        %v2357 = vadd.f32 %v2305, %v2356
        %v2358 = vpop.f32.mrb[0].mxu0
        %v2359 = vpop.f32.mrb[0].mxu0
        %v2360 = vpop.f32.mrb[0].mxu0
        %2361 = vdwg.mxu0
        %v2362 = vadd.f32 %v1034, %v2357
        %v2363 = vld [vmem:[%s13] sm:$0x1]
        %v2364 = vld [vmem:[%s14] sm:$0x1]
        %v2365 = vsel %vm1037, %v2362, 0.0
        %2366 = vadd.xlane.f32.xlu0 %v2365
        %v2367 = vpop.xlane.xlu0 %2366
        %v2368 = vmul.f32 %v2367, %v1041
        %v2369 = vsub.f32 %v2362, %v2368
        %v2370 = vmul.f32 %v2369, %v2369
        %v2371 = vsel %vm1037, %v2370, 0.0
        %2372 = vadd.xlane.f32.xlu0 %v2371
        %v2373 = vpop.xlane.xlu0 %2372
        %v2374 = vmul.f32 %v2373, %v1041
        %v2375 = vadd.f32 %v2374, 1e-05
        %v2376 = vrsqrt.pop %v2375
        %v2377 = vmul.f32 %v2369, %v2376
        %v2379 = vlaneseq
        %v2380 = vshrl.u32 %v2379, 7
        %v2381 = vsub.s32 0, %v2380
        %v2382 = vrot.slane %v2363, %v2381
        %v2384 = vmul.f32 %v2377, %v2382
        %v2386 = vlaneseq
        %v2387 = vshrl.u32 %v2386, 7
        %v2388 = vsub.s32 0, %v2387
        %v2389 = vrot.slane %v2364, %v2388
        %v2391 = vadd.f32 %v2384, %v2389
        %v2392 = vpack.c.bf16 %v2391, %v2391
        %v2393 = vld [vmem:[%s15] sm:$0xf]
        %v2394 = vld [vmem:[%s15 + $0x4] sm:$0xf]
        %v2395 = vld [vmem:[%s15 + $0x8] sm:$0xf]
        %v2396 = vld [vmem:[%s15 + $0xc] sm:$0xf]
        %v2397 = vld [vmem:[%s16] sm:$0x1]
        %v2399 = vlaneseq
        %v2400 = vshrl.u32 %v2399, 7
        %v2401 = vsub.s32 0, %v2400
        %v2402 = vrot.slane %v2397, %v2401
        %v2408 = vunpack.c.l.b16 %v2393
        %v2409 = vunpack.c.l.b16 %v2394
        %v2410 = vunpack.c.l.b16 %v2395
        %v2411 = vunpack.c.l.b16 %v2396
        %v2412 = vpack.c.b16 %v2409, %v2408
        %v2413 = vpack.c.b16 %v2411, %v2410
        %v2417 = vsel %vm1037, %v2392, 0
        %2419 = vmatprep.subr.bf16.mxu0 0
        %2420 = vmatpush1.bf16.msra.mxu0 %v2412
        %2421 = vmatprep.subr.bf16.mxu0 0
        %2422 = vmatpush1.bf16.msra.mxu0 %v2413
        %2423 = vmatprep.subr.bf16.mxu0 0
        %2424 = vmatpush1.bf16.msra.mxu0 0
        %2425 = vmatprep.subr.bf16.mxu0 0
        %2426 = vmatpush1.bf16.msra.mxu0 0
        %2427 = vmatprep.subr.bf16.mxu0 0
        %2428 = vmatpush1.bf16.msra.mxu0 0
        %2429 = vmatprep.subr.bf16.mxu0 0
        %2430 = vmatpush1.bf16.msra.mxu0 0
        %2431 = vmatprep.subr.bf16.mxu0 0
        %2432 = vmatpush1.bf16.msra.mxu0 0
        %2433 = vmatprep.subr.bf16.mxu0 0
        %2434 = vmatpush1.bf16.msra.mxu0 0
        %2435 = vmatprep.subr.bf16.mxu0 0
        %2436 = vmatpush1.bf16.msra.mxu0 0
        %2437 = vmatprep.subr.bf16.mxu0 0
        %2438 = vmatpush1.bf16.msra.mxu0 0
        %2439 = vmatprep.subr.bf16.mxu0 0
        %2440 = vmatpush1.bf16.msra.mxu0 0
        %2441 = vmatprep.subr.bf16.mxu0 0
        %2442 = vmatpush1.bf16.msra.mxu0 0
        %2443 = vmatprep.subr.bf16.mxu0 0
        %2444 = vmatpush1.bf16.msra.mxu0 0
        %2445 = vmatprep.subr.bf16.mxu0 0
        %2446 = vmatpush1.bf16.msra.mxu0 0
        %2447 = vmatprep.subr.bf16.mxu0 0
        %2448 = vmatpush1.bf16.msra.mxu0 0
        %2449 = vmatprep.subr.bf16.mxu0 0
        %2450 = vmatpush1.bf16.msra.mxu0 0
        %2451 = vmatprep.mubr.bf16.mxu0 0
        %2452 = vmatmul.mubr.bf16.gmra.mrb[0].mxu0 %v2417
        %v2453 = vpop.f32.mrb[0].mxu0
        %v2454 = vadd.f32 %v2402, %v2453
        %v2455 = vpop.f32.mrb[0].mxu0
        %v2456 = vpop.f32.mrb[0].mxu0
        %v2457 = vpop.f32.mrb[0].mxu0
        %2458 = vdwg.mxu0
        %v2459 = vmul.f32 %v2454, 0.5
        %v2460 = vmul.f32 %v2454, 0.70710677
        %v2461 = verf.f32.pop %v2460
        %v2462 = vadd.f32 %v2461, 1.0
        %v2463 = vmul.f32 %v2459, %v2462
        %v2464 = vpack.c.bf16 %v2463, %v2463
        %v2465 = vld [vmem:[%s17] sm:$0xf]
        %v2466 = vld [vmem:[%s17 + $0x4] sm:$0xf]
        %v2467 = vld [vmem:[%s17 + $0x8] sm:$0xf]
        %v2468 = vld [vmem:[%s17 + $0xc] sm:$0xf]
        %v2469 = vld [vmem:[%s17 + $0x10] sm:$0xf]
        %v2470 = vld [vmem:[%s17 + $0x14] sm:$0xf]
        %v2471 = vld [vmem:[%s17 + $0x18] sm:$0xf]
        %v2472 = vld [vmem:[%s17 + $0x1c] sm:$0xf]
        %v2473 = vld [vmem:[%s18] sm:$0x1]
        %v2475 = vlaneseq
        %v2476 = vshrl.u32 %v2475, 7
        %v2477 = vsub.s32 0, %v2476
        %v2478 = vrot.slane %v2473, %v2477
        %v2488 = vunpack.c.l.b16 %v2465
        %v2489 = vunpack.c.l.b16 %v2466
        %v2490 = vunpack.c.l.b16 %v2467
        %v2491 = vunpack.c.l.b16 %v2468
        %v2492 = vunpack.c.l.b16 %v2469
        %v2493 = vunpack.c.l.b16 %v2470
        %v2494 = vunpack.c.l.b16 %v2471
        %v2495 = vunpack.c.l.b16 %v2472
        %v2496 = vpack.c.b16 %v2489, %v2488
        %v2497 = vpack.c.b16 %v2491, %v2490
        %v2498 = vpack.c.b16 %v2493, %v2492
        %v2499 = vpack.c.b16 %v2495, %v2494
        %vm2504 = vcmask 523264
        %v2506 = vsel %vm2504, %v2464, 0
        %2508 = vmatprep.subr.bf16.mxu0 0
        %2509 = vmatpush1.bf16.msra.mxu0 %v2496
        %2510 = vmatprep.subr.bf16.mxu0 0
        %2511 = vmatpush1.bf16.msra.mxu0 %v2497
        %2512 = vmatprep.subr.bf16.mxu0 0
        %2513 = vmatpush1.bf16.msra.mxu0 %v2498
        %2514 = vmatprep.subr.bf16.mxu0 0
        %2515 = vmatpush1.bf16.msra.mxu0 %v2499
        %2516 = vmatprep.subr.bf16.mxu0 0
        %2517 = vmatpush1.bf16.msra.mxu0 0
        %2518 = vmatprep.subr.bf16.mxu0 0
        %2519 = vmatpush1.bf16.msra.mxu0 0
        %2520 = vmatprep.subr.bf16.mxu0 0
        %2521 = vmatpush1.bf16.msra.mxu0 0
        %2522 = vmatprep.subr.bf16.mxu0 0
        %2523 = vmatpush1.bf16.msra.mxu0 0
        %2524 = vmatprep.subr.bf16.mxu0 0
        %2525 = vmatpush1.bf16.msra.mxu0 0
        %2526 = vmatprep.subr.bf16.mxu0 0
        %2527 = vmatpush1.bf16.msra.mxu0 0
        %2528 = vmatprep.subr.bf16.mxu0 0
        %2529 = vmatpush1.bf16.msra.mxu0 0
        %2530 = vmatprep.subr.bf16.mxu0 0
        %2531 = vmatpush1.bf16.msra.mxu0 0
        %2532 = vmatprep.subr.bf16.mxu0 0
        %2533 = vmatpush1.bf16.msra.mxu0 0
        %2534 = vmatprep.subr.bf16.mxu0 0
        %2535 = vmatpush1.bf16.msra.mxu0 0
        %2536 = vmatprep.subr.bf16.mxu0 0
        %2537 = vmatpush1.bf16.msra.mxu0 0
        %2538 = vmatprep.subr.bf16.mxu0 0
        %2539 = vmatpush1.bf16.msra.mxu0 0
        %2540 = vmatprep.mubr.bf16.mxu0 0
        %2541 = vmatmul.mubr.bf16.gmra.mrb[0].mxu0 %v2506
        %v2542 = vpop.f32.mrb[0].mxu0
        %v2543 = vadd.f32 %v2478, %v2542
        %v2544 = vpop.f32.mrb[0].mxu0
        %v2545 = vpop.f32.mrb[0].mxu0
        %v2546 = vpop.f32.mrb[0].mxu0
        %2547 = vdwg.mxu0
        %v2548 = vadd.f32 %v2362, %v2543
        %s2549 = scalar_lea.vmem %s3, 1
        %v2550 = vld [vmem:[%s2549] sm:$0x1]
        %s2551 = scalar_lea.vmem %s4, 1
        %v2552 = vld [vmem:[%s2551] sm:$0x1]
        %v2553 = vsel %vm1037, %v2548, 0.0
        %2554 = vadd.xlane.f32.xlu0 %v2553
        %v2555 = vpop.xlane.xlu0 %2554
        %v2556 = vmul.f32 %v2555, %v1041
        %v2557 = vsub.f32 %v2548, %v2556
        %v2558 = vmul.f32 %v2557, %v2557
        %v2559 = vsel %vm1037, %v2558, 0.0
        %2560 = vadd.xlane.f32.xlu0 %v2559
        %v2561 = vpop.xlane.xlu0 %2560
        %v2562 = vmul.f32 %v2561, %v1041
        %v2563 = vadd.f32 %v2562, 1e-05
        %v2564 = vrsqrt.pop %v2563
        %v2565 = vmul.f32 %v2557, %v2564
        %v2567 = vlaneseq
        %v2568 = vshrl.u32 %v2567, 7
        %v2569 = vsub.s32 0, %v2568
        %v2570 = vrot.slane %v2550, %v2569
        %v2572 = vmul.f32 %v2565, %v2570
        %v2574 = vlaneseq
        %v2575 = vshrl.u32 %v2574, 7
        %v2576 = vsub.s32 0, %v2575
        %v2577 = vrot.slane %v2552, %v2576
        %v2579 = vadd.f32 %v2572, %v2577
        %v2580 = vpack.c.bf16 %v2579, %v2579
        %s2581 = scalar_lea.vmem %s5, 64
        %v2582 = vld [vmem:[%s2581] sm:$0xf]
        %v2583 = vld [vmem:[%s2581 + $0x4] sm:$0xf]
        %v2584 = vld [vmem:[%s2581 + $0x8] sm:$0xf]
        %v2585 = vld [vmem:[%s2581 + $0xc] sm:$0xf]
        %s2586 = scalar_lea.vmem %s8, 4
        %v2587 = vld [vmem:[%s2586] sm:$0x1]
        %v2589 = vlaneseq
        %v2590 = vshrl.u32 %v2589, 7
        %v2591 = vsub.s32 0, %v2590
        %v2592 = vrot.slane %v2587, %v2591
        %v2598 = vunpack.c.l.b16 %v2582
        %v2599 = vunpack.c.l.b16 %v2583
        %v2600 = vunpack.c.l.b16 %v2584
        %v2601 = vunpack.c.l.b16 %v2585
        %v2602 = vpack.c.b16 %v2599, %v2598
        %v2603 = vpack.c.b16 %v2601, %v2600
        %v2607 = vsel %vm1037, %v2580, 0
        %2609 = vmatprep.subr.bf16.mxu0 0
        %2610 = vmatpush1.bf16.msra.mxu0 %v2602
        %2611 = vmatprep.subr.bf16.mxu0 0
        %2612 = vmatpush1.bf16.msra.mxu0 %v2603
        %2613 = vmatprep.subr.bf16.mxu0 0
        %2614 = vmatpush1.bf16.msra.mxu0 0
        %2615 = vmatprep.subr.bf16.mxu0 0
        %2616 = vmatpush1.bf16.msra.mxu0 0
        %2617 = vmatprep.subr.bf16.mxu0 0
        %2618 = vmatpush1.bf16.msra.mxu0 0
        %2619 = vmatprep.subr.bf16.mxu0 0
        %2620 = vmatpush1.bf16.msra.mxu0 0
        %2621 = vmatprep.subr.bf16.mxu0 0
        %2622 = vmatpush1.bf16.msra.mxu0 0
        %2623 = vmatprep.subr.bf16.mxu0 0
        %2624 = vmatpush1.bf16.msra.mxu0 0
        %2625 = vmatprep.subr.bf16.mxu0 0
        %2626 = vmatpush1.bf16.msra.mxu0 0
        %2627 = vmatprep.subr.bf16.mxu0 0
        %2628 = vmatpush1.bf16.msra.mxu0 0
        %2629 = vmatprep.subr.bf16.mxu0 0
        %2630 = vmatpush1.bf16.msra.mxu0 0
        %2631 = vmatprep.subr.bf16.mxu0 0
        %2632 = vmatpush1.bf16.msra.mxu0 0
        %2633 = vmatprep.subr.bf16.mxu0 0
        %2634 = vmatpush1.bf16.msra.mxu0 0
        %2635 = vmatprep.subr.bf16.mxu0 0
        %2636 = vmatpush1.bf16.msra.mxu0 0
        %2637 = vmatprep.subr.bf16.mxu0 0
        %2638 = vmatpush1.bf16.msra.mxu0 0
        %2639 = vmatprep.subr.bf16.mxu0 0
        %2640 = vmatpush1.bf16.msra.mxu0 0
        %2641 = vmatprep.mubr.bf16.mxu0 0
        %2642 = vmatmul.mubr.bf16.gmra.mrb[0].mxu0 %v2607
        %v2643 = vpop.f32.mrb[0].mxu0
        %v2644 = vadd.f32 %v2592, %v2643
        %v2645 = vpop.f32.mrb[0].mxu0
        %v2646 = vpop.f32.mrb[0].mxu0
        %v2647 = vpop.f32.mrb[0].mxu0
        %2648 = vdwg.mxu0
        %v2649 = vmul.f32 %v2644, 0.35355338
        %s2650 = scalar_lea.vmem %s6, 64
        %v2651 = vld [vmem:[%s2650] sm:$0xf]
        %v2652 = vld [vmem:[%s2650 + $0x4] sm:$0xf]
        %v2653 = vld [vmem:[%s2650 + $0x8] sm:$0xf]
        %v2654 = vld [vmem:[%s2650 + $0xc] sm:$0xf]
        %s2655 = scalar_lea.vmem %s9, 4
        %v2656 = vld [vmem:[%s2655] sm:$0x1]
        %v2658 = vlaneseq
        %v2659 = vshrl.u32 %v2658, 7
        %v2660 = vsub.s32 0, %v2659
        %v2661 = vrot.slane %v2656, %v2660
        %v2667 = vunpack.c.l.b16 %v2651
        %v2668 = vunpack.c.l.b16 %v2652
        %v2669 = vunpack.c.l.b16 %v2653
        %v2670 = vunpack.c.l.b16 %v2654
        %v2671 = vpack.c.b16 %v2668, %v2667
        %v2672 = vpack.c.b16 %v2670, %v2669
        %2675 = vmatprep.subr.bf16.mxu0 0
        %2676 = vmatpush1.bf16.msra.mxu0 %v2671
        %2677 = vmatprep.subr.bf16.mxu0 0
        %2678 = vmatpush1.bf16.msra.mxu0 %v2672
        %2679 = vmatprep.subr.bf16.mxu0 0
        %2680 = vmatpush1.bf16.msra.mxu0 0
        %2681 = vmatprep.subr.bf16.mxu0 0
        %2682 = vmatpush1.bf16.msra.mxu0 0
        %2683 = vmatprep.subr.bf16.mxu0 0
        %2684 = vmatpush1.bf16.msra.mxu0 0
        %2685 = vmatprep.subr.bf16.mxu0 0
        %2686 = vmatpush1.bf16.msra.mxu0 0
        %2687 = vmatprep.subr.bf16.mxu0 0
        %2688 = vmatpush1.bf16.msra.mxu0 0
        %2689 = vmatprep.subr.bf16.mxu0 0
        %2690 = vmatpush1.bf16.msra.mxu0 0
        %2691 = vmatprep.subr.bf16.mxu0 0
        %2692 = vmatpush1.bf16.msra.mxu0 0
        %2693 = vmatprep.subr.bf16.mxu0 0
        %2694 = vmatpush1.bf16.msra.mxu0 0
        %2695 = vmatprep.subr.bf16.mxu0 0
        %2696 = vmatpush1.bf16.msra.mxu0 0
        %2697 = vmatprep.subr.bf16.mxu0 0
        %2698 = vmatpush1.bf16.msra.mxu0 0
        %2699 = vmatprep.subr.bf16.mxu0 0
        %2700 = vmatpush1.bf16.msra.mxu0 0
        %2701 = vmatprep.subr.bf16.mxu0 0
        %2702 = vmatpush1.bf16.msra.mxu0 0
        %2703 = vmatprep.subr.bf16.mxu0 0
        %2704 = vmatpush1.bf16.msra.mxu0 0
        %2705 = vmatprep.subr.bf16.mxu0 0
        %2706 = vmatpush1.bf16.msra.mxu0 0
        %2707 = vmatprep.mubr.bf16.mxu0 0
        %2708 = vmatmul.mubr.bf16.gmra.mrb[0].mxu0 %v2607
        %v2709 = vpop.f32.mrb[0].mxu0
        %v2710 = vadd.f32 %v2661, %v2709
        %v2711 = vpop.f32.mrb[0].mxu0
        %v2712 = vpop.f32.mrb[0].mxu0
        %v2713 = vpop.f32.mrb[0].mxu0
        %2714 = vdwg.mxu0
        %s2715 = scalar_lea.vmem %s7, 64
        %v2716 = vld [vmem:[%s2715] sm:$0xf]
        %v2717 = vld [vmem:[%s2715 + $0x4] sm:$0xf]
        %v2718 = vld [vmem:[%s2715 + $0x8] sm:$0xf]
        %v2719 = vld [vmem:[%s2715 + $0xc] sm:$0xf]
        %s2720 = scalar_lea.vmem %s10, 4
        %v2721 = vld [vmem:[%s2720] sm:$0x1]
        %v2723 = vlaneseq
        %v2724 = vshrl.u32 %v2723, 7
        %v2725 = vsub.s32 0, %v2724
        %v2726 = vrot.slane %v2721, %v2725
        %v2732 = vunpack.c.l.b16 %v2716
        %v2733 = vunpack.c.l.b16 %v2717
        %v2734 = vunpack.c.l.b16 %v2718
        %v2735 = vunpack.c.l.b16 %v2719
        %v2736 = vpack.c.b16 %v2733, %v2732
        %v2737 = vpack.c.b16 %v2735, %v2734
        %2740 = vmatprep.subr.bf16.mxu0 0
        %2741 = vmatpush1.bf16.msra.mxu0 %v2736
        %2742 = vmatprep.subr.bf16.mxu0 0
        %2743 = vmatpush1.bf16.msra.mxu0 %v2737
        %2744 = vmatprep.subr.bf16.mxu0 0
        %2745 = vmatpush1.bf16.msra.mxu0 0
        %2746 = vmatprep.subr.bf16.mxu0 0
        %2747 = vmatpush1.bf16.msra.mxu0 0
        %2748 = vmatprep.subr.bf16.mxu0 0
        %2749 = vmatpush1.bf16.msra.mxu0 0
        %2750 = vmatprep.subr.bf16.mxu0 0
        %2751 = vmatpush1.bf16.msra.mxu0 0
        %2752 = vmatprep.subr.bf16.mxu0 0
        %2753 = vmatpush1.bf16.msra.mxu0 0
        %2754 = vmatprep.subr.bf16.mxu0 0
        %2755 = vmatpush1.bf16.msra.mxu0 0
        %2756 = vmatprep.subr.bf16.mxu0 0
        %2757 = vmatpush1.bf16.msra.mxu0 0
        %2758 = vmatprep.subr.bf16.mxu0 0
        %2759 = vmatpush1.bf16.msra.mxu0 0
        %2760 = vmatprep.subr.bf16.mxu0 0
        %2761 = vmatpush1.bf16.msra.mxu0 0
        %2762 = vmatprep.subr.bf16.mxu0 0
        %2763 = vmatpush1.bf16.msra.mxu0 0
        %2764 = vmatprep.subr.bf16.mxu0 0
        %2765 = vmatpush1.bf16.msra.mxu0 0
        %2766 = vmatprep.subr.bf16.mxu0 0
        %2767 = vmatpush1.bf16.msra.mxu0 0
        %2768 = vmatprep.subr.bf16.mxu0 0
        %2769 = vmatpush1.bf16.msra.mxu0 0
        %2770 = vmatprep.subr.bf16.mxu0 0
        %2771 = vmatpush1.bf16.msra.mxu0 0
        %2772 = vmatprep.mubr.bf16.mxu0 0
        %2773 = vmatmul.mubr.bf16.gmra.mrb[0].mxu0 %v2607
        %v2774 = vpop.f32.mrb[0].mxu0
        %v2775 = vadd.f32 %v2726, %v2774
        %v2776 = vpop.f32.mrb[0].mxu0
        %v2777 = vpop.f32.mrb[0].mxu0
        %v2778 = vpop.f32.mrb[0].mxu0
        %2779 = vdwg.mxu0
        %v2780 = vpack.c.bf16 %v2649, %v2649
        %v2781 = vpack.c.bf16 %v2710, %v2710
        %v2782 = vpack.c.bf16 %v2775, %v2775
        %v2784 = vsel %vm1263, %v2780, 0
        %v2787 = vsel %vm1263, %v2781, 0
        %2789 = vmatprep.subr.bf16.mxu0 0
        %2790 = vmatpush1.bf16.xpose.msra.mxu0 %v2787
        %2791 = vmatprep.subr.bf16.mxu0 0
        %2792 = vmatpush1.bf16.xpose.msra.mxu0 0
        %2793 = vmatprep.subr.bf16.mxu0 0
        %2794 = vmatpush1.bf16.xpose.msra.mxu0 0
        %2795 = vmatprep.subr.bf16.mxu0 0
        %2796 = vmatpush1.bf16.xpose.msra.mxu0 0
        %2797 = vmatprep.subr.bf16.mxu0 0
        %2798 = vmatpush1.bf16.xpose.msra.mxu0 0
        %2799 = vmatprep.subr.bf16.mxu0 0
        %2800 = vmatpush1.bf16.xpose.msra.mxu0 0
        %2801 = vmatprep.subr.bf16.mxu0 0
        %2802 = vmatpush1.bf16.xpose.msra.mxu0 0
        %2803 = vmatprep.subr.bf16.mxu0 0
        %2804 = vmatpush1.bf16.xpose.msra.mxu0 0
        %2805 = vmatprep.subr.bf16.mxu0 0
        %2806 = vmatpush1.bf16.xpose.msra.mxu0 0
        %2807 = vmatprep.subr.bf16.mxu0 0
        %2808 = vmatpush1.bf16.xpose.msra.mxu0 0
        %2809 = vmatprep.subr.bf16.mxu0 0
        %2810 = vmatpush1.bf16.xpose.msra.mxu0 0
        %2811 = vmatprep.subr.bf16.mxu0 0
        %2812 = vmatpush1.bf16.xpose.msra.mxu0 0
        %2813 = vmatprep.subr.bf16.mxu0 0
        %2814 = vmatpush1.bf16.xpose.msra.mxu0 0
        %2815 = vmatprep.subr.bf16.mxu0 0
        %2816 = vmatpush1.bf16.xpose.msra.mxu0 0
        %2817 = vmatprep.subr.bf16.mxu0 0
        %2818 = vmatpush1.bf16.xpose.msra.mxu0 0
        %2819 = vmatprep.subr.bf16.mxu0 0
        %2820 = vmatpush1.bf16.xpose.msra.mxu0 0
        %2821 = vmatprep.mubr.bf16.mxu0 0
        %2822 = vmatmul.mubr.bf16.gmra.mrb[0].mxu0 %v2784
        %v2823 = vpop.f32.mrb[0].mxu0
        %v2824 = vadd.f32 0.0, %v2823
        %v2825 = vpop.f32.mrb[0].mxu0
        %v2826 = vpop.f32.mrb[0].mxu0
        %v2827 = vpop.f32.mrb[0].mxu0
        %2828 = vdwg.mxu0
        %v2829 = vsel %vm1263, %v2824, -inf
        %2830 = vmax.xlane.f32.xlu0 %v2829
        %v2831 = vpop.xlane.xlu0 %2830
        %v2832 = vsub.f32 %v2824, %v2831
        %v2833 = vmul.f32 %v2832, 1.442695
        %v2834 = vpow.pop %v2833
        %v2835 = vsel %vm1263, %v2834, 0.0
        %2836 = vadd.xlane.f32.xlu0 %v2835
        %v2837 = vpop.xlane.xlu0 %2836
        %v2838 = vrcp.pop %v2837
        %v2839 = vmul.f32 %v2834, %v2838
        %v2840 = vpack.c.bf16 %v2839, %v2839
        %v2842 = vsel %vm1263, %v2840, 0
        %v2845 = vsel %vm1325, %v2782, 0
        %2847 = vmatprep.subr.bf16.mxu0 0
        %2848 = vmatpush1.bf16.msra.mxu0 %v2845
        %2849 = vmatprep.subr.bf16.mxu0 0
        %2850 = vmatpush1.bf16.msra.mxu0 0
        %2851 = vmatprep.subr.bf16.mxu0 0
        %2852 = vmatpush1.bf16.msra.mxu0 0
        %2853 = vmatprep.subr.bf16.mxu0 0
        %2854 = vmatpush1.bf16.msra.mxu0 0
        %2855 = vmatprep.subr.bf16.mxu0 0
        %2856 = vmatpush1.bf16.msra.mxu0 0
        %2857 = vmatprep.subr.bf16.mxu0 0
        %2858 = vmatpush1.bf16.msra.mxu0 0
        %2859 = vmatprep.subr.bf16.mxu0 0
        %2860 = vmatpush1.bf16.msra.mxu0 0
        %2861 = vmatprep.subr.bf16.mxu0 0
        %2862 = vmatpush1.bf16.msra.mxu0 0
        %2863 = vmatprep.subr.bf16.mxu0 0
        %2864 = vmatpush1.bf16.msra.mxu0 0
        %2865 = vmatprep.subr.bf16.mxu0 0
        %2866 = vmatpush1.bf16.msra.mxu0 0
        %2867 = vmatprep.subr.bf16.mxu0 0
        %2868 = vmatpush1.bf16.msra.mxu0 0
        %2869 = vmatprep.subr.bf16.mxu0 0
        %2870 = vmatpush1.bf16.msra.mxu0 0
        %2871 = vmatprep.subr.bf16.mxu0 0
        %2872 = vmatpush1.bf16.msra.mxu0 0
        %2873 = vmatprep.subr.bf16.mxu0 0
        %2874 = vmatpush1.bf16.msra.mxu0 0
        %2875 = vmatprep.subr.bf16.mxu0 0
        %2876 = vmatpush1.bf16.msra.mxu0 0
        %2877 = vmatprep.subr.bf16.mxu0 0
        %2878 = vmatpush1.bf16.msra.mxu0 0
        %2879 = vmatprep.mubr.bf16.mxu0 0
        %2880 = vmatmul.mubr.bf16.gmra.mrb[0].mxu0 %v2842
        %v2881 = vpop.f32.mrb[0].mxu0
        %v2882 = vadd.f32 0.0, %v2881
        %v2883 = vpop.f32.mrb[0].mxu0
        %v2884 = vpop.f32.mrb[0].mxu0
        %v2885 = vpop.f32.mrb[0].mxu0
        %2886 = vdwg.mxu0
        %s2887 = scalar_lea.vmem %s5, 80
        %v2888 = vld [vmem:[%s2887] sm:$0xf]
        %v2889 = vld [vmem:[%s2887 + $0x4] sm:$0xf]
        %v2890 = vld [vmem:[%s2887 + $0x8] sm:$0xf]
        %v2891 = vld [vmem:[%s2887 + $0xc] sm:$0xf]
        %s2892 = scalar_lea.vmem %s8, 5
        %v2893 = vld [vmem:[%s2892] sm:$0x1]
        %v2895 = vlaneseq
        %v2896 = vshrl.u32 %v2895, 7
        %v2897 = vsub.s32 0, %v2896
        %v2898 = vrot.slane %v2893, %v2897
        %v2904 = vunpack.c.l.b16 %v2888
        %v2905 = vunpack.c.l.b16 %v2889
        %v2906 = vunpack.c.l.b16 %v2890
        %v2907 = vunpack.c.l.b16 %v2891
        %v2908 = vpack.c.b16 %v2905, %v2904
        %v2909 = vpack.c.b16 %v2907, %v2906
        %2912 = vmatprep.subr.bf16.mxu0 0
        %2913 = vmatpush1.bf16.msra.mxu0 %v2908
        %2914 = vmatprep.subr.bf16.mxu0 0
        %2915 = vmatpush1.bf16.msra.mxu0 %v2909
        %2916 = vmatprep.subr.bf16.mxu0 0
        %2917 = vmatpush1.bf16.msra.mxu0 0
        %2918 = vmatprep.subr.bf16.mxu0 0
        %2919 = vmatpush1.bf16.msra.mxu0 0
        %2920 = vmatprep.subr.bf16.mxu0 0
        %2921 = vmatpush1.bf16.msra.mxu0 0
        %2922 = vmatprep.subr.bf16.mxu0 0
        %2923 = vmatpush1.bf16.msra.mxu0 0
        %2924 = vmatprep.subr.bf16.mxu0 0
        %2925 = vmatpush1.bf16.msra.mxu0 0
        %2926 = vmatprep.subr.bf16.mxu0 0
        %2927 = vmatpush1.bf16.msra.mxu0 0
        %2928 = vmatprep.subr.bf16.mxu0 0
        %2929 = vmatpush1.bf16.msra.mxu0 0
        %2930 = vmatprep.subr.bf16.mxu0 0
        %2931 = vmatpush1.bf16.msra.mxu0 0
        %2932 = vmatprep.subr.bf16.mxu0 0
        %2933 = vmatpush1.bf16.msra.mxu0 0
        %2934 = vmatprep.subr.bf16.mxu0 0
        %2935 = vmatpush1.bf16.msra.mxu0 0
        %2936 = vmatprep.subr.bf16.mxu0 0
        %2937 = vmatpush1.bf16.msra.mxu0 0
        %2938 = vmatprep.subr.bf16.mxu0 0
        %2939 = vmatpush1.bf16.msra.mxu0 0
        %2940 = vmatprep.subr.bf16.mxu0 0
        %2941 = vmatpush1.bf16.msra.mxu0 0
        %2942 = vmatprep.subr.bf16.mxu0 0
        %2943 = vmatpush1.bf16.msra.mxu0 0
        %2944 = vmatprep.mubr.bf16.mxu0 0
        %2945 = vmatmul.mubr.bf16.gmra.mrb[0].mxu0 %v2607
        %v2946 = vpop.f32.mrb[0].mxu0
        %v2947 = vadd.f32 %v2898, %v2946
        %v2948 = vpop.f32.mrb[0].mxu0
        %v2949 = vpop.f32.mrb[0].mxu0
        %v2950 = vpop.f32.mrb[0].mxu0
        %2951 = vdwg.mxu0
        %v2952 = vmul.f32 %v2947, 0.35355338
        %s2953 = scalar_lea.vmem %s6, 80
        %v2954 = vld [vmem:[%s2953] sm:$0xf]
        %v2955 = vld [vmem:[%s2953 + $0x4] sm:$0xf]
        %v2956 = vld [vmem:[%s2953 + $0x8] sm:$0xf]
        %v2957 = vld [vmem:[%s2953 + $0xc] sm:$0xf]
        %s2958 = scalar_lea.vmem %s9, 5
        %v2959 = vld [vmem:[%s2958] sm:$0x1]
        %v2961 = vlaneseq
        %v2962 = vshrl.u32 %v2961, 7
        %v2963 = vsub.s32 0, %v2962
        %v2964 = vrot.slane %v2959, %v2963
        %v2970 = vunpack.c.l.b16 %v2954
        %v2971 = vunpack.c.l.b16 %v2955
        %v2972 = vunpack.c.l.b16 %v2956
        %v2973 = vunpack.c.l.b16 %v2957
        %v2974 = vpack.c.b16 %v2971, %v2970
        %v2975 = vpack.c.b16 %v2973, %v2972
        %2978 = vmatprep.subr.bf16.mxu0 0
        %2979 = vmatpush1.bf16.msra.mxu0 %v2974
        %2980 = vmatprep.subr.bf16.mxu0 0
        %2981 = vmatpush1.bf16.msra.mxu0 %v2975
        %2982 = vmatprep.subr.bf16.mxu0 0
        %2983 = vmatpush1.bf16.msra.mxu0 0
        %2984 = vmatprep.subr.bf16.mxu0 0
        %2985 = vmatpush1.bf16.msra.mxu0 0
        %2986 = vmatprep.subr.bf16.mxu0 0
        %2987 = vmatpush1.bf16.msra.mxu0 0
        %2988 = vmatprep.subr.bf16.mxu0 0
        %2989 = vmatpush1.bf16.msra.mxu0 0
        %2990 = vmatprep.subr.bf16.mxu0 0
        %2991 = vmatpush1.bf16.msra.mxu0 0
        %2992 = vmatprep.subr.bf16.mxu0 0
        %2993 = vmatpush1.bf16.msra.mxu0 0
        %2994 = vmatprep.subr.bf16.mxu0 0
        %2995 = vmatpush1.bf16.msra.mxu0 0
        %2996 = vmatprep.subr.bf16.mxu0 0
        %2997 = vmatpush1.bf16.msra.mxu0 0
        %2998 = vmatprep.subr.bf16.mxu0 0
        %2999 = vmatpush1.bf16.msra.mxu0 0
        %3000 = vmatprep.subr.bf16.mxu0 0
        %3001 = vmatpush1.bf16.msra.mxu0 0
        %3002 = vmatprep.subr.bf16.mxu0 0
        %3003 = vmatpush1.bf16.msra.mxu0 0
        %3004 = vmatprep.subr.bf16.mxu0 0
        %3005 = vmatpush1.bf16.msra.mxu0 0
        %3006 = vmatprep.subr.bf16.mxu0 0
        %3007 = vmatpush1.bf16.msra.mxu0 0
        %3008 = vmatprep.subr.bf16.mxu0 0
        %3009 = vmatpush1.bf16.msra.mxu0 0
        %3010 = vmatprep.mubr.bf16.mxu0 0
        %3011 = vmatmul.mubr.bf16.gmra.mrb[0].mxu0 %v2607
        %v3012 = vpop.f32.mrb[0].mxu0
        %v3013 = vadd.f32 %v2964, %v3012
        %v3014 = vpop.f32.mrb[0].mxu0
        %v3015 = vpop.f32.mrb[0].mxu0
        %v3016 = vpop.f32.mrb[0].mxu0
        %3017 = vdwg.mxu0
        %s3018 = scalar_lea.vmem %s7, 80
        %v3019 = vld [vmem:[%s3018] sm:$0xf]
        %v3020 = vld [vmem:[%s3018 + $0x4] sm:$0xf]
        %v3021 = vld [vmem:[%s3018 + $0x8] sm:$0xf]
        %v3022 = vld [vmem:[%s3018 + $0xc] sm:$0xf]
        %s3023 = scalar_lea.vmem %s10, 5
        %v3024 = vld [vmem:[%s3023] sm:$0x1]
        %v3026 = vlaneseq
        %v3027 = vshrl.u32 %v3026, 7
        %v3028 = vsub.s32 0, %v3027
        %v3029 = vrot.slane %v3024, %v3028
        %v3035 = vunpack.c.l.b16 %v3019
        %v3036 = vunpack.c.l.b16 %v3020
        %v3037 = vunpack.c.l.b16 %v3021
        %v3038 = vunpack.c.l.b16 %v3022
        %v3039 = vpack.c.b16 %v3036, %v3035
        %v3040 = vpack.c.b16 %v3038, %v3037
        %3043 = vmatprep.subr.bf16.mxu0 0
        %3044 = vmatpush1.bf16.msra.mxu0 %v3039
        %3045 = vmatprep.subr.bf16.mxu0 0
        %3046 = vmatpush1.bf16.msra.mxu0 %v3040
        %3047 = vmatprep.subr.bf16.mxu0 0
        %3048 = vmatpush1.bf16.msra.mxu0 0
        %3049 = vmatprep.subr.bf16.mxu0 0
        %3050 = vmatpush1.bf16.msra.mxu0 0
        %3051 = vmatprep.subr.bf16.mxu0 0
        %3052 = vmatpush1.bf16.msra.mxu0 0
        %3053 = vmatprep.subr.bf16.mxu0 0
        %3054 = vmatpush1.bf16.msra.mxu0 0
        %3055 = vmatprep.subr.bf16.mxu0 0
        %3056 = vmatpush1.bf16.msra.mxu0 0
        %3057 = vmatprep.subr.bf16.mxu0 0
        %3058 = vmatpush1.bf16.msra.mxu0 0
        %3059 = vmatprep.subr.bf16.mxu0 0
        %3060 = vmatpush1.bf16.msra.mxu0 0
        %3061 = vmatprep.subr.bf16.mxu0 0
        %3062 = vmatpush1.bf16.msra.mxu0 0
        %3063 = vmatprep.subr.bf16.mxu0 0
        %3064 = vmatpush1.bf16.msra.mxu0 0
        %3065 = vmatprep.subr.bf16.mxu0 0
        %3066 = vmatpush1.bf16.msra.mxu0 0
        %3067 = vmatprep.subr.bf16.mxu0 0
        %3068 = vmatpush1.bf16.msra.mxu0 0
        %3069 = vmatprep.subr.bf16.mxu0 0
        %3070 = vmatpush1.bf16.msra.mxu0 0
        %3071 = vmatprep.subr.bf16.mxu0 0
        %3072 = vmatpush1.bf16.msra.mxu0 0
        %3073 = vmatprep.subr.bf16.mxu0 0
        %3074 = vmatpush1.bf16.msra.mxu0 0
        %3075 = vmatprep.mubr.bf16.mxu0 0
        %3076 = vmatmul.mubr.bf16.gmra.mrb[0].mxu0 %v2607
        %v3077 = vpop.f32.mrb[0].mxu0
        %v3078 = vadd.f32 %v3029, %v3077
        %v3079 = vpop.f32.mrb[0].mxu0
        %v3080 = vpop.f32.mrb[0].mxu0
        %v3081 = vpop.f32.mrb[0].mxu0
        %3082 = vdwg.mxu0
        %v3083 = vpack.c.bf16 %v2952, %v2952
        %v3084 = vpack.c.bf16 %v3013, %v3013
        %v3085 = vpack.c.bf16 %v3078, %v3078
        %v3087 = vsel %vm1263, %v3083, 0
        %v3090 = vsel %vm1263, %v3084, 0
        %3092 = vmatprep.subr.bf16.mxu0 0
        %3093 = vmatpush1.bf16.xpose.msra.mxu0 %v3090
        %3094 = vmatprep.subr.bf16.mxu0 0
        %3095 = vmatpush1.bf16.xpose.msra.mxu0 0
        %3096 = vmatprep.subr.bf16.mxu0 0
        %3097 = vmatpush1.bf16.xpose.msra.mxu0 0
        %3098 = vmatprep.subr.bf16.mxu0 0
        %3099 = vmatpush1.bf16.xpose.msra.mxu0 0
        %3100 = vmatprep.subr.bf16.mxu0 0
        %3101 = vmatpush1.bf16.xpose.msra.mxu0 0
        %3102 = vmatprep.subr.bf16.mxu0 0
        %3103 = vmatpush1.bf16.xpose.msra.mxu0 0
        %3104 = vmatprep.subr.bf16.mxu0 0
        %3105 = vmatpush1.bf16.xpose.msra.mxu0 0
        %3106 = vmatprep.subr.bf16.mxu0 0
        %3107 = vmatpush1.bf16.xpose.msra.mxu0 0
        %3108 = vmatprep.subr.bf16.mxu0 0
        %3109 = vmatpush1.bf16.xpose.msra.mxu0 0
        %3110 = vmatprep.subr.bf16.mxu0 0
        %3111 = vmatpush1.bf16.xpose.msra.mxu0 0
        %3112 = vmatprep.subr.bf16.mxu0 0
        %3113 = vmatpush1.bf16.xpose.msra.mxu0 0
        %3114 = vmatprep.subr.bf16.mxu0 0
        %3115 = vmatpush1.bf16.xpose.msra.mxu0 0
        %3116 = vmatprep.subr.bf16.mxu0 0
        %3117 = vmatpush1.bf16.xpose.msra.mxu0 0
        %3118 = vmatprep.subr.bf16.mxu0 0
        %3119 = vmatpush1.bf16.xpose.msra.mxu0 0
        %3120 = vmatprep.subr.bf16.mxu0 0
        %3121 = vmatpush1.bf16.xpose.msra.mxu0 0
        %3122 = vmatprep.subr.bf16.mxu0 0
        %3123 = vmatpush1.bf16.xpose.msra.mxu0 0
        %3124 = vmatprep.mubr.bf16.mxu0 0
        %3125 = vmatmul.mubr.bf16.gmra.mrb[0].mxu0 %v3087
        %v3126 = vpop.f32.mrb[0].mxu0
        %v3127 = vadd.f32 0.0, %v3126
        %v3128 = vpop.f32.mrb[0].mxu0
        %v3129 = vpop.f32.mrb[0].mxu0
        %v3130 = vpop.f32.mrb[0].mxu0
        %3131 = vdwg.mxu0
        %v3132 = vsel %vm1263, %v3127, -inf
        %3133 = vmax.xlane.f32.xlu0 %v3132
        %v3134 = vpop.xlane.xlu0 %3133
        %v3135 = vsub.f32 %v3127, %v3134
        %v3136 = vmul.f32 %v3135, 1.442695
        %v3137 = vpow.pop %v3136
        %v3138 = vsel %vm1263, %v3137, 0.0
        %3139 = vadd.xlane.f32.xlu0 %v3138
        %v3140 = vpop.xlane.xlu0 %3139
        %v3141 = vrcp.pop %v3140
        %v3142 = vmul.f32 %v3137, %v3141
        %v3143 = vpack.c.bf16 %v3142, %v3142
        %v3145 = vsel %vm1263, %v3143, 0
        %v3148 = vsel %vm1325, %v3085, 0
        %3150 = vmatprep.subr.bf16.mxu0 0
        %3151 = vmatpush1.bf16.msra.mxu0 %v3148
        %3152 = vmatprep.subr.bf16.mxu0 0
        %3153 = vmatpush1.bf16.msra.mxu0 0
        %3154 = vmatprep.subr.bf16.mxu0 0
        %3155 = vmatpush1.bf16.msra.mxu0 0
        %3156 = vmatprep.subr.bf16.mxu0 0
        %3157 = vmatpush1.bf16.msra.mxu0 0
        %3158 = vmatprep.subr.bf16.mxu0 0
        %3159 = vmatpush1.bf16.msra.mxu0 0
        %3160 = vmatprep.subr.bf16.mxu0 0
        %3161 = vmatpush1.bf16.msra.mxu0 0
        %3162 = vmatprep.subr.bf16.mxu0 0
        %3163 = vmatpush1.bf16.msra.mxu0 0
        %3164 = vmatprep.subr.bf16.mxu0 0
        %3165 = vmatpush1.bf16.msra.mxu0 0
        %3166 = vmatprep.subr.bf16.mxu0 0
        %3167 = vmatpush1.bf16.msra.mxu0 0
        %3168 = vmatprep.subr.bf16.mxu0 0
        %3169 = vmatpush1.bf16.msra.mxu0 0
        %3170 = vmatprep.subr.bf16.mxu0 0
        %3171 = vmatpush1.bf16.msra.mxu0 0
        %3172 = vmatprep.subr.bf16.mxu0 0
        %3173 = vmatpush1.bf16.msra.mxu0 0
        %3174 = vmatprep.subr.bf16.mxu0 0
        %3175 = vmatpush1.bf16.msra.mxu0 0
        %3176 = vmatprep.subr.bf16.mxu0 0
        %3177 = vmatpush1.bf16.msra.mxu0 0
        %3178 = vmatprep.subr.bf16.mxu0 0
        %3179 = vmatpush1.bf16.msra.mxu0 0
        %3180 = vmatprep.subr.bf16.mxu0 0
        %3181 = vmatpush1.bf16.msra.mxu0 0
        %3182 = vmatprep.mubr.bf16.mxu0 0
        %3183 = vmatmul.mubr.bf16.gmra.mrb[0].mxu0 %v3145
        %v3184 = vpop.f32.mrb[0].mxu0
        %v3185 = vadd.f32 0.0, %v3184
        %v3186 = vpop.f32.mrb[0].mxu0
        %v3187 = vpop.f32.mrb[0].mxu0
        %v3188 = vpop.f32.mrb[0].mxu0
        %3189 = vdwg.mxu0
        %s3190 = scalar_lea.vmem %s5, 96
        %v3191 = vld [vmem:[%s3190] sm:$0xf]
        %v3192 = vld [vmem:[%s3190 + $0x4] sm:$0xf]
        %v3193 = vld [vmem:[%s3190 + $0x8] sm:$0xf]
        %v3194 = vld [vmem:[%s3190 + $0xc] sm:$0xf]
        %s3195 = scalar_lea.vmem %s8, 6
        %v3196 = vld [vmem:[%s3195] sm:$0x1]
        %v3198 = vlaneseq
        %v3199 = vshrl.u32 %v3198, 7
        %v3200 = vsub.s32 0, %v3199
        %v3201 = vrot.slane %v3196, %v3200
        %v3207 = vunpack.c.l.b16 %v3191
        %v3208 = vunpack.c.l.b16 %v3192
        %v3209 = vunpack.c.l.b16 %v3193
        %v3210 = vunpack.c.l.b16 %v3194
        %v3211 = vpack.c.b16 %v3208, %v3207
        %v3212 = vpack.c.b16 %v3210, %v3209
        %3215 = vmatprep.subr.bf16.mxu0 0
        %3216 = vmatpush1.bf16.msra.mxu0 %v3211
        %3217 = vmatprep.subr.bf16.mxu0 0
        %3218 = vmatpush1.bf16.msra.mxu0 %v3212
        %3219 = vmatprep.subr.bf16.mxu0 0
        %3220 = vmatpush1.bf16.msra.mxu0 0
        %3221 = vmatprep.subr.bf16.mxu0 0
        %3222 = vmatpush1.bf16.msra.mxu0 0
        %3223 = vmatprep.subr.bf16.mxu0 0
        %3224 = vmatpush1.bf16.msra.mxu0 0
        %3225 = vmatprep.subr.bf16.mxu0 0
        %3226 = vmatpush1.bf16.msra.mxu0 0
        %3227 = vmatprep.subr.bf16.mxu0 0
        %3228 = vmatpush1.bf16.msra.mxu0 0
        %3229 = vmatprep.subr.bf16.mxu0 0
        %3230 = vmatpush1.bf16.msra.mxu0 0
        %3231 = vmatprep.subr.bf16.mxu0 0
        %3232 = vmatpush1.bf16.msra.mxu0 0
        %3233 = vmatprep.subr.bf16.mxu0 0
        %3234 = vmatpush1.bf16.msra.mxu0 0
        %3235 = vmatprep.subr.bf16.mxu0 0
        %3236 = vmatpush1.bf16.msra.mxu0 0
        %3237 = vmatprep.subr.bf16.mxu0 0
        %3238 = vmatpush1.bf16.msra.mxu0 0
        %3239 = vmatprep.subr.bf16.mxu0 0
        %3240 = vmatpush1.bf16.msra.mxu0 0
        %3241 = vmatprep.subr.bf16.mxu0 0
        %3242 = vmatpush1.bf16.msra.mxu0 0
        %3243 = vmatprep.subr.bf16.mxu0 0
        %3244 = vmatpush1.bf16.msra.mxu0 0
        %3245 = vmatprep.subr.bf16.mxu0 0
        %3246 = vmatpush1.bf16.msra.mxu0 0
        %3247 = vmatprep.mubr.bf16.mxu0 0
        %3248 = vmatmul.mubr.bf16.gmra.mrb[0].mxu0 %v2607
        %v3249 = vpop.f32.mrb[0].mxu0
        %v3250 = vadd.f32 %v3201, %v3249
        %v3251 = vpop.f32.mrb[0].mxu0
        %v3252 = vpop.f32.mrb[0].mxu0
        %v3253 = vpop.f32.mrb[0].mxu0
        %3254 = vdwg.mxu0
        %v3255 = vmul.f32 %v3250, 0.35355338
        %s3256 = scalar_lea.vmem %s6, 96
        %v3257 = vld [vmem:[%s3256] sm:$0xf]
        %v3258 = vld [vmem:[%s3256 + $0x4] sm:$0xf]
        %v3259 = vld [vmem:[%s3256 + $0x8] sm:$0xf]
        %v3260 = vld [vmem:[%s3256 + $0xc] sm:$0xf]
        %s3261 = scalar_lea.vmem %s9, 6
        %v3262 = vld [vmem:[%s3261] sm:$0x1]
        %v3264 = vlaneseq
        %v3265 = vshrl.u32 %v3264, 7
        %v3266 = vsub.s32 0, %v3265
        %v3267 = vrot.slane %v3262, %v3266
        %v3273 = vunpack.c.l.b16 %v3257
        %v3274 = vunpack.c.l.b16 %v3258
        %v3275 = vunpack.c.l.b16 %v3259
        %v3276 = vunpack.c.l.b16 %v3260
        %v3277 = vpack.c.b16 %v3274, %v3273
        %v3278 = vpack.c.b16 %v3276, %v3275
        %3281 = vmatprep.subr.bf16.mxu0 0
        %3282 = vmatpush1.bf16.msra.mxu0 %v3277
        %3283 = vmatprep.subr.bf16.mxu0 0
        %3284 = vmatpush1.bf16.msra.mxu0 %v3278
        %3285 = vmatprep.subr.bf16.mxu0 0
        %3286 = vmatpush1.bf16.msra.mxu0 0
        %3287 = vmatprep.subr.bf16.mxu0 0
        %3288 = vmatpush1.bf16.msra.mxu0 0
        %3289 = vmatprep.subr.bf16.mxu0 0
        %3290 = vmatpush1.bf16.msra.mxu0 0
        %3291 = vmatprep.subr.bf16.mxu0 0
        %3292 = vmatpush1.bf16.msra.mxu0 0
        %3293 = vmatprep.subr.bf16.mxu0 0
        %3294 = vmatpush1.bf16.msra.mxu0 0
        %3295 = vmatprep.subr.bf16.mxu0 0
        %3296 = vmatpush1.bf16.msra.mxu0 0
        %3297 = vmatprep.subr.bf16.mxu0 0
        %3298 = vmatpush1.bf16.msra.mxu0 0
        %3299 = vmatprep.subr.bf16.mxu0 0
        %3300 = vmatpush1.bf16.msra.mxu0 0
        %3301 = vmatprep.subr.bf16.mxu0 0
        %3302 = vmatpush1.bf16.msra.mxu0 0
        %3303 = vmatprep.subr.bf16.mxu0 0
        %3304 = vmatpush1.bf16.msra.mxu0 0
        %3305 = vmatprep.subr.bf16.mxu0 0
        %3306 = vmatpush1.bf16.msra.mxu0 0
        %3307 = vmatprep.subr.bf16.mxu0 0
        %3308 = vmatpush1.bf16.msra.mxu0 0
        %3309 = vmatprep.subr.bf16.mxu0 0
        %3310 = vmatpush1.bf16.msra.mxu0 0
        %3311 = vmatprep.subr.bf16.mxu0 0
        %3312 = vmatpush1.bf16.msra.mxu0 0
        %3313 = vmatprep.mubr.bf16.mxu0 0
        %3314 = vmatmul.mubr.bf16.gmra.mrb[0].mxu0 %v2607
        %v3315 = vpop.f32.mrb[0].mxu0
        %v3316 = vadd.f32 %v3267, %v3315
        %v3317 = vpop.f32.mrb[0].mxu0
        %v3318 = vpop.f32.mrb[0].mxu0
        %v3319 = vpop.f32.mrb[0].mxu0
        %3320 = vdwg.mxu0
        %s3321 = scalar_lea.vmem %s7, 96
        %v3322 = vld [vmem:[%s3321] sm:$0xf]
        %v3323 = vld [vmem:[%s3321 + $0x4] sm:$0xf]
        %v3324 = vld [vmem:[%s3321 + $0x8] sm:$0xf]
        %v3325 = vld [vmem:[%s3321 + $0xc] sm:$0xf]
        %s3326 = scalar_lea.vmem %s10, 6
        %v3327 = vld [vmem:[%s3326] sm:$0x1]
        %v3329 = vlaneseq
        %v3330 = vshrl.u32 %v3329, 7
        %v3331 = vsub.s32 0, %v3330
        %v3332 = vrot.slane %v3327, %v3331
        %v3338 = vunpack.c.l.b16 %v3322
        %v3339 = vunpack.c.l.b16 %v3323
        %v3340 = vunpack.c.l.b16 %v3324
        %v3341 = vunpack.c.l.b16 %v3325
        %v3342 = vpack.c.b16 %v3339, %v3338
        %v3343 = vpack.c.b16 %v3341, %v3340
        %3346 = vmatprep.subr.bf16.mxu0 0
        %3347 = vmatpush1.bf16.msra.mxu0 %v3342
        %3348 = vmatprep.subr.bf16.mxu0 0
        %3349 = vmatpush1.bf16.msra.mxu0 %v3343
        %3350 = vmatprep.subr.bf16.mxu0 0
        %3351 = vmatpush1.bf16.msra.mxu0 0
        %3352 = vmatprep.subr.bf16.mxu0 0
        %3353 = vmatpush1.bf16.msra.mxu0 0
        %3354 = vmatprep.subr.bf16.mxu0 0
        %3355 = vmatpush1.bf16.msra.mxu0 0
        %3356 = vmatprep.subr.bf16.mxu0 0
        %3357 = vmatpush1.bf16.msra.mxu0 0
        %3358 = vmatprep.subr.bf16.mxu0 0
        %3359 = vmatpush1.bf16.msra.mxu0 0
        %3360 = vmatprep.subr.bf16.mxu0 0
        %3361 = vmatpush1.bf16.msra.mxu0 0
        %3362 = vmatprep.subr.bf16.mxu0 0
        %3363 = vmatpush1.bf16.msra.mxu0 0
        %3364 = vmatprep.subr.bf16.mxu0 0
        %3365 = vmatpush1.bf16.msra.mxu0 0
        %3366 = vmatprep.subr.bf16.mxu0 0
        %3367 = vmatpush1.bf16.msra.mxu0 0
        %3368 = vmatprep.subr.bf16.mxu0 0
        %3369 = vmatpush1.bf16.msra.mxu0 0
        %3370 = vmatprep.subr.bf16.mxu0 0
        %3371 = vmatpush1.bf16.msra.mxu0 0
        %3372 = vmatprep.subr.bf16.mxu0 0
        %3373 = vmatpush1.bf16.msra.mxu0 0
        %3374 = vmatprep.subr.bf16.mxu0 0
        %3375 = vmatpush1.bf16.msra.mxu0 0
        %3376 = vmatprep.subr.bf16.mxu0 0
        %3377 = vmatpush1.bf16.msra.mxu0 0
        %3378 = vmatprep.mubr.bf16.mxu0 0
        %3379 = vmatmul.mubr.bf16.gmra.mrb[0].mxu0 %v2607
        %v3380 = vpop.f32.mrb[0].mxu0
        %v3381 = vadd.f32 %v3332, %v3380
        %v3382 = vpop.f32.mrb[0].mxu0
        %v3383 = vpop.f32.mrb[0].mxu0
        %v3384 = vpop.f32.mrb[0].mxu0
        %3385 = vdwg.mxu0
        %v3386 = vpack.c.bf16 %v3255, %v3255
        %v3387 = vpack.c.bf16 %v3316, %v3316
        %v3388 = vpack.c.bf16 %v3381, %v3381
        %v3390 = vsel %vm1263, %v3386, 0
        %v3393 = vsel %vm1263, %v3387, 0
        %3395 = vmatprep.subr.bf16.mxu0 0
        %3396 = vmatpush1.bf16.xpose.msra.mxu0 %v3393
        %3397 = vmatprep.subr.bf16.mxu0 0
        %3398 = vmatpush1.bf16.xpose.msra.mxu0 0
        %3399 = vmatprep.subr.bf16.mxu0 0
        %3400 = vmatpush1.bf16.xpose.msra.mxu0 0
        %3401 = vmatprep.subr.bf16.mxu0 0
        %3402 = vmatpush1.bf16.xpose.msra.mxu0 0
        %3403 = vmatprep.subr.bf16.mxu0 0
        %3404 = vmatpush1.bf16.xpose.msra.mxu0 0
        %3405 = vmatprep.subr.bf16.mxu0 0
        %3406 = vmatpush1.bf16.xpose.msra.mxu0 0
        %3407 = vmatprep.subr.bf16.mxu0 0
        %3408 = vmatpush1.bf16.xpose.msra.mxu0 0
        %3409 = vmatprep.subr.bf16.mxu0 0
        %3410 = vmatpush1.bf16.xpose.msra.mxu0 0
        %3411 = vmatprep.subr.bf16.mxu0 0
        %3412 = vmatpush1.bf16.xpose.msra.mxu0 0
        %3413 = vmatprep.subr.bf16.mxu0 0
        %3414 = vmatpush1.bf16.xpose.msra.mxu0 0
        %3415 = vmatprep.subr.bf16.mxu0 0
        %3416 = vmatpush1.bf16.xpose.msra.mxu0 0
        %3417 = vmatprep.subr.bf16.mxu0 0
        %3418 = vmatpush1.bf16.xpose.msra.mxu0 0
        %3419 = vmatprep.subr.bf16.mxu0 0
        %3420 = vmatpush1.bf16.xpose.msra.mxu0 0
        %3421 = vmatprep.subr.bf16.mxu0 0
        %3422 = vmatpush1.bf16.xpose.msra.mxu0 0
        %3423 = vmatprep.subr.bf16.mxu0 0
        %3424 = vmatpush1.bf16.xpose.msra.mxu0 0
        %3425 = vmatprep.subr.bf16.mxu0 0
        %3426 = vmatpush1.bf16.xpose.msra.mxu0 0
        %3427 = vmatprep.mubr.bf16.mxu0 0
        %3428 = vmatmul.mubr.bf16.gmra.mrb[0].mxu0 %v3390
        %v3429 = vpop.f32.mrb[0].mxu0
        %v3430 = vadd.f32 0.0, %v3429
        %v3431 = vpop.f32.mrb[0].mxu0
        %v3432 = vpop.f32.mrb[0].mxu0
        %v3433 = vpop.f32.mrb[0].mxu0
        %3434 = vdwg.mxu0
        %v3435 = vsel %vm1263, %v3430, -inf
        %3436 = vmax.xlane.f32.xlu0 %v3435
        %v3437 = vpop.xlane.xlu0 %3436
        %v3438 = vsub.f32 %v3430, %v3437
        %v3439 = vmul.f32 %v3438, 1.442695
        %v3440 = vpow.pop %v3439
        %v3441 = vsel %vm1263, %v3440, 0.0
        %3442 = vadd.xlane.f32.xlu0 %v3441
        %v3443 = vpop.xlane.xlu0 %3442
        %v3444 = vrcp.pop %v3443
        %v3445 = vmul.f32 %v3440, %v3444
        %v3446 = vpack.c.bf16 %v3445, %v3445
        %v3448 = vsel %vm1263, %v3446, 0
        %v3451 = vsel %vm1325, %v3388, 0
        %3453 = vmatprep.subr.bf16.mxu0 0
        %3454 = vmatpush1.bf16.msra.mxu0 %v3451
        %3455 = vmatprep.subr.bf16.mxu0 0
        %3456 = vmatpush1.bf16.msra.mxu0 0
        %3457 = vmatprep.subr.bf16.mxu0 0
        %3458 = vmatpush1.bf16.msra.mxu0 0
        %3459 = vmatprep.subr.bf16.mxu0 0
        %3460 = vmatpush1.bf16.msra.mxu0 0
        %3461 = vmatprep.subr.bf16.mxu0 0
        %3462 = vmatpush1.bf16.msra.mxu0 0
        %3463 = vmatprep.subr.bf16.mxu0 0
        %3464 = vmatpush1.bf16.msra.mxu0 0
        %3465 = vmatprep.subr.bf16.mxu0 0
        %3466 = vmatpush1.bf16.msra.mxu0 0
        %3467 = vmatprep.subr.bf16.mxu0 0
        %3468 = vmatpush1.bf16.msra.mxu0 0
        %3469 = vmatprep.subr.bf16.mxu0 0
        %3470 = vmatpush1.bf16.msra.mxu0 0
        %3471 = vmatprep.subr.bf16.mxu0 0
        %3472 = vmatpush1.bf16.msra.mxu0 0
        %3473 = vmatprep.subr.bf16.mxu0 0
        %3474 = vmatpush1.bf16.msra.mxu0 0
        %3475 = vmatprep.subr.bf16.mxu0 0
        %3476 = vmatpush1.bf16.msra.mxu0 0
        %3477 = vmatprep.subr.bf16.mxu0 0
        %3478 = vmatpush1.bf16.msra.mxu0 0
        %3479 = vmatprep.subr.bf16.mxu0 0
        %3480 = vmatpush1.bf16.msra.mxu0 0
        %3481 = vmatprep.subr.bf16.mxu0 0
        %3482 = vmatpush1.bf16.msra.mxu0 0
        %3483 = vmatprep.subr.bf16.mxu0 0
        %3484 = vmatpush1.bf16.msra.mxu0 0
        %3485 = vmatprep.mubr.bf16.mxu0 0
        %3486 = vmatmul.mubr.bf16.gmra.mrb[0].mxu0 %v3448
        %v3487 = vpop.f32.mrb[0].mxu0
        %v3488 = vadd.f32 0.0, %v3487
        %v3489 = vpop.f32.mrb[0].mxu0
        %v3490 = vpop.f32.mrb[0].mxu0
        %v3491 = vpop.f32.mrb[0].mxu0
        %3492 = vdwg.mxu0
        %s3493 = scalar_lea.vmem %s5, 112
        %v3494 = vld [vmem:[%s3493] sm:$0xf]
        %v3495 = vld [vmem:[%s3493 + $0x4] sm:$0xf]
        %v3496 = vld [vmem:[%s3493 + $0x8] sm:$0xf]
        %v3497 = vld [vmem:[%s3493 + $0xc] sm:$0xf]
        %s3498 = scalar_lea.vmem %s8, 7
        %v3499 = vld [vmem:[%s3498] sm:$0x1]
        %v3501 = vlaneseq
        %v3502 = vshrl.u32 %v3501, 7
        %v3503 = vsub.s32 0, %v3502
        %v3504 = vrot.slane %v3499, %v3503
        %v3510 = vunpack.c.l.b16 %v3494
        %v3511 = vunpack.c.l.b16 %v3495
        %v3512 = vunpack.c.l.b16 %v3496
        %v3513 = vunpack.c.l.b16 %v3497
        %v3514 = vpack.c.b16 %v3511, %v3510
        %v3515 = vpack.c.b16 %v3513, %v3512
        %3518 = vmatprep.subr.bf16.mxu0 0
        %3519 = vmatpush1.bf16.msra.mxu0 %v3514
        %3520 = vmatprep.subr.bf16.mxu0 0
        %3521 = vmatpush1.bf16.msra.mxu0 %v3515
        %3522 = vmatprep.subr.bf16.mxu0 0
        %3523 = vmatpush1.bf16.msra.mxu0 0
        %3524 = vmatprep.subr.bf16.mxu0 0
        %3525 = vmatpush1.bf16.msra.mxu0 0
        %3526 = vmatprep.subr.bf16.mxu0 0
        %3527 = vmatpush1.bf16.msra.mxu0 0
        %3528 = vmatprep.subr.bf16.mxu0 0
        %3529 = vmatpush1.bf16.msra.mxu0 0
        %3530 = vmatprep.subr.bf16.mxu0 0
        %3531 = vmatpush1.bf16.msra.mxu0 0
        %3532 = vmatprep.subr.bf16.mxu0 0
        %3533 = vmatpush1.bf16.msra.mxu0 0
        %3534 = vmatprep.subr.bf16.mxu0 0
        %3535 = vmatpush1.bf16.msra.mxu0 0
        %3536 = vmatprep.subr.bf16.mxu0 0
        %3537 = vmatpush1.bf16.msra.mxu0 0
        %3538 = vmatprep.subr.bf16.mxu0 0
        %3539 = vmatpush1.bf16.msra.mxu0 0
        %3540 = vmatprep.subr.bf16.mxu0 0
        %3541 = vmatpush1.bf16.msra.mxu0 0
        %3542 = vmatprep.subr.bf16.mxu0 0
        %3543 = vmatpush1.bf16.msra.mxu0 0
        %3544 = vmatprep.subr.bf16.mxu0 0
        %3545 = vmatpush1.bf16.msra.mxu0 0
        %3546 = vmatprep.subr.bf16.mxu0 0
        %3547 = vmatpush1.bf16.msra.mxu0 0
        %3548 = vmatprep.subr.bf16.mxu0 0
        %3549 = vmatpush1.bf16.msra.mxu0 0
        %3550 = vmatprep.mubr.bf16.mxu0 0
        %3551 = vmatmul.mubr.bf16.gmra.mrb[0].mxu0 %v2607
        %v3552 = vpop.f32.mrb[0].mxu0
        %v3553 = vadd.f32 %v3504, %v3552
        %v3554 = vpop.f32.mrb[0].mxu0
        %v3555 = vpop.f32.mrb[0].mxu0
        %v3556 = vpop.f32.mrb[0].mxu0
        %3557 = vdwg.mxu0
        %v3558 = vmul.f32 %v3553, 0.35355338
        %s3559 = scalar_lea.vmem %s6, 112
        %v3560 = vld [vmem:[%s3559] sm:$0xf]
        %v3561 = vld [vmem:[%s3559 + $0x4] sm:$0xf]
        %v3562 = vld [vmem:[%s3559 + $0x8] sm:$0xf]
        %v3563 = vld [vmem:[%s3559 + $0xc] sm:$0xf]
        %s3564 = scalar_lea.vmem %s9, 7
        %v3565 = vld [vmem:[%s3564] sm:$0x1]
        %v3567 = vlaneseq
        %v3568 = vshrl.u32 %v3567, 7
        %v3569 = vsub.s32 0, %v3568
        %v3570 = vrot.slane %v3565, %v3569
        %v3576 = vunpack.c.l.b16 %v3560
        %v3577 = vunpack.c.l.b16 %v3561
        %v3578 = vunpack.c.l.b16 %v3562
        %v3579 = vunpack.c.l.b16 %v3563
        %v3580 = vpack.c.b16 %v3577, %v3576
        %v3581 = vpack.c.b16 %v3579, %v3578
        %3584 = vmatprep.subr.bf16.mxu0 0
        %3585 = vmatpush1.bf16.msra.mxu0 %v3580
        %3586 = vmatprep.subr.bf16.mxu0 0
        %3587 = vmatpush1.bf16.msra.mxu0 %v3581
        %3588 = vmatprep.subr.bf16.mxu0 0
        %3589 = vmatpush1.bf16.msra.mxu0 0
        %3590 = vmatprep.subr.bf16.mxu0 0
        %3591 = vmatpush1.bf16.msra.mxu0 0
        %3592 = vmatprep.subr.bf16.mxu0 0
        %3593 = vmatpush1.bf16.msra.mxu0 0
        %3594 = vmatprep.subr.bf16.mxu0 0
        %3595 = vmatpush1.bf16.msra.mxu0 0
        %3596 = vmatprep.subr.bf16.mxu0 0
        %3597 = vmatpush1.bf16.msra.mxu0 0
        %3598 = vmatprep.subr.bf16.mxu0 0
        %3599 = vmatpush1.bf16.msra.mxu0 0
        %3600 = vmatprep.subr.bf16.mxu0 0
        %3601 = vmatpush1.bf16.msra.mxu0 0
        %3602 = vmatprep.subr.bf16.mxu0 0
        %3603 = vmatpush1.bf16.msra.mxu0 0
        %3604 = vmatprep.subr.bf16.mxu0 0
        %3605 = vmatpush1.bf16.msra.mxu0 0
        %3606 = vmatprep.subr.bf16.mxu0 0
        %3607 = vmatpush1.bf16.msra.mxu0 0
        %3608 = vmatprep.subr.bf16.mxu0 0
        %3609 = vmatpush1.bf16.msra.mxu0 0
        %3610 = vmatprep.subr.bf16.mxu0 0
        %3611 = vmatpush1.bf16.msra.mxu0 0
        %3612 = vmatprep.subr.bf16.mxu0 0
        %3613 = vmatpush1.bf16.msra.mxu0 0
        %3614 = vmatprep.subr.bf16.mxu0 0
        %3615 = vmatpush1.bf16.msra.mxu0 0
        %3616 = vmatprep.mubr.bf16.mxu0 0
        %3617 = vmatmul.mubr.bf16.gmra.mrb[0].mxu0 %v2607
        %v3618 = vpop.f32.mrb[0].mxu0
        %v3619 = vadd.f32 %v3570, %v3618
        %v3620 = vpop.f32.mrb[0].mxu0
        %v3621 = vpop.f32.mrb[0].mxu0
        %v3622 = vpop.f32.mrb[0].mxu0
        %3623 = vdwg.mxu0
        %s3624 = scalar_lea.vmem %s7, 112
        %v3625 = vld [vmem:[%s3624] sm:$0xf]
        %v3626 = vld [vmem:[%s3624 + $0x4] sm:$0xf]
        %v3627 = vld [vmem:[%s3624 + $0x8] sm:$0xf]
        %v3628 = vld [vmem:[%s3624 + $0xc] sm:$0xf]
        %s3629 = scalar_lea.vmem %s10, 7
        %v3630 = vld [vmem:[%s3629] sm:$0x1]
        %v3632 = vlaneseq
        %v3633 = vshrl.u32 %v3632, 7
        %v3634 = vsub.s32 0, %v3633
        %v3635 = vrot.slane %v3630, %v3634
        %v3641 = vunpack.c.l.b16 %v3625
        %v3642 = vunpack.c.l.b16 %v3626
        %v3643 = vunpack.c.l.b16 %v3627
        %v3644 = vunpack.c.l.b16 %v3628
        %v3645 = vpack.c.b16 %v3642, %v3641
        %v3646 = vpack.c.b16 %v3644, %v3643
        %3649 = vmatprep.subr.bf16.mxu0 0
        %3650 = vmatpush1.bf16.msra.mxu0 %v3645
        %3651 = vmatprep.subr.bf16.mxu0 0
        %3652 = vmatpush1.bf16.msra.mxu0 %v3646
        %3653 = vmatprep.subr.bf16.mxu0 0
        %3654 = vmatpush1.bf16.msra.mxu0 0
        %3655 = vmatprep.subr.bf16.mxu0 0
        %3656 = vmatpush1.bf16.msra.mxu0 0
        %3657 = vmatprep.subr.bf16.mxu0 0
        %3658 = vmatpush1.bf16.msra.mxu0 0
        %3659 = vmatprep.subr.bf16.mxu0 0
        %3660 = vmatpush1.bf16.msra.mxu0 0
        %3661 = vmatprep.subr.bf16.mxu0 0
        %3662 = vmatpush1.bf16.msra.mxu0 0
        %3663 = vmatprep.subr.bf16.mxu0 0
        %3664 = vmatpush1.bf16.msra.mxu0 0
        %3665 = vmatprep.subr.bf16.mxu0 0
        %3666 = vmatpush1.bf16.msra.mxu0 0
        %3667 = vmatprep.subr.bf16.mxu0 0
        %3668 = vmatpush1.bf16.msra.mxu0 0
        %3669 = vmatprep.subr.bf16.mxu0 0
        %3670 = vmatpush1.bf16.msra.mxu0 0
        %3671 = vmatprep.subr.bf16.mxu0 0
        %3672 = vmatpush1.bf16.msra.mxu0 0
        %3673 = vmatprep.subr.bf16.mxu0 0
        %3674 = vmatpush1.bf16.msra.mxu0 0
        %3675 = vmatprep.subr.bf16.mxu0 0
        %3676 = vmatpush1.bf16.msra.mxu0 0
        %3677 = vmatprep.subr.bf16.mxu0 0
        %3678 = vmatpush1.bf16.msra.mxu0 0
        %3679 = vmatprep.subr.bf16.mxu0 0
        %3680 = vmatpush1.bf16.msra.mxu0 0
        %3681 = vmatprep.mubr.bf16.mxu0 0
        %3682 = vmatmul.mubr.bf16.gmra.mrb[0].mxu0 %v2607
        %v3683 = vpop.f32.mrb[0].mxu0
        %v3684 = vadd.f32 %v3635, %v3683
        %v3685 = vpop.f32.mrb[0].mxu0
        %v3686 = vpop.f32.mrb[0].mxu0
        %v3687 = vpop.f32.mrb[0].mxu0
        %3688 = vdwg.mxu0
        %v3689 = vpack.c.bf16 %v3558, %v3558
        %v3690 = vpack.c.bf16 %v3619, %v3619
        %v3691 = vpack.c.bf16 %v3684, %v3684
        %v3693 = vsel %vm1263, %v3689, 0
        %v3696 = vsel %vm1263, %v3690, 0
        %3698 = vmatprep.subr.bf16.mxu0 0
        %3699 = vmatpush1.bf16.xpose.msra.mxu0 %v3696
        %3700 = vmatprep.subr.bf16.mxu0 0
        %3701 = vmatpush1.bf16.xpose.msra.mxu0 0
        %3702 = vmatprep.subr.bf16.mxu0 0
        %3703 = vmatpush1.bf16.xpose.msra.mxu0 0
        %3704 = vmatprep.subr.bf16.mxu0 0
        %3705 = vmatpush1.bf16.xpose.msra.mxu0 0
        %3706 = vmatprep.subr.bf16.mxu0 0
        %3707 = vmatpush1.bf16.xpose.msra.mxu0 0
        %3708 = vmatprep.subr.bf16.mxu0 0
        %3709 = vmatpush1.bf16.xpose.msra.mxu0 0
        %3710 = vmatprep.subr.bf16.mxu0 0
        %3711 = vmatpush1.bf16.xpose.msra.mxu0 0
        %3712 = vmatprep.subr.bf16.mxu0 0
        %3713 = vmatpush1.bf16.xpose.msra.mxu0 0
        %3714 = vmatprep.subr.bf16.mxu0 0
        %3715 = vmatpush1.bf16.xpose.msra.mxu0 0
        %3716 = vmatprep.subr.bf16.mxu0 0
        %3717 = vmatpush1.bf16.xpose.msra.mxu0 0
        %3718 = vmatprep.subr.bf16.mxu0 0
        %3719 = vmatpush1.bf16.xpose.msra.mxu0 0
        %3720 = vmatprep.subr.bf16.mxu0 0
        %3721 = vmatpush1.bf16.xpose.msra.mxu0 0
        %3722 = vmatprep.subr.bf16.mxu0 0
        %3723 = vmatpush1.bf16.xpose.msra.mxu0 0
        %3724 = vmatprep.subr.bf16.mxu0 0
        %3725 = vmatpush1.bf16.xpose.msra.mxu0 0
        %3726 = vmatprep.subr.bf16.mxu0 0
        %3727 = vmatpush1.bf16.xpose.msra.mxu0 0
        %3728 = vmatprep.subr.bf16.mxu0 0
        %3729 = vmatpush1.bf16.xpose.msra.mxu0 0
        %3730 = vmatprep.mubr.bf16.mxu0 0
        %3731 = vmatmul.mubr.bf16.gmra.mrb[0].mxu0 %v3693
        %v3732 = vpop.f32.mrb[0].mxu0
        %v3733 = vadd.f32 0.0, %v3732
        %v3734 = vpop.f32.mrb[0].mxu0
        %v3735 = vpop.f32.mrb[0].mxu0
        %v3736 = vpop.f32.mrb[0].mxu0
        %3737 = vdwg.mxu0
        %v3738 = vsel %vm1263, %v3733, -inf
        %3739 = vmax.xlane.f32.xlu0 %v3738
        %v3740 = vpop.xlane.xlu0 %3739
        %v3741 = vsub.f32 %v3733, %v3740
        %v3742 = vmul.f32 %v3741, 1.442695
        %v3743 = vpow.pop %v3742
        %v3744 = vsel %vm1263, %v3743, 0.0
        %3745 = vadd.xlane.f32.xlu0 %v3744
        %v3746 = vpop.xlane.xlu0 %3745
        %v3747 = vrcp.pop %v3746
        %v3748 = vmul.f32 %v3743, %v3747
        %v3749 = vpack.c.bf16 %v3748, %v3748
        %v3751 = vsel %vm1263, %v3749, 0
        %v3754 = vsel %vm1325, %v3691, 0
        %3756 = vmatprep.subr.bf16.mxu0 0
        %3757 = vmatpush1.bf16.msra.mxu0 %v3754
        %3758 = vmatprep.subr.bf16.mxu0 0
        %3759 = vmatpush1.bf16.msra.mxu0 0
        %3760 = vmatprep.subr.bf16.mxu0 0
        %3761 = vmatpush1.bf16.msra.mxu0 0
        %3762 = vmatprep.subr.bf16.mxu0 0
        %3763 = vmatpush1.bf16.msra.mxu0 0
        %3764 = vmatprep.subr.bf16.mxu0 0
        %3765 = vmatpush1.bf16.msra.mxu0 0
        %3766 = vmatprep.subr.bf16.mxu0 0
        %3767 = vmatpush1.bf16.msra.mxu0 0
        %3768 = vmatprep.subr.bf16.mxu0 0
        %3769 = vmatpush1.bf16.msra.mxu0 0
        %3770 = vmatprep.subr.bf16.mxu0 0
        %3771 = vmatpush1.bf16.msra.mxu0 0
        %3772 = vmatprep.subr.bf16.mxu0 0
        %3773 = vmatpush1.bf16.msra.mxu0 0
        %3774 = vmatprep.subr.bf16.mxu0 0
        %3775 = vmatpush1.bf16.msra.mxu0 0
        %3776 = vmatprep.subr.bf16.mxu0 0
        %3777 = vmatpush1.bf16.msra.mxu0 0
        %3778 = vmatprep.subr.bf16.mxu0 0
        %3779 = vmatpush1.bf16.msra.mxu0 0
        %3780 = vmatprep.subr.bf16.mxu0 0
        %3781 = vmatpush1.bf16.msra.mxu0 0
        %3782 = vmatprep.subr.bf16.mxu0 0
        %3783 = vmatpush1.bf16.msra.mxu0 0
        %3784 = vmatprep.subr.bf16.mxu0 0
        %3785 = vmatpush1.bf16.msra.mxu0 0
        %3786 = vmatprep.subr.bf16.mxu0 0
        %3787 = vmatpush1.bf16.msra.mxu0 0
        %3788 = vmatprep.mubr.bf16.mxu0 0
        %3789 = vmatmul.mubr.bf16.gmra.mrb[0].mxu0 %v3751
        %v3790 = vpop.f32.mrb[0].mxu0
        %v3791 = vadd.f32 0.0, %v3790
        %v3792 = vpop.f32.mrb[0].mxu0
        %v3793 = vpop.f32.mrb[0].mxu0
        %v3794 = vpop.f32.mrb[0].mxu0
        %3795 = vdwg.mxu0
        %3797 = vrot.lane.b32.xlu0 %v3185, 8
        %v3798 = vpop.permute.xlu0 %3797
        %3801 = vrot.lane.b32.xlu0 %v3488, 16
        %v3802 = vpop.permute.xlu0 %3801
        %3805 = vrot.lane.b32.xlu0 %v3791, 24
        %v3806 = vpop.permute.xlu0 %3805
        %v3808 = vsel %vm1263, %v2882, %v3798
        %v3809 = vsel %vm2291, %v3808, %v3802
        %v3810 = vsel %vm2293, %v3809, %v3806
        %v3811 = vpack.c.bf16 %v3810, %v3810
        %s3812 = scalar_lea.vmem %s11, 16
        %v3813 = vld [vmem:[%s3812] sm:$0xf]
        %v3814 = vld [vmem:[%s3812 + $0x4] sm:$0xf]
        %v3815 = vld [vmem:[%s3812 + $0x8] sm:$0xf]
        %v3816 = vld [vmem:[%s3812 + $0xc] sm:$0xf]
        %s3817 = scalar_lea.vmem %s12, 1
        %v3818 = vld [vmem:[%s3817] sm:$0x1]
        %v3820 = vlaneseq
        %v3821 = vshrl.u32 %v3820, 7
        %v3822 = vsub.s32 0, %v3821
        %v3823 = vrot.slane %v3818, %v3822
        %v3829 = vunpack.c.l.b16 %v3813
        %v3830 = vunpack.c.l.b16 %v3814
        %v3831 = vunpack.c.l.b16 %v3815
        %v3832 = vunpack.c.l.b16 %v3816
        %v3833 = vpack.c.b16 %v3830, %v3829
        %v3834 = vpack.c.b16 %v3832, %v3831
        %v3838 = vsel %vm1037, %v3811, 0
        %3840 = vmatprep.subr.bf16.mxu0 0
        %3841 = vmatpush1.bf16.msra.mxu0 %v3833
        %3842 = vmatprep.subr.bf16.mxu0 0
        %3843 = vmatpush1.bf16.msra.mxu0 %v3834
        %3844 = vmatprep.subr.bf16.mxu0 0
        %3845 = vmatpush1.bf16.msra.mxu0 0
        %3846 = vmatprep.subr.bf16.mxu0 0
        %3847 = vmatpush1.bf16.msra.mxu0 0
        %3848 = vmatprep.subr.bf16.mxu0 0
        %3849 = vmatpush1.bf16.msra.mxu0 0
        %3850 = vmatprep.subr.bf16.mxu0 0
        %3851 = vmatpush1.bf16.msra.mxu0 0
        %3852 = vmatprep.subr.bf16.mxu0 0
        %3853 = vmatpush1.bf16.msra.mxu0 0
        %3854 = vmatprep.subr.bf16.mxu0 0
        %3855 = vmatpush1.bf16.msra.mxu0 0
        %3856 = vmatprep.subr.bf16.mxu0 0
        %3857 = vmatpush1.bf16.msra.mxu0 0
        %3858 = vmatprep.subr.bf16.mxu0 0
        %3859 = vmatpush1.bf16.msra.mxu0 0
        %3860 = vmatprep.subr.bf16.mxu0 0
        %3861 = vmatpush1.bf16.msra.mxu0 0
        %3862 = vmatprep.subr.bf16.mxu0 0
        %3863 = vmatpush1.bf16.msra.mxu0 0
        %3864 = vmatprep.subr.bf16.mxu0 0
        %3865 = vmatpush1.bf16.msra.mxu0 0
        %3866 = vmatprep.subr.bf16.mxu0 0
        %3867 = vmatpush1.bf16.msra.mxu0 0
        %3868 = vmatprep.subr.bf16.mxu0 0
        %3869 = vmatpush1.bf16.msra.mxu0 0
        %3870 = vmatprep.subr.bf16.mxu0 0
        %3871 = vmatpush1.bf16.msra.mxu0 0
        %3872 = vmatprep.mubr.bf16.mxu0 0
        %3873 = vmatmul.mubr.bf16.gmra.mrb[0].mxu0 %v3838
        %v3874 = vpop.f32.mrb[0].mxu0
        %v3875 = vadd.f32 %v3823, %v3874
        %v3876 = vpop.f32.mrb[0].mxu0
        %v3877 = vpop.f32.mrb[0].mxu0
        %v3878 = vpop.f32.mrb[0].mxu0
        %3879 = vdwg.mxu0
        %v3880 = vadd.f32 %v2548, %v3875
        %s3881 = scalar_lea.vmem %s13, 1
        %v3882 = vld [vmem:[%s3881] sm:$0x1]
        %s3883 = scalar_lea.vmem %s14, 1
        %v3884 = vld [vmem:[%s3883] sm:$0x1]
        %v3885 = vsel %vm1037, %v3880, 0.0
        %3886 = vadd.xlane.f32.xlu0 %v3885
        %v3887 = vpop.xlane.xlu0 %3886
        %v3888 = vmul.f32 %v3887, %v1041
        %v3889 = vsub.f32 %v3880, %v3888
        %v3890 = vmul.f32 %v3889, %v3889
        %v3891 = vsel %vm1037, %v3890, 0.0
        %3892 = vadd.xlane.f32.xlu0 %v3891
        %v3893 = vpop.xlane.xlu0 %3892
        %v3894 = vmul.f32 %v3893, %v1041
        %v3895 = vadd.f32 %v3894, 1e-05
        %v3896 = vrsqrt.pop %v3895
        %v3897 = vmul.f32 %v3889, %v3896
        %v3899 = vlaneseq
        %v3900 = vshrl.u32 %v3899, 7
        %v3901 = vsub.s32 0, %v3900
        %v3902 = vrot.slane %v3882, %v3901
        %v3904 = vmul.f32 %v3897, %v3902
        %v3906 = vlaneseq
        %v3907 = vshrl.u32 %v3906, 7
        %v3908 = vsub.s32 0, %v3907
        %v3909 = vrot.slane %v3884, %v3908
        %v3911 = vadd.f32 %v3904, %v3909
        %v3912 = vpack.c.bf16 %v3911, %v3911
        %s3913 = scalar_lea.vmem %s15, 16
        %v3914 = vld [vmem:[%s3913] sm:$0xf]
        %v3915 = vld [vmem:[%s3913 + $0x4] sm:$0xf]
        %v3916 = vld [vmem:[%s3913 + $0x8] sm:$0xf]
        %v3917 = vld [vmem:[%s3913 + $0xc] sm:$0xf]
        %s3918 = scalar_lea.vmem %s16, 1
        %v3919 = vld [vmem:[%s3918] sm:$0x1]
        %v3921 = vlaneseq
        %v3922 = vshrl.u32 %v3921, 7
        %v3923 = vsub.s32 0, %v3922
        %v3924 = vrot.slane %v3919, %v3923
        %v3930 = vunpack.c.l.b16 %v3914
        %v3931 = vunpack.c.l.b16 %v3915
        %v3932 = vunpack.c.l.b16 %v3916
        %v3933 = vunpack.c.l.b16 %v3917
        %v3934 = vpack.c.b16 %v3931, %v3930
        %v3935 = vpack.c.b16 %v3933, %v3932
        %v3939 = vsel %vm1037, %v3912, 0
        %3941 = vmatprep.subr.bf16.mxu0 0
        %3942 = vmatpush1.bf16.msra.mxu0 %v3934
        %3943 = vmatprep.subr.bf16.mxu0 0
        %3944 = vmatpush1.bf16.msra.mxu0 %v3935
        %3945 = vmatprep.subr.bf16.mxu0 0
        %3946 = vmatpush1.bf16.msra.mxu0 0
        %3947 = vmatprep.subr.bf16.mxu0 0
        %3948 = vmatpush1.bf16.msra.mxu0 0
        %3949 = vmatprep.subr.bf16.mxu0 0
        %3950 = vmatpush1.bf16.msra.mxu0 0
        %3951 = vmatprep.subr.bf16.mxu0 0
        %3952 = vmatpush1.bf16.msra.mxu0 0
        %3953 = vmatprep.subr.bf16.mxu0 0
        %3954 = vmatpush1.bf16.msra.mxu0 0
        %3955 = vmatprep.subr.bf16.mxu0 0
        %3956 = vmatpush1.bf16.msra.mxu0 0
        %3957 = vmatprep.subr.bf16.mxu0 0
        %3958 = vmatpush1.bf16.msra.mxu0 0
        %3959 = vmatprep.subr.bf16.mxu0 0
        %3960 = vmatpush1.bf16.msra.mxu0 0
        %3961 = vmatprep.subr.bf16.mxu0 0
        %3962 = vmatpush1.bf16.msra.mxu0 0
        %3963 = vmatprep.subr.bf16.mxu0 0
        %3964 = vmatpush1.bf16.msra.mxu0 0
        %3965 = vmatprep.subr.bf16.mxu0 0
        %3966 = vmatpush1.bf16.msra.mxu0 0
        %3967 = vmatprep.subr.bf16.mxu0 0
        %3968 = vmatpush1.bf16.msra.mxu0 0
        %3969 = vmatprep.subr.bf16.mxu0 0
        %3970 = vmatpush1.bf16.msra.mxu0 0
        %3971 = vmatprep.subr.bf16.mxu0 0
        %3972 = vmatpush1.bf16.msra.mxu0 0
        %3973 = vmatprep.mubr.bf16.mxu0 0
        %3974 = vmatmul.mubr.bf16.gmra.mrb[0].mxu0 %v3939
        %v3975 = vpop.f32.mrb[0].mxu0
        %v3976 = vadd.f32 %v3924, %v3975
        %v3977 = vpop.f32.mrb[0].mxu0
        %v3978 = vpop.f32.mrb[0].mxu0
        %v3979 = vpop.f32.mrb[0].mxu0
        %3980 = vdwg.mxu0
        %v3981 = vmul.f32 %v3976, 0.5
        %v3982 = vmul.f32 %v3976, 0.70710677
        %v3983 = verf.f32.pop %v3982
        %v3984 = vadd.f32 %v3983, 1.0
        %v3985 = vmul.f32 %v3981, %v3984
        %v3986 = vpack.c.bf16 %v3985, %v3985
        %s3987 = scalar_lea.vmem %s17, 32
        %v3988 = vld [vmem:[%s3987] sm:$0xf]
        %v3989 = vld [vmem:[%s3987 + $0x4] sm:$0xf]
        %v3990 = vld [vmem:[%s3987 + $0x8] sm:$0xf]
        %v3991 = vld [vmem:[%s3987 + $0xc] sm:$0xf]
        %v3992 = vld [vmem:[%s3987 + $0x10] sm:$0xf]
        %v3993 = vld [vmem:[%s3987 + $0x14] sm:$0xf]
        %v3994 = vld [vmem:[%s3987 + $0x18] sm:$0xf]
        %v3995 = vld [vmem:[%s3987 + $0x1c] sm:$0xf]
        %s3996 = scalar_lea.vmem %s18, 1
        %v3997 = vld [vmem:[%s3996] sm:$0x1]
        %v3999 = vlaneseq
        %v4000 = vshrl.u32 %v3999, 7
        %v4001 = vsub.s32 0, %v4000
        %v4002 = vrot.slane %v3997, %v4001
        %v4012 = vunpack.c.l.b16 %v3988
        %v4013 = vunpack.c.l.b16 %v3989
        %v4014 = vunpack.c.l.b16 %v3990
        %v4015 = vunpack.c.l.b16 %v3991
        %v4016 = vunpack.c.l.b16 %v3992
        %v4017 = vunpack.c.l.b16 %v3993
        %v4018 = vunpack.c.l.b16 %v3994
        %v4019 = vunpack.c.l.b16 %v3995
        %v4020 = vpack.c.b16 %v4013, %v4012
        %v4021 = vpack.c.b16 %v4015, %v4014
        %v4022 = vpack.c.b16 %v4017, %v4016
        %v4023 = vpack.c.b16 %v4019, %v4018
        %v4029 = vsel %vm2504, %v3986, 0
        %4031 = vmatprep.subr.bf16.mxu0 0
        %4032 = vmatpush1.bf16.msra.mxu0 %v4020
        %4033 = vmatprep.subr.bf16.mxu0 0
        %4034 = vmatpush1.bf16.msra.mxu0 %v4021
        %4035 = vmatprep.subr.bf16.mxu0 0
        %4036 = vmatpush1.bf16.msra.mxu0 %v4022
        %4037 = vmatprep.subr.bf16.mxu0 0
        %4038 = vmatpush1.bf16.msra.mxu0 %v4023
        %4039 = vmatprep.subr.bf16.mxu0 0
        %4040 = vmatpush1.bf16.msra.mxu0 0
        %4041 = vmatprep.subr.bf16.mxu0 0
        %4042 = vmatpush1.bf16.msra.mxu0 0
        %4043 = vmatprep.subr.bf16.mxu0 0
        %4044 = vmatpush1.bf16.msra.mxu0 0
        %4045 = vmatprep.subr.bf16.mxu0 0
        %4046 = vmatpush1.bf16.msra.mxu0 0
        %4047 = vmatprep.subr.bf16.mxu0 0
        %4048 = vmatpush1.bf16.msra.mxu0 0
        %4049 = vmatprep.subr.bf16.mxu0 0
        %4050 = vmatpush1.bf16.msra.mxu0 0
        %4051 = vmatprep.subr.bf16.mxu0 0
        %4052 = vmatpush1.bf16.msra.mxu0 0
        %4053 = vmatprep.subr.bf16.mxu0 0
        %4054 = vmatpush1.bf16.msra.mxu0 0
        %4055 = vmatprep.subr.bf16.mxu0 0
        %4056 = vmatpush1.bf16.msra.mxu0 0
        %4057 = vmatprep.subr.bf16.mxu0 0
        %4058 = vmatpush1.bf16.msra.mxu0 0
        %4059 = vmatprep.subr.bf16.mxu0 0
        %4060 = vmatpush1.bf16.msra.mxu0 0
        %4061 = vmatprep.subr.bf16.mxu0 0
        %4062 = vmatpush1.bf16.msra.mxu0 0
        %4063 = vmatprep.mubr.bf16.mxu0 0
        %4064 = vmatmul.mubr.bf16.gmra.mrb[0].mxu0 %v4029
        %v4065 = vpop.f32.mrb[0].mxu0
        %v4066 = vadd.f32 %v4002, %v4065
        %v4067 = vpop.f32.mrb[0].mxu0
        %v4068 = vpop.f32.mrb[0].mxu0
        %v4069 = vpop.f32.mrb[0].mxu0
        %4070 = vdwg.mxu0
        %v4071 = vadd.f32 %v3880, %v4066
        %v4072 = vld [vmem:[%s19] sm:$0x1]
        %v4073 = vld [vmem:[%s20] sm:$0x1]
        %v4074 = vsel %vm1037, %v4071, 0.0
        %4075 = vadd.xlane.f32.xlu0 %v4074
        %v4076 = vpop.xlane.xlu0 %4075
        %v4077 = vmul.f32 %v4076, %v1041
        %v4078 = vsub.f32 %v4071, %v4077
        %v4079 = vmul.f32 %v4078, %v4078
        %v4080 = vsel %vm1037, %v4079, 0.0
        %4081 = vadd.xlane.f32.xlu0 %v4080
        %v4082 = vpop.xlane.xlu0 %4081
        %v4083 = vmul.f32 %v4082, %v1041
        %v4084 = vadd.f32 %v4083, 1e-05
        %v4085 = vrsqrt.pop %v4084
        %v4086 = vmul.f32 %v4078, %v4085
        %v4088 = vlaneseq
        %v4089 = vshrl.u32 %v4088, 7
        %v4090 = vsub.s32 0, %v4089
        %v4091 = vrot.slane %v4072, %v4090
        %v4093 = vmul.f32 %v4086, %v4091
        %v4095 = vlaneseq
        %v4096 = vshrl.u32 %v4095, 7
        %v4097 = vsub.s32 0, %v4096
        %v4098 = vrot.slane %v4073, %v4097
        %v4100 = vadd.f32 %v4093, %v4098
        %v4101 = vpack.c.bf16 %v4100, %v4100
        %v4102 = vld [vmem:[%s21] sm:$0xf]
        %v4103 = vld [vmem:[%s21 + $0x4] sm:$0xf]
        %v4104 = vld [vmem:[%s21 + $0x8] sm:$0xf]
        %v4105 = vld [vmem:[%s21 + $0xc] sm:$0xf]
        %v4110 = vunpack.c.l.b16 %v4102
        %v4111 = vunpack.c.l.b16 %v4103
        %v4112 = vunpack.c.l.b16 %v4104
        %v4113 = vunpack.c.l.b16 %v4105
        %v4114 = vpack.c.b16 %v4111, %v4110
        %v4115 = vpack.c.b16 %v4113, %v4112
        %v4119 = vsel %vm1037, %v4101, 0
        %4121 = vmatprep.subr.bf16.mxu0 0
        %4122 = vmatpush1.bf16.msra.mxu0 %v4114
        %4123 = vmatprep.subr.bf16.mxu0 0
        %4124 = vmatpush1.bf16.msra.mxu0 %v4115
        %4125 = vmatprep.subr.bf16.mxu0 0
        %4126 = vmatpush1.bf16.msra.mxu0 0
        %4127 = vmatprep.subr.bf16.mxu0 0
        %4128 = vmatpush1.bf16.msra.mxu0 0
        %4129 = vmatprep.subr.bf16.mxu0 0
        %4130 = vmatpush1.bf16.msra.mxu0 0
        %4131 = vmatprep.subr.bf16.mxu0 0
        %4132 = vmatpush1.bf16.msra.mxu0 0
        %4133 = vmatprep.subr.bf16.mxu0 0
        %4134 = vmatpush1.bf16.msra.mxu0 0
        %4135 = vmatprep.subr.bf16.mxu0 0
        %4136 = vmatpush1.bf16.msra.mxu0 0
        %4137 = vmatprep.subr.bf16.mxu0 0
        %4138 = vmatpush1.bf16.msra.mxu0 0
        %4139 = vmatprep.subr.bf16.mxu0 0
        %4140 = vmatpush1.bf16.msra.mxu0 0
        %4141 = vmatprep.subr.bf16.mxu0 0
        %4142 = vmatpush1.bf16.msra.mxu0 0
        %4143 = vmatprep.subr.bf16.mxu0 0
        %4144 = vmatpush1.bf16.msra.mxu0 0
        %4145 = vmatprep.subr.bf16.mxu0 0
        %4146 = vmatpush1.bf16.msra.mxu0 0
        %4147 = vmatprep.subr.bf16.mxu0 0
        %4148 = vmatpush1.bf16.msra.mxu0 0
        %4149 = vmatprep.subr.bf16.mxu0 0
        %4150 = vmatpush1.bf16.msra.mxu0 0
        %4151 = vmatprep.subr.bf16.mxu0 0
        %4152 = vmatpush1.bf16.msra.mxu0 0
        %4153 = vmatprep.mubr.bf16.mxu0 0
        %4154 = vmatmul.mubr.bf16.gmra.mrb[0].mxu0 %v4119
        %v4155 = vpop.f32.mrb[0].mxu0
        %v4156 = vadd.f32 0.0, %v4155
        %v4157 = vpop.f32.mrb[0].mxu0
        %v4158 = vpop.f32.mrb[0].mxu0
        %v4159 = vpop.f32.mrb[0].mxu0
        %4160 = vdwg.mxu0
        %4161 = vst.msk [vmem:[%s615] sm:$0xff] %vm2504, %v4156
        %s4162 = sand.u32 %s470, 1
        %s4163 = scalar_lea.sflag [#allocation7], %s4162
        %s4164 = sand.u32 %s470, 1
        %s4165 = smul.addr %s4164, 8
        %s4166 = scalar_lea.vmem [#allocation6], %s4165
        // Predicated region
        $region341: #{tpu_custom_call.1} parent=99 // pred_check
          %p4167 = pneg %p480
        $region342: #{tpu_custom_call.1} parent=99 // pred_check_branch
          %4169 = sbr.rel (%p4167) target = $region344
        $region343: #{tpu_custom_call.1} parent=99 // pred_region
          %s4171 = ssub.s32 128, 128
          %4172 = vsyncadd %s4163, %s4171
          %s4173 = smul.addr %s42, 128
          %s4174 = scalar_lea.hbm %s22, %s4173
          %s4176 = sshll.u32 %s4166, 4
          %s4177 = int_to_ptr.vmem [resolvable:$true] %s4176
          %4179 = dma.vmem_to_hbm [thread:$0]  %s4177, 128, %s4174, %s4163
        $region344: #{tpu_custom_call.1} parent=99 // pred_fallthru
          _
      $region100: #{tpu_custom_call.1} parent=5 // pred_fallthru
        _
      %p4180 = scmp.le.s32.totalorder 2, %s37
      // Predicated region
      $region345: #{tpu_custom_call.1} parent=5 // pred_check
        %p4181 = pneg %p4180
      $region346: #{tpu_custom_call.1} parent=5 // pred_check_branch
        %4183 = sbr.rel (%p4181) target = $region348
      $region347: #{tpu_custom_call.1} parent=5 // pred_region
        %s4184 = ssub.s32 %s37, 2
        // Predicated region
        $region349: #{tpu_custom_call.1} parent=347 // pred_check
          %p4185 = pneg %p486
        $region350: #{tpu_custom_call.1} parent=347 // pred_check_branch
          %4187 = sbr.rel (%p4185) target = $region352
        $region351: #{tpu_custom_call.1} parent=347 // pred_region
          %s4188 = sand.u32 %s471, 1
          %s4189 = scalar_lea.sflag [#allocation7], %s4188
          %s4190 = sand.u32 %s471, 1
          %s4191 = smul.addr %s4190, 8
          %s4192 = scalar_lea.vmem [#allocation6], %s4191
          %4193 = dma.done %s4189, 128
        $region352: #{tpu_custom_call.1} parent=347 // pred_fallthru
          _
      $region348: #{tpu_custom_call.1} parent=5 // pred_fallthru
        _
    $region6: #{tpu_custom_call.1} parent=1 // loop_footer
      %s41 = sadd.s32 1, %s37
    $region7: #{tpu_custom_call.1} parent=1 // loop_footer_branch
      %36 = sbr.rel target = $region3
    $region8: #{tpu_custom_call.1} parent=1 // loop_exit
      _
    %4194 = vsyncpa [#allocation7], 1
    %s4195 = scalar_lea.sflag [#allocation7], 1
    %4196 = vsyncpa %s4195, 1
  %4197 = vsyncmov [#allocation3]
  %s4198 = vpop.sfrf %4197
  %p4199 = scmp.eq.s32.totalorder %s4198, 0
  %p4200 = pneg %p4199
  %4202 = shalt.err (%p4200)
  %s4203 = scalar_lea.sflag [#allocation3], 1
  %4204 = vsyncmov %s4203
  %s4205 = vpop.sfrf %4204
  %p4206 = scmp.eq.s32.totalorder %s4205, 0
  %p4207 = pneg %p4206
  %4209 = shalt.err (%p4207)
  %s4210 = scalar_lea.sflag [#allocation3], 2
  %4211 = vsyncmov %s4210
  %s4212 = vpop.sfrf %4211
  %p4213 = scmp.eq.s32.totalorder %s4212, 0
  %p4214 = pneg %p4213
  %4216 = shalt.err (%p4214)
  %s4217 = scalar_lea.sflag [#allocation3], 3
  %4218 = vsyncmov %s4217
  %s4219 = vpop.sfrf %4218
  %p4220 = scmp.eq.s32.totalorder %s4219, 0
  %p4221 = pneg %p4220
  %4223 = shalt.err (%p4221)
  %s4224 = scalar_lea.sflag [#allocation3], 4
  %4225 = vsyncmov %s4224
  %s4226 = vpop.sfrf %4225
  %p4227 = scmp.eq.s32.totalorder %s4226, 0
  %p4228 = pneg %p4227
  %4230 = shalt.err (%p4228)
  %s4231 = scalar_lea.sflag [#allocation3], 5
  %4232 = vsyncmov %s4231
  %s4233 = vpop.sfrf %4232
  %p4234 = scmp.eq.s32.totalorder %s4233, 0
  %p4235 = pneg %p4234
  %4237 = shalt.err (%p4235)
  %s4238 = scalar_lea.sflag [#allocation3], 6
  %4239 = vsyncmov %s4238
  %s4240 = vpop.sfrf %4239
  %p4241 = scmp.eq.s32.totalorder %s4240, 0
  %p4242 = pneg %p4241
  %4244 = shalt.err (%p4242)
  %s4245 = scalar_lea.sflag [#allocation3], 7
  %4246 = vsyncmov %s4245
  %s4247 = vpop.sfrf %4246
  %p4248 = scmp.eq.s32.totalorder %s4247, 0
  %p4249 = pneg %p4248
  %4251 = shalt.err (%p4249)

</llo_original>
